<compile_context>
chip_gen: v7x
topology: tpu7x:2x2x1
jax: 0.10.0
libtpu: 0.0.40
codegen_flags: <defaults>
</compile_context>

<pallas_src>
import functools
import math

import numpy as np
import jax
import jax.numpy as jnp
from jax.experimental import pallas as pl
from jax.experimental.pallas import tpu as pltpu


# ----------------------------------------------------------------------------
# Shared layout of the "heads / constants" slab (packer and kernel must agree).
# ----------------------------------------------------------------------------
def _head_layout(B, L, E, H):
    BL = B * L
    order = [
        # used inside the alternates loop
        ("seg2t", 2 * H, 2 * E),     # head selector rows (para heads | epi heads)
        ("aff_bias", BL, BL),        # additive co-attention mask (0 / -1e30)
        # epilogue (token MLPs + output head); selectors folded at pack time
        ("mlp_w1", 2 * E, E),        # blockdiag(MLP_para.w1, MLP_epi.w1)
        ("mlp_w2", E, 2),            # blockdiag(MLP_para.w2, MLP_epi.w2)
        ("mlp_b1", 1, E),
        ("mlp_b2", 1, 2),
        ("o_w1p", BL, L // 2),       # out.w1[:L] replicated over batch (row n -> n%L)
        ("o_w1e", BL, L // 2),       # out.w1[L:] replicated over batch
        ("o_b1", 1, L // 2),
        ("o_w2", L // 2, 1),
        ("o_b2", 1, 1),
        ("row_sel", B, BL),          # example selector: row_sel[b, n] = (n // L == b)
    ]
    layout = {}
    col = 0
    for name, rows, cols in order:
        layout[name] = (rows, col, cols)
        col += cols
    return layout, col


# ----------------------------------------------------------------------------
# Fused forward kernel
# ----------------------------------------------------------------------------
def _make_fused_kernel(B, L, E, H, A):
    BL = B * L
    hd = E // H
    scale = 1.0 / math.sqrt(hd)
    f32 = jnp.float32
    layout, _ = _head_layout(B, L, E, H)
    E2, E4, E6, E8, E9, E11 = 2 * E, 4 * E, 6 * E, 8 * E, 9 * E, 11 * E

    def kernel(pe_ref, w_alt_ref, b_alt_ref, head_ref, out_ref):
        def hs(name):
            rows, c0, cols = layout[name]
            return head_ref[0:rows, c0:c0 + cols]

        def leaky(x):                       # LeakyReLU, default slope 0.01
            return jnp.where(x >= 0.0, x, 0.01 * x)

        # constants reused by every alternate (tiny, kept live across the loop)
        seg2t = hs("seg2t")                 # (2H, 2E)
        aff_bias = hs("aff_bias")           # (BL, BL)

        pe = pe_ref[...]                    # (BL, 2E) = [para | epi]

        # NOTE: A is tiny (3); keep this loop unrolled.  If A/BL/E grow,
        # switch to lax.fori_loop with dynamic slab indexing to bound live
        # ranges and code size.
        for i in range(A):
            # ---- MultiheadAttention over the batch dim (torch quirk),
            #      para + epi fused block-diagonally into ONE QKV matmul ------
            qkv = (jnp.dot(pe, w_alt_ref[i, :, 0:E6], preferred_element_type=f32)
                   + b_alt_ref[i, :, 0:E6])                       # (BL, 6E)
            q = qkv[:, 0:E2] * scale
            k = qkv[:, E2:E4]
            v = qkv[:, E4:E6]

            # all batch offsets via XLU sublane rolls (no permutation matmuls)
            ks, vs = [k], [v]
            for off in range(1, B):
                ks.append(pltpu.roll(k, shift=off * L, axis=0))
                vs.append(pltpu.roll(v, shift=off * L, axis=0))

            # per-head scores for every offset: (BL, 2H) each (A @ B^T form)
            s = [jax.lax.dot_general(q * kk, seg2t, (((1,), (1,)), ((), ())),
                                     preferred_element_type=f32) for kk in ks]
            m = s[0]
            for t in s[1:]:
                m = jnp.maximum(m, t)
            e = [jnp.exp(t - m) for t in s]
            den = e[0]
            for t in e[1:]:
                den = den + t
            inv = pl.reciprocal(den, approx=True)                 # (BL, 2H)

            attn = jnp.dot(e[0] * inv, seg2t, preferred_element_type=f32) * vs[0]
            for t, vv in zip(e[1:], vs[1:]):
                attn = attn + jnp.dot(t * inv, seg2t,
                                      preferred_element_type=f32) * vv

            pe = (jnp.dot(attn, w_alt_ref[i, :, E6:E8],
                          preferred_element_type=f32)
                  + b_alt_ref[i, :, E6:E8])                       # (BL, 2E)

            # ---- Co-attention: tanh affinity -> row/col softmax -> contexts
            #      -> linear + tanh (output_size = E) ------------------------
            p_act = pe[:, 0:E]
            e_act = pe[:, E:E2]
            pw = jnp.dot(p_act, w_alt_ref[i, 0:E, E8:E9],
                         preferred_element_type=f32)              # (BL, E)
            aff = jnp.tanh(jax.lax.dot_general(
                pw, e_act, (((1,), (1,)), ((), ())),
                preferred_element_type=f32)) + aff_bias           # (BL, BL)
            ap = jnp.exp(aff - jnp.max(aff, axis=-1, keepdims=True))
            ap = ap * pl.reciprocal(jnp.sum(ap, axis=-1, keepdims=True),
                                    approx=True)
            ae = jnp.exp(aff - jnp.max(aff, axis=0, keepdims=True))
            ae = ae * pl.reciprocal(jnp.sum(ae, axis=0, keepdims=True),
                                    approx=True)
            p_ctx = jnp.dot(ap, e_act, preferred_element_type=f32)      # (BL, E)
            e_ctx = jax.lax.dot_general(ae, p_act, (((0,), (0,)), ((), ())),
                                        preferred_element_type=f32)     # (BL, E)
            pe = jnp.tanh(
                jnp.dot(p_ctx, w_alt_ref[i, 0:E, E9:E11],
                        preferred_element_type=f32)
                + jnp.dot(e_ctx, w_alt_ref[i, E:E2, E9:E11],
                          preferred_element_type=f32)
                + b_alt_ref[i, :, E9:E11])                        # (BL, 2E)

        # ---- Token MLP heads (block-diagonal; Dropout = identity) ----------
        h = leaky(jnp.dot(pe, hs("mlp_w1"), preferred_element_type=f32)
                  + hs("mlp_b1"))                                 # (BL, E)
        sc = jnp.dot(h, hs("mlp_w2"), preferred_element_type=f32) + hs("mlp_b2")
        # sc[:, 0] = para token scores, sc[:, 1] = epi token scores  (BL, 2)

        # ---- Output head; concat / column selectors folded into weights ----
        weighted = sc[:, 0:1] * hs("o_w1p") + sc[:, 1:2] * hs("o_w1e")  # (BL, L//2)
        h1 = leaky(jnp.dot(hs("row_sel"), weighted, preferred_element_type=f32)
                   + hs("o_b1"))                                  # (B, L//2)
        y = jnp.dot(h1, hs("o_w2"), preferred_element_type=f32) + hs("o_b2")
        out_ref[...] = 1.0 / (1.0 + jnp.exp(-y))                  # Sigmoid

    return kernel


# ----------------------------------------------------------------------------
# Parameter construction (torch-like layouts) and one-time packing
# ----------------------------------------------------------------------------
def init_params(key, vocab_size, embed_size, seq_length, num_alternates):
    keys = iter(jax.random.split(key, 64))

    def nrm(shape, scl=0.05):
        return (scl * jax.random.normal(next(keys), shape)).astype(jnp.float32)

    E, L = embed_size, seq_length
    params = {
        "embedding": nrm((vocab_size, E), 1.0 / math.sqrt(E)),
        "mha_para": [], "mha_epi": [], "coattn": [],
    }
    for _ in range(num_alternates):
        for name in ("mha_para", "mha_epi"):
            params[name].append({
                "in_w": nrm((3 * E, E)),     # torch in_proj_weight layout
                "in_b": nrm((3 * E,)),
                "out_w": nrm((E, E)),        # torch out_proj.weight layout
                "out_b": nrm((E,)),
            })
        params["coattn"].append({
            "w_aff": nrm((E, E)),
            "w_p": nrm((E, E)), "b_p": nrm((E,)),
            "w_e": nrm((E, E)), "b_e": nrm((E,)),
        })
    params["mlp_para"] = {"w1": nrm((E, E // 2)), "b1": nrm((E // 2,)),
                          "w2": nrm((E // 2, 1)), "b2": nrm((1,))}
    params["mlp_epi"] = {"w1": nrm((E, E // 2)), "b1": nrm((E // 2,)),
                         "w2": nrm((E // 2, 1)), "b2": nrm((1,))}
    params["out"] = {"w1": nrm((2 * L, L // 2)), "b1": nrm((L // 2,)),
                     "w2": nrm((L // 2, 1)), "b2": nrm((1,))}
    return params


def pack_params(params, batch_size, num_heads):
    """One-time repack of torch-layout params into the fused-kernel slabs."""
    E = params["embedding"].shape[1]
    A = len(params["coattn"])
    L = params["out"]["w1"].shape[0] // 2
    B, H = batch_size, num_heads
    BL, hd, E2 = B * L, E // num_heads, 2 * E

    def np32(x):
        return np.asarray(x, dtype=np.float32)

    # per-alternate weight/bias slabs; column layout:
    #   [0:6E)   block-diag QKV   (q_p | q_e | k_p | k_e | v_p | v_e)
    #   [6E:8E)  block-diag out-projection
    #   [8E:9E)  co-attn affinity weight (rows 0:E)
    #   [9E:11E) block-diag co-attn output (w_p rows 0:E, w_e rows E:2E)
    w_alt = np.zeros((A, E2, 11 * E), np.float32)
    b_alt = np.zeros((A, 1, 11 * E), np.float32)
    for i in range(A):
        mp, me, co = params["mha_para"][i], params["mha_epi"][i], params["coattn"][i]
        for j in range(3):                       # 0=q, 1=k, 2=v
            c = 2 * j * E
            w_alt[i, 0:E, c:c + E] = np32(mp["in_w"])[j * E:(j + 1) * E, :].T
            w_alt[i, E:E2, c + E:c + 2 * E] = np32(me["in_w"])[j * E:(j + 1) * E, :].T
            b_alt[i, 0, c:c + E] = np32(mp["in_b"])[j * E:(j + 1) * E]
            b_alt[i, 0, c + E:c + 2 * E] = np32(me["in_b"])[j * E:(j + 1) * E]
        w_alt[i, 0:E, 6 * E:7 * E] = np32(mp["out_w"]).T
        w_alt[i, E:E2, 7 * E:8 * E] = np32(me["out_w"]).T
        b_alt[i, 0, 6 * E:7 * E] = np32(mp["out_b"])
        b_alt[i, 0, 7 * E:8 * E] = np32(me["out_b"])
        w_alt[i, 0:E, 8 * E:9 * E] = np32(co["w_aff"])
        w_alt[i, 0:E, 9 * E:10 * E] = np32(co["w_p"])
        w_alt[i, E:E2, 10 * E:11 * E] = np32(co["w_e"])
        b_alt[i, 0, 9 * E:10 * E] = np32(co["b_p"])
        b_alt[i, 0, 10 * E:11 * E] = np32(co["b_e"])

    # heads / constants slab
    layout, ncols = _head_layout(B, L, E, H)
    head = np.zeros((E2, ncols), np.float32)

    def put(name, value):
        rows, c0, cols = layout[name]
        value = np.asarray(value, np.float32)
        assert value.shape == (rows, cols), (name, value.shape, (rows, cols))
        head[0:rows, c0:c0 + cols] = value

    d = np.arange(E2)
    head_of = np.where(d < E, d // hd, H + (d - E) // hd)        # lane -> head id
    put("seg2t", (head_of[None, :] == np.arange(2 * H)[:, None]).astype(np.float32))

    n = np.arange(BL)
    same = (n[:, None] // L) == (n[None, :] // L)
    put("aff_bias", np.where(same, 0.0, -1e30))
    put("row_sel", (n[None, :] // L == np.arange(B)[:, None]).astype(np.float32))

    mpp, mpe = params["mlp_para"], params["mlp_epi"]
    mlp_w1 = np.zeros((E2, E), np.float32)
    mlp_w1[0:E, 0:E // 2] = np32(mpp["w1"])
    mlp_w1[E:E2, E // 2:E] = np32(mpe["w1"])
    put("mlp_w1", mlp_w1)
    mlp_w2 = np.zeros((E, 2), np.float32)
    mlp_w2[0:E // 2, 0:1] = np32(mpp["w2"])
    mlp_w2[E // 2:E, 1:2] = np32(mpe["w2"])
    put("mlp_w2", mlp_w2)
    put("mlp_b1", np.concatenate([np32(mpp["b1"]), np32(mpe["b1"])])[None, :])
    put("mlp_b2", np.concatenate([np32(mpp["b2"]), np32(mpe["b2"])])[None, :])

    op = params["out"]
    w1 = np32(op["w1"])                                          # (2L, L//2)
    put("o_w1p", np.tile(w1[:L, :], (B, 1)))                     # row n -> w1[n % L]
    put("o_w1e", np.tile(w1[L:, :], (B, 1)))
    put("o_b1", np32(op["b1"])[None, :])
    put("o_w2", np32(op["w2"]))
    put("o_b2", np32(op["b2"])[None, :])

    return dict(emb=jnp.asarray(np32(params["embedding"])),
                w_alt=jnp.asarray(w_alt), b_alt=jnp.asarray(b_alt),
                head=jnp.asarray(head))


# ----------------------------------------------------------------------------
# Forward: a single grid-less pallas_call, everything VMEM resident
# ----------------------------------------------------------------------------
@functools.partial(jax.jit, static_argnames=("num_heads", "num_alternates"))
def forward(packed, para_idx, epi_idx, num_heads, num_alternates):
    B, L = para_idx.shape
    E = packed["emb"].shape[1]
    BL = B * L

    # Embedding gather hoisted out of the kernel (tiny XLA take in the same
    # jit); the kernel consumes the (BL, 2E) [para | epi] activation slab.
    para_emb = jnp.take(packed["emb"], para_idx.reshape(BL).astype(jnp.int32), axis=0)
    epi_emb = jnp.take(packed["emb"], epi_idx.reshape(BL).astype(jnp.int32), axis=0)
    pe0 = jnp.concatenate([para_emb, epi_emb], axis=1).astype(jnp.float32)

    vmem = pl.BlockSpec(memory_space=pltpu.MemorySpace.VMEM)
    kernel = _make_fused_kernel(B, L, E, num_heads, num_alternates)
    # TODO(synk): no grid / no v7x dual-core split -- the reference MHA attends
    # across the batch dim, so all B examples are coupled inside one kernel.
    return pl.pallas_call(
        kernel,
        out_shape=jax.ShapeDtypeStruct((B, 1), jnp.float32),
        in_specs=[vmem, vmem, vmem, vmem],
        out_specs=vmem,
    )(pe0, packed["w_alt"], packed["b_alt"], packed["head"])


if __name__ == "__main__":
    VOCAB, EMBED, HEADS, SEQ, BATCH, NUM_ALT = 50, 32, 4, 8, 2, 3

    key = jax.random.PRNGKey(0)
    pkey, k_para, k_epi = jax.random.split(key, 3)
    params = init_params(pkey, VOCAB, EMBED, SEQ, NUM_ALT)
    packed = pack_params(params, batch_size=BATCH, num_heads=HEADS)

    para_idx = jax.random.randint(k_para, (BATCH, SEQ), 0, VOCAB, dtype=jnp.int32)
    epi_idx = jax.random.randint(k_epi, (BATCH, SEQ), 0, VOCAB, dtype=jnp.int32)

    out = forward(packed, para_idx, epi_idx,
                  num_heads=HEADS, num_alternates=NUM_ALT)
    jax.block_until_ready(out)
    assert out.shape == (BATCH, 1), out.shape
    assert bool(jnp.all(jnp.isfinite(out)))
    assert bool(jnp.all((out >= 0.0) & (out <= 1.0)))
    print("KERNEL_OK")
</pallas_src>

<mosaic_0001>
module attributes {stable_mosaic.version = 11 : i64} {
  func.func @kernel(%arg0: memref<16x64xf32, #tpu.memory_space<vmem>>, %arg1: memref<3x64x352xf32, #tpu.memory_space<vmem>>, %arg2: memref<3x1x352xf32, #tpu.memory_space<vmem>>, %arg3: memref<64x178xf32, #tpu.memory_space<vmem>>, %arg4: memref<2x1xf32, #tpu.memory_space<vmem>>) attributes {dimension_semantics = [], scalar_prefetch = 0 : i64, scratch_operands = 0 : i64, tpu.core_type = #tpu.core_type<tc>} {
    %c0 = arith.constant 0 : index
    %c0_0 = arith.constant 0 : index
    %0 = vector.load %arg3[%c0, %c0_0] : memref<64x178xf32, #tpu.memory_space<vmem>>, vector<8x64xf32>
    %c0_1 = arith.constant 0 : index
    %c64 = arith.constant 64 : index
    %1 = vector.load %arg3[%c0_1, %c64] : memref<64x178xf32, #tpu.memory_space<vmem>>, vector<16x16xf32>
    %c0_2 = arith.constant 0 : index
    %c0_3 = arith.constant 0 : index
    %2 = vector.load %arg0[%c0_2, %c0_3] : memref<16x64xf32, #tpu.memory_space<vmem>>, vector<16x64xf32>
    %c0_4 = arith.constant 0 : index
    %c0_5 = arith.constant 0 : index
    %c0_6 = arith.constant 0 : index
    %3 = vector.load %arg1[%c0_4, %c0_5, %c0_6] : memref<3x64x352xf32, #tpu.memory_space<vmem>>, vector<1x64x192xf32>
    %4 = vector.shape_cast %3 : vector<1x64x192xf32> to vector<64x192xf32>
    %cst = arith.constant dense<0.000000e+00> : vector<16x192xf32>
    %5 = tpu.matmul %2, %4, %cst {dimension_numbers = #tpu.dot_dimension_numbers<[1], [0], [0], [1], [0, 0, 1, 1], [], []>} : vector<16x64xf32>, vector<64x192xf32>, vector<16x192xf32> -> vector<16x192xf32>
    %c0_7 = arith.constant 0 : index
    %c0_8 = arith.constant 0 : index
    %c0_9 = arith.constant 0 : index
    %6 = vector.load %arg2[%c0_7, %c0_8, %c0_9] : memref<3x1x352xf32, #tpu.memory_space<vmem>>, vector<1x1x192xf32>
    %7 = vector.shape_cast %6 : vector<1x1x192xf32> to vector<1x192xf32>
    %8 = vector.broadcast %7 : vector<1x192xf32> to vector<16x192xf32>
    %9 = arith.addf %5, %8 : vector<16x192xf32>
    %10 = vector.extract_strided_slice %9 {offsets = [0, 0], sizes = [16, 64], strides = [1, 1]} : vector<16x192xf32> to vector<16x64xf32>
    %cst_10 = arith.constant 0.353553385 : f32
    %11 = vector.broadcast %cst_10 : f32 to vector<16x64xf32>
    %12 = arith.mulf %10, %11 : vector<16x64xf32>
    %13 = vector.extract_strided_slice %9 {offsets = [0, 64], sizes = [16, 64], strides = [1, 1]} : vector<16x192xf32> to vector<16x64xf32>
    %14 = vector.extract_strided_slice %9 {offsets = [0, 128], sizes = [16, 64], strides = [1, 1]} : vector<16x192xf32> to vector<16x64xf32>
    %c8_i32 = arith.constant 8 : i32
    %15 = tpu.dynamic_rotate %13 by %c8_i32 dim 0 : vector<16x64xf32>, i32 -> vector<16x64xf32>
    %c8_i32_11 = arith.constant 8 : i32
    %16 = tpu.dynamic_rotate %14 by %c8_i32_11 dim 0 : vector<16x64xf32>, i32 -> vector<16x64xf32>
    %17 = arith.mulf %12, %13 : vector<16x64xf32>
    %cst_12 = arith.constant dense<0.000000e+00> : vector<16x8xf32>
    %18 = tpu.matmul %17, %0, %cst_12 {dimension_numbers = #tpu.dot_dimension_numbers<[1], [1], [0], [0], [0, 0, 1, 0], [], []>} : vector<16x64xf32>, vector<8x64xf32>, vector<16x8xf32> -> vector<16x8xf32>
    %19 = arith.mulf %12, %15 : vector<16x64xf32>
    %cst_13 = arith.constant dense<0.000000e+00> : vector<16x8xf32>
    %20 = tpu.matmul %19, %0, %cst_13 {dimension_numbers = #tpu.dot_dimension_numbers<[1], [1], [0], [0], [0, 0, 1, 0], [], []>} : vector<16x64xf32>, vector<8x64xf32>, vector<16x8xf32> -> vector<16x8xf32>
    %21 = arith.maximumf %18, %20 : vector<16x8xf32>
    %22 = arith.subf %18, %21 : vector<16x8xf32>
    %23 = math.exp %22 : vector<16x8xf32>
    %24 = arith.subf %20, %21 : vector<16x8xf32>
    %25 = math.exp %24 : vector<16x8xf32>
    %26 = arith.addf %23, %25 : vector<16x8xf32>
    %27 = tpu.reciprocal %26 {approx = true} : vector<16x8xf32> -> vector<16x8xf32>
    %28 = arith.mulf %23, %27 : vector<16x8xf32>
    %cst_14 = arith.constant dense<0.000000e+00> : vector<16x64xf32>
    %29 = tpu.matmul %28, %0, %cst_14 {dimension_numbers = #tpu.dot_dimension_numbers<[1], [0], [0], [1], [0, 0, 1, 1], [], []>} : vector<16x8xf32>, vector<8x64xf32>, vector<16x64xf32> -> vector<16x64xf32>
    %30 = arith.mulf %29, %14 : vector<16x64xf32>
    %31 = arith.mulf %25, %27 : vector<16x8xf32>
    %cst_15 = arith.constant dense<0.000000e+00> : vector<16x64xf32>
    %32 = tpu.matmul %31, %0, %cst_15 {dimension_numbers = #tpu.dot_dimension_numbers<[1], [0], [0], [1], [0, 0, 1, 1], [], []>} : vector<16x8xf32>, vector<8x64xf32>, vector<16x64xf32> -> vector<16x64xf32>
    %33 = arith.mulf %32, %16 : vector<16x64xf32>
    %34 = arith.addf %30, %33 : vector<16x64xf32>
    %c0_16 = arith.constant 0 : index
    %c0_17 = arith.constant 0 : index
    %c192 = arith.constant 192 : index
    %35 = vector.load %arg1[%c0_16, %c0_17, %c192] : memref<3x64x352xf32, #tpu.memory_space<vmem>>, vector<1x64x64xf32>
    %36 = vector.shape_cast %35 : vector<1x64x64xf32> to vector<64x64xf32>
    %cst_18 = arith.constant dense<0.000000e+00> : vector<16x64xf32>
    %37 = tpu.matmul %34, %36, %cst_18 {dimension_numbers = #tpu.dot_dimension_numbers<[1], [0], [0], [1], [0, 0, 1, 1], [], []>} : vector<16x64xf32>, vector<64x64xf32>, vector<16x64xf32> -> vector<16x64xf32>
    %c0_19 = arith.constant 0 : index
    %c0_20 = arith.constant 0 : index
    %c192_21 = arith.constant 192 : index
    %38 = vector.load %arg2[%c0_19, %c0_20, %c192_21] : memref<3x1x352xf32, #tpu.memory_space<vmem>>, vector<1x1x64xf32>
    %39 = vector.shape_cast %38 : vector<1x1x64xf32> to vector<1x64xf32>
    %40 = vector.broadcast %39 : vector<1x64xf32> to vector<16x64xf32>
    %41 = arith.addf %37, %40 : vector<16x64xf32>
    %42 = vector.extract_strided_slice %41 {offsets = [0, 0], sizes = [16, 32], strides = [1, 1]} : vector<16x64xf32> to vector<16x32xf32>
    %43 = vector.extract_strided_slice %41 {offsets = [0, 32], sizes = [16, 32], strides = [1, 1]} : vector<16x64xf32> to vector<16x32xf32>
    %c0_22 = arith.constant 0 : index
    %c0_23 = arith.constant 0 : index
    %c256 = arith.constant 256 : index
    %44 = vector.load %arg1[%c0_22, %c0_23, %c256] : memref<3x64x352xf32, #tpu.memory_space<vmem>>, vector<1x32x32xf32>
    %45 = vector.shape_cast %44 : vector<1x32x32xf32> to vector<32x32xf32>
    %cst_24 = arith.constant dense<0.000000e+00> : vector<16x32xf32>
    %46 = tpu.matmul %42, %45, %cst_24 {dimension_numbers = #tpu.dot_dimension_numbers<[1], [0], [0], [1], [0, 0, 1, 1], [], []>} : vector<16x32xf32>, vector<32x32xf32>, vector<16x32xf32> -> vector<16x32xf32>
    %cst_25 = arith.constant dense<0.000000e+00> : vector<16x16xf32>
    %47 = tpu.matmul %46, %43, %cst_25 {dimension_numbers = #tpu.dot_dimension_numbers<[1], [1], [0], [0], [0, 0, 1, 0], [], []>} : vector<16x32xf32>, vector<16x32xf32>, vector<16x16xf32> -> vector<16x16xf32>
    %48 = math.tanh %47 : vector<16x16xf32>
    %49 = arith.addf %48, %1 : vector<16x16xf32>
    %cst_26 = arith.constant dense<0xFF800000> : vector<16xf32>
    %50 = vector.multi_reduction <maximumf>, %49, %cst_26 [1] : vector<16x16xf32> to vector<16xf32>
    %51 = vector.shape_cast %50 : vector<16xf32> to vector<16x1xf32>
    %52 = vector.broadcast %51 : vector<16x1xf32> to vector<16x16xf32>
    %53 = arith.subf %49, %52 : vector<16x16xf32>
    %54 = math.exp %53 : vector<16x16xf32>
    %cst_27 = arith.constant dense<0.000000e+00> : vector<16xf32>
    %55 = vector.multi_reduction <add>, %54, %cst_27 [1] : vector<16x16xf32> to vector<16xf32>
    %56 = vector.shape_cast %55 : vector<16xf32> to vector<16x1xf32>
    %57 = tpu.reciprocal %56 {approx = true} : vector<16x1xf32> -> vector<16x1xf32>
    %58 = vector.broadcast %57 : vector<16x1xf32> to vector<16x16xf32>
    %59 = arith.mulf %54, %58 : vector<16x16xf32>
    %cst_28 = arith.constant dense<0xFF800000> : vector<16xf32>
    %60 = vector.multi_reduction <maximumf>, %49, %cst_28 [0] : vector<16x16xf32> to vector<16xf32>
    %61 = vector.shape_cast %60 : vector<16xf32> to vector<1x16xf32>
    %62 = vector.broadcast %61 : vector<1x16xf32> to vector<16x16xf32>
    %63 = arith.subf %49, %62 : vector<16x16xf32>
    %64 = math.exp %63 : vector<16x16xf32>
    %cst_29 = arith.constant dense<0.000000e+00> : vector<16xf32>
    %65 = vector.multi_reduction <add>, %64, %cst_29 [0] : vector<16x16xf32> to vector<16xf32>
    %66 = vector.shape_cast %65 : vector<16xf32> to vector<1x16xf32>
    %67 = tpu.reciprocal %66 {approx = true} : vector<1x16xf32> -> vector<1x16xf32>
    %68 = vector.broadcast %67 : vector<1x16xf32> to vector<16x16xf32>
    %69 = arith.mulf %64, %68 : vector<16x16xf32>
    %cst_30 = arith.constant dense<0.000000e+00> : vector<16x32xf32>
    %70 = tpu.matmul %59, %43, %cst_30 {dimension_numbers = #tpu.dot_dimension_numbers<[1], [0], [0], [1], [0, 0, 1, 1], [], []>} : vector<16x16xf32>, vector<16x32xf32>, vector<16x32xf32> -> vector<16x32xf32>
    %cst_31 = arith.constant dense<0.000000e+00> : vector<16x32xf32>
    %71 = tpu.matmul %69, %42, %cst_31 {dimension_numbers = #tpu.dot_dimension_numbers<[0], [0], [1], [1], [0, 1, 1, 1], [], []>} : vector<16x16xf32>, vector<16x32xf32>, vector<16x32xf32> -> vector<16x32xf32>
    %c0_32 = arith.constant 0 : index
    %c0_33 = arith.constant 0 : index
    %c288 = arith.constant 288 : index
    %72 = vector.load %arg1[%c0_32, %c0_33, %c288] : memref<3x64x352xf32, #tpu.memory_space<vmem>>, vector<1x32x64xf32>
    %73 = vector.shape_cast %72 : vector<1x32x64xf32> to vector<32x64xf32>
    %cst_34 = arith.constant dense<0.000000e+00> : vector<16x64xf32>
    %74 = tpu.matmul %70, %73, %cst_34 {dimension_numbers = #tpu.dot_dimension_numbers<[1], [0], [0], [1], [0, 0, 1, 1], [], []>} : vector<16x32xf32>, vector<32x64xf32>, vector<16x64xf32> -> vector<16x64xf32>
    %c0_35 = arith.constant 0 : index
    %c32 = arith.constant 32 : index
    %c288_36 = arith.constant 288 : index
    %75 = vector.load %arg1[%c0_35, %c32, %c288_36] : memref<3x64x352xf32, #tpu.memory_space<vmem>>, vector<1x32x64xf32>
    %76 = vector.shape_cast %75 : vector<1x32x64xf32> to vector<32x64xf32>
    %cst_37 = arith.constant dense<0.000000e+00> : vector<16x64xf32>
    %77 = tpu.matmul %71, %76, %cst_37 {dimension_numbers = #tpu.dot_dimension_numbers<[1], [0], [0], [1], [0, 0, 1, 1], [], []>} : vector<16x32xf32>, vector<32x64xf32>, vector<16x64xf32> -> vector<16x64xf32>
    %78 = arith.addf %74, %77 : vector<16x64xf32>
    %c0_38 = arith.constant 0 : index
    %c0_39 = arith.constant 0 : index
    %c288_40 = arith.constant 288 : index
    %79 = vector.load %arg2[%c0_38, %c0_39, %c288_40] : memref<3x1x352xf32, #tpu.memory_space<vmem>>, vector<1x1x64xf32>
    %80 = vector.shape_cast %79 : vector<1x1x64xf32> to vector<1x64xf32>
    %81 = vector.broadcast %80 : vector<1x64xf32> to vector<16x64xf32>
    %82 = arith.addf %78, %81 : vector<16x64xf32>
    %83 = math.tanh %82 : vector<16x64xf32>
    %c1 = arith.constant 1 : index
    %c0_41 = arith.constant 0 : index
    %c0_42 = arith.constant 0 : index
    %84 = vector.load %arg1[%c1, %c0_41, %c0_42] : memref<3x64x352xf32, #tpu.memory_space<vmem>>, vector<1x64x192xf32>
    %85 = vector.shape_cast %84 : vector<1x64x192xf32> to vector<64x192xf32>
    %cst_43 = arith.constant dense<0.000000e+00> : vector<16x192xf32>
    %86 = tpu.matmul %83, %85, %cst_43 {dimension_numbers = #tpu.dot_dimension_numbers<[1], [0], [0], [1], [0, 0, 1, 1], [], []>} : vector<16x64xf32>, vector<64x192xf32>, vector<16x192xf32> -> vector<16x192xf32>
    %c1_44 = arith.constant 1 : index
    %c0_45 = arith.constant 0 : index
    %c0_46 = arith.constant 0 : index
    %87 = vector.load %arg2[%c1_44, %c0_45, %c0_46] : memref<3x1x352xf32, #tpu.memory_space<vmem>>, vector<1x1x192xf32>
    %88 = vector.shape_cast %87 : vector<1x1x192xf32> to vector<1x192xf32>
    %89 = vector.broadcast %88 : vector<1x192xf32> to vector<16x192xf32>
    %90 = arith.addf %86, %89 : vector<16x192xf32>
    %91 = vector.extract_strided_slice %90 {offsets = [0, 0], sizes = [16, 64], strides = [1, 1]} : vector<16x192xf32> to vector<16x64xf32>
    %cst_47 = arith.constant 0.353553385 : f32
    %92 = vector.broadcast %cst_47 : f32 to vector<16x64xf32>
    %93 = arith.mulf %91, %92 : vector<16x64xf32>
    %94 = vector.extract_strided_slice %90 {offsets = [0, 64], sizes = [16, 64], strides = [1, 1]} : vector<16x192xf32> to vector<16x64xf32>
    %95 = vector.extract_strided_slice %90 {offsets = [0, 128], sizes = [16, 64], strides = [1, 1]} : vector<16x192xf32> to vector<16x64xf32>
    %c8_i32_48 = arith.constant 8 : i32
    %96 = tpu.dynamic_rotate %94 by %c8_i32_48 dim 0 : vector<16x64xf32>, i32 -> vector<16x64xf32>
    %c8_i32_49 = arith.constant 8 : i32
    %97 = tpu.dynamic_rotate %95 by %c8_i32_49 dim 0 : vector<16x64xf32>, i32 -> vector<16x64xf32>
    %98 = arith.mulf %93, %94 : vector<16x64xf32>
    %cst_50 = arith.constant dense<0.000000e+00> : vector<16x8xf32>
    %99 = tpu.matmul %98, %0, %cst_50 {dimension_numbers = #tpu.dot_dimension_numbers<[1], [1], [0], [0], [0, 0, 1, 0], [], []>} : vector<16x64xf32>, vector<8x64xf32>, vector<16x8xf32> -> vector<16x8xf32>
    %100 = arith.mulf %93, %96 : vector<16x64xf32>
    %cst_51 = arith.constant dense<0.000000e+00> : vector<16x8xf32>
    %101 = tpu.matmul %100, %0, %cst_51 {dimension_numbers = #tpu.dot_dimension_numbers<[1], [1], [0], [0], [0, 0, 1, 0], [], []>} : vector<16x64xf32>, vector<8x64xf32>, vector<16x8xf32> -> vector<16x8xf32>
    %102 = arith.maximumf %99, %101 : vector<16x8xf32>
    %103 = arith.subf %99, %102 : vector<16x8xf32>
    %104 = math.exp %103 : vector<16x8xf32>
    %105 = arith.subf %101, %102 : vector<16x8xf32>
    %106 = math.exp %105 : vector<16x8xf32>
    %107 = arith.addf %104, %106 : vector<16x8xf32>
    %108 = tpu.reciprocal %107 {approx = true} : vector<16x8xf32> -> vector<16x8xf32>
    %109 = arith.mulf %104, %108 : vector<16x8xf32>
    %cst_52 = arith.constant dense<0.000000e+00> : vector<16x64xf32>
    %110 = tpu.matmul %109, %0, %cst_52 {dimension_numbers = #tpu.dot_dimension_numbers<[1], [0], [0], [1], [0, 0, 1, 1], [], []>} : vector<16x8xf32>, vector<8x64xf32>, vector<16x64xf32> -> vector<16x64xf32>
    %111 = arith.mulf %110, %95 : vector<16x64xf32>
    %112 = arith.mulf %106, %108 : vector<16x8xf32>
    %cst_53 = arith.constant dense<0.000000e+00> : vector<16x64xf32>
    %113 = tpu.matmul %112, %0, %cst_53 {dimension_numbers = #tpu.dot_dimension_numbers<[1], [0], [0], [1], [0, 0, 1, 1], [], []>} : vector<16x8xf32>, vector<8x64xf32>, vector<16x64xf32> -> vector<16x64xf32>
    %114 = arith.mulf %113, %97 : vector<16x64xf32>
    %115 = arith.addf %111, %114 : vector<16x64xf32>
    %c1_54 = arith.constant 1 : index
    %c0_55 = arith.constant 0 : index
    %c192_56 = arith.constant 192 : index
    %116 = vector.load %arg1[%c1_54, %c0_55, %c192_56] : memref<3x64x352xf32, #tpu.memory_space<vmem>>, vector<1x64x64xf32>
    %117 = vector.shape_cast %116 : vector<1x64x64xf32> to vector<64x64xf32>
    %cst_57 = arith.constant dense<0.000000e+00> : vector<16x64xf32>
    %118 = tpu.matmul %115, %117, %cst_57 {dimension_numbers = #tpu.dot_dimension_numbers<[1], [0], [0], [1], [0, 0, 1, 1], [], []>} : vector<16x64xf32>, vector<64x64xf32>, vector<16x64xf32> -> vector<16x64xf32>
    %c1_58 = arith.constant 1 : index
    %c0_59 = arith.constant 0 : index
    %c192_60 = arith.constant 192 : index
    %119 = vector.load %arg2[%c1_58, %c0_59, %c192_60] : memref<3x1x352xf32, #tpu.memory_space<vmem>>, vector<1x1x64xf32>
    %120 = vector.shape_cast %119 : vector<1x1x64xf32> to vector<1x64xf32>
    %121 = vector.broadcast %120 : vector<1x64xf32> to vector<16x64xf32>
    %122 = arith.addf %118, %121 : vector<16x64xf32>
    %123 = vector.extract_strided_slice %122 {offsets = [0, 0], sizes = [16, 32], strides = [1, 1]} : vector<16x64xf32> to vector<16x32xf32>
    %124 = vector.extract_strided_slice %122 {offsets = [0, 32], sizes = [16, 32], strides = [1, 1]} : vector<16x64xf32> to vector<16x32xf32>
    %c1_61 = arith.constant 1 : index
    %c0_62 = arith.constant 0 : index
    %c256_63 = arith.constant 256 : index
    %125 = vector.load %arg1[%c1_61, %c0_62, %c256_63] : memref<3x64x352xf32, #tpu.memory_space<vmem>>, vector<1x32x32xf32>
    %126 = vector.shape_cast %125 : vector<1x32x32xf32> to vector<32x32xf32>
    %cst_64 = arith.constant dense<0.000000e+00> : vector<16x32xf32>
    %127 = tpu.matmul %123, %126, %cst_64 {dimension_numbers = #tpu.dot_dimension_numbers<[1], [0], [0], [1], [0, 0, 1, 1], [], []>} : vector<16x32xf32>, vector<32x32xf32>, vector<16x32xf32> -> vector<16x32xf32>
    %cst_65 = arith.constant dense<0.000000e+00> : vector<16x16xf32>
    %128 = tpu.matmul %127, %124, %cst_65 {dimension_numbers = #tpu.dot_dimension_numbers<[1], [1], [0], [0], [0, 0, 1, 0], [], []>} : vector<16x32xf32>, vector<16x32xf32>, vector<16x16xf32> -> vector<16x16xf32>
    %129 = math.tanh %128 : vector<16x16xf32>
    %130 = arith.addf %129, %1 : vector<16x16xf32>
    %cst_66 = arith.constant dense<0xFF800000> : vector<16xf32>
    %131 = vector.multi_reduction <maximumf>, %130, %cst_66 [1] : vector<16x16xf32> to vector<16xf32>
    %132 = vector.shape_cast %131 : vector<16xf32> to vector<16x1xf32>
    %133 = vector.broadcast %132 : vector<16x1xf32> to vector<16x16xf32>
    %134 = arith.subf %130, %133 : vector<16x16xf32>
    %135 = math.exp %134 : vector<16x16xf32>
    %cst_67 = arith.constant dense<0.000000e+00> : vector<16xf32>
    %136 = vector.multi_reduction <add>, %135, %cst_67 [1] : vector<16x16xf32> to vector<16xf32>
    %137 = vector.shape_cast %136 : vector<16xf32> to vector<16x1xf32>
    %138 = tpu.reciprocal %137 {approx = true} : vector<16x1xf32> -> vector<16x1xf32>
    %139 = vector.broadcast %138 : vector<16x1xf32> to vector<16x16xf32>
    %140 = arith.mulf %135, %139 : vector<16x16xf32>
    %cst_68 = arith.constant dense<0xFF800000> : vector<16xf32>
    %141 = vector.multi_reduction <maximumf>, %130, %cst_68 [0] : vector<16x16xf32> to vector<16xf32>
    %142 = vector.shape_cast %141 : vector<16xf32> to vector<1x16xf32>
    %143 = vector.broadcast %142 : vector<1x16xf32> to vector<16x16xf32>
    %144 = arith.subf %130, %143 : vector<16x16xf32>
    %145 = math.exp %144 : vector<16x16xf32>
    %cst_69 = arith.constant dense<0.000000e+00> : vector<16xf32>
    %146 = vector.multi_reduction <add>, %145, %cst_69 [0] : vector<16x16xf32> to vector<16xf32>
    %147 = vector.shape_cast %146 : vector<16xf32> to vector<1x16xf32>
    %148 = tpu.reciprocal %147 {approx = true} : vector<1x16xf32> -> vector<1x16xf32>
    %149 = vector.broadcast %148 : vector<1x16xf32> to vector<16x16xf32>
    %150 = arith.mulf %145, %149 : vector<16x16xf32>
    %cst_70 = arith.constant dense<0.000000e+00> : vector<16x32xf32>
    %151 = tpu.matmul %140, %124, %cst_70 {dimension_numbers = #tpu.dot_dimension_numbers<[1], [0], [0], [1], [0, 0, 1, 1], [], []>} : vector<16x16xf32>, vector<16x32xf32>, vector<16x32xf32> -> vector<16x32xf32>
    %cst_71 = arith.constant dense<0.000000e+00> : vector<16x32xf32>
    %152 = tpu.matmul %150, %123, %cst_71 {dimension_numbers = #tpu.dot_dimension_numbers<[0], [0], [1], [1], [0, 1, 1, 1], [], []>} : vector<16x16xf32>, vector<16x32xf32>, vector<16x32xf32> -> vector<16x32xf32>
    %c1_72 = arith.constant 1 : index
    %c0_73 = arith.constant 0 : index
    %c288_74 = arith.constant 288 : index
    %153 = vector.load %arg1[%c1_72, %c0_73, %c288_74] : memref<3x64x352xf32, #tpu.memory_space<vmem>>, vector<1x32x64xf32>
    %154 = vector.shape_cast %153 : vector<1x32x64xf32> to vector<32x64xf32>
    %cst_75 = arith.constant dense<0.000000e+00> : vector<16x64xf32>
    %155 = tpu.matmul %151, %154, %cst_75 {dimension_numbers = #tpu.dot_dimension_numbers<[1], [0], [0], [1], [0, 0, 1, 1], [], []>} : vector<16x32xf32>, vector<32x64xf32>, vector<16x64xf32> -> vector<16x64xf32>
    %c1_76 = arith.constant 1 : index
    %c32_77 = arith.constant 32 : index
    %c288_78 = arith.constant 288 : index
    %156 = vector.load %arg1[%c1_76, %c32_77, %c288_78] : memref<3x64x352xf32, #tpu.memory_space<vmem>>, vector<1x32x64xf32>
    %157 = vector.shape_cast %156 : vector<1x32x64xf32> to vector<32x64xf32>
    %cst_79 = arith.constant dense<0.000000e+00> : vector<16x64xf32>
    %158 = tpu.matmul %152, %157, %cst_79 {dimension_numbers = #tpu.dot_dimension_numbers<[1], [0], [0], [1], [0, 0, 1, 1], [], []>} : vector<16x32xf32>, vector<32x64xf32>, vector<16x64xf32> -> vector<16x64xf32>
    %159 = arith.addf %155, %158 : vector<16x64xf32>
    %c1_80 = arith.constant 1 : index
    %c0_81 = arith.constant 0 : index
    %c288_82 = arith.constant 288 : index
    %160 = vector.load %arg2[%c1_80, %c0_81, %c288_82] : memref<3x1x352xf32, #tpu.memory_space<vmem>>, vector<1x1x64xf32>
    %161 = vector.shape_cast %160 : vector<1x1x64xf32> to vector<1x64xf32>
    %162 = vector.broadcast %161 : vector<1x64xf32> to vector<16x64xf32>
    %163 = arith.addf %159, %162 : vector<16x64xf32>
    %164 = math.tanh %163 : vector<16x64xf32>
    %c2 = arith.constant 2 : index
    %c0_83 = arith.constant 0 : index
    %c0_84 = arith.constant 0 : index
    %165 = vector.load %arg1[%c2, %c0_83, %c0_84] : memref<3x64x352xf32, #tpu.memory_space<vmem>>, vector<1x64x192xf32>
    %166 = vector.shape_cast %165 : vector<1x64x192xf32> to vector<64x192xf32>
    %cst_85 = arith.constant dense<0.000000e+00> : vector<16x192xf32>
    %167 = tpu.matmul %164, %166, %cst_85 {dimension_numbers = #tpu.dot_dimension_numbers<[1], [0], [0], [1], [0, 0, 1, 1], [], []>} : vector<16x64xf32>, vector<64x192xf32>, vector<16x192xf32> -> vector<16x192xf32>
    %c2_86 = arith.constant 2 : index
    %c0_87 = arith.constant 0 : index
    %c0_88 = arith.constant 0 : index
    %168 = vector.load %arg2[%c2_86, %c0_87, %c0_88] : memref<3x1x352xf32, #tpu.memory_space<vmem>>, vector<1x1x192xf32>
    %169 = vector.shape_cast %168 : vector<1x1x192xf32> to vector<1x192xf32>
    %170 = vector.broadcast %169 : vector<1x192xf32> to vector<16x192xf32>
    %171 = arith.addf %167, %170 : vector<16x192xf32>
    %172 = vector.extract_strided_slice %171 {offsets = [0, 0], sizes = [16, 64], strides = [1, 1]} : vector<16x192xf32> to vector<16x64xf32>
    %cst_89 = arith.constant 0.353553385 : f32
    %173 = vector.broadcast %cst_89 : f32 to vector<16x64xf32>
    %174 = arith.mulf %172, %173 : vector<16x64xf32>
    %175 = vector.extract_strided_slice %171 {offsets = [0, 64], sizes = [16, 64], strides = [1, 1]} : vector<16x192xf32> to vector<16x64xf32>
    %176 = vector.extract_strided_slice %171 {offsets = [0, 128], sizes = [16, 64], strides = [1, 1]} : vector<16x192xf32> to vector<16x64xf32>
    %c8_i32_90 = arith.constant 8 : i32
    %177 = tpu.dynamic_rotate %175 by %c8_i32_90 dim 0 : vector<16x64xf32>, i32 -> vector<16x64xf32>
    %c8_i32_91 = arith.constant 8 : i32
    %178 = tpu.dynamic_rotate %176 by %c8_i32_91 dim 0 : vector<16x64xf32>, i32 -> vector<16x64xf32>
    %179 = arith.mulf %174, %175 : vector<16x64xf32>
    %cst_92 = arith.constant dense<0.000000e+00> : vector<16x8xf32>
    %180 = tpu.matmul %179, %0, %cst_92 {dimension_numbers = #tpu.dot_dimension_numbers<[1], [1], [0], [0], [0, 0, 1, 0], [], []>} : vector<16x64xf32>, vector<8x64xf32>, vector<16x8xf32> -> vector<16x8xf32>
    %181 = arith.mulf %174, %177 : vector<16x64xf32>
    %cst_93 = arith.constant dense<0.000000e+00> : vector<16x8xf32>
    %182 = tpu.matmul %181, %0, %cst_93 {dimension_numbers = #tpu.dot_dimension_numbers<[1], [1], [0], [0], [0, 0, 1, 0], [], []>} : vector<16x64xf32>, vector<8x64xf32>, vector<16x8xf32> -> vector<16x8xf32>
    %183 = arith.maximumf %180, %182 : vector<16x8xf32>
    %184 = arith.subf %180, %183 : vector<16x8xf32>
    %185 = math.exp %184 : vector<16x8xf32>
    %186 = arith.subf %182, %183 : vector<16x8xf32>
    %187 = math.exp %186 : vector<16x8xf32>
    %188 = arith.addf %185, %187 : vector<16x8xf32>
    %189 = tpu.reciprocal %188 {approx = true} : vector<16x8xf32> -> vector<16x8xf32>
    %190 = arith.mulf %185, %189 : vector<16x8xf32>
    %cst_94 = arith.constant dense<0.000000e+00> : vector<16x64xf32>
    %191 = tpu.matmul %190, %0, %cst_94 {dimension_numbers = #tpu.dot_dimension_numbers<[1], [0], [0], [1], [0, 0, 1, 1], [], []>} : vector<16x8xf32>, vector<8x64xf32>, vector<16x64xf32> -> vector<16x64xf32>
    %192 = arith.mulf %191, %176 : vector<16x64xf32>
    %193 = arith.mulf %187, %189 : vector<16x8xf32>
    %cst_95 = arith.constant dense<0.000000e+00> : vector<16x64xf32>
    %194 = tpu.matmul %193, %0, %cst_95 {dimension_numbers = #tpu.dot_dimension_numbers<[1], [0], [0], [1], [0, 0, 1, 1], [], []>} : vector<16x8xf32>, vector<8x64xf32>, vector<16x64xf32> -> vector<16x64xf32>
    %195 = arith.mulf %194, %178 : vector<16x64xf32>
    %196 = arith.addf %192, %195 : vector<16x64xf32>
    %c2_96 = arith.constant 2 : index
    %c0_97 = arith.constant 0 : index
    %c192_98 = arith.constant 192 : index
    %197 = vector.load %arg1[%c2_96, %c0_97, %c192_98] : memref<3x64x352xf32, #tpu.memory_space<vmem>>, vector<1x64x64xf32>
    %198 = vector.shape_cast %197 : vector<1x64x64xf32> to vector<64x64xf32>
    %cst_99 = arith.constant dense<0.000000e+00> : vector<16x64xf32>
    %199 = tpu.matmul %196, %198, %cst_99 {dimension_numbers = #tpu.dot_dimension_numbers<[1], [0], [0], [1], [0, 0, 1, 1], [], []>} : vector<16x64xf32>, vector<64x64xf32>, vector<16x64xf32> -> vector<16x64xf32>
    %c2_100 = arith.constant 2 : index
    %c0_101 = arith.constant 0 : index
    %c192_102 = arith.constant 192 : index
    %200 = vector.load %arg2[%c2_100, %c0_101, %c192_102] : memref<3x1x352xf32, #tpu.memory_space<vmem>>, vector<1x1x64xf32>
    %201 = vector.shape_cast %200 : vector<1x1x64xf32> to vector<1x64xf32>
    %202 = vector.broadcast %201 : vector<1x64xf32> to vector<16x64xf32>
    %203 = arith.addf %199, %202 : vector<16x64xf32>
    %204 = vector.extract_strided_slice %203 {offsets = [0, 0], sizes = [16, 32], strides = [1, 1]} : vector<16x64xf32> to vector<16x32xf32>
    %205 = vector.extract_strided_slice %203 {offsets = [0, 32], sizes = [16, 32], strides = [1, 1]} : vector<16x64xf32> to vector<16x32xf32>
    %c2_103 = arith.constant 2 : index
    %c0_104 = arith.constant 0 : index
    %c256_105 = arith.constant 256 : index
    %206 = vector.load %arg1[%c2_103, %c0_104, %c256_105] : memref<3x64x352xf32, #tpu.memory_space<vmem>>, vector<1x32x32xf32>
    %207 = vector.shape_cast %206 : vector<1x32x32xf32> to vector<32x32xf32>
    %cst_106 = arith.constant dense<0.000000e+00> : vector<16x32xf32>
    %208 = tpu.matmul %204, %207, %cst_106 {dimension_numbers = #tpu.dot_dimension_numbers<[1], [0], [0], [1], [0, 0, 1, 1], [], []>} : vector<16x32xf32>, vector<32x32xf32>, vector<16x32xf32> -> vector<16x32xf32>
    %cst_107 = arith.constant dense<0.000000e+00> : vector<16x16xf32>
    %209 = tpu.matmul %208, %205, %cst_107 {dimension_numbers = #tpu.dot_dimension_numbers<[1], [1], [0], [0], [0, 0, 1, 0], [], []>} : vector<16x32xf32>, vector<16x32xf32>, vector<16x16xf32> -> vector<16x16xf32>
    %210 = math.tanh %209 : vector<16x16xf32>
    %211 = arith.addf %210, %1 : vector<16x16xf32>
    %cst_108 = arith.constant dense<0xFF800000> : vector<16xf32>
    %212 = vector.multi_reduction <maximumf>, %211, %cst_108 [1] : vector<16x16xf32> to vector<16xf32>
    %213 = vector.shape_cast %212 : vector<16xf32> to vector<16x1xf32>
    %214 = vector.broadcast %213 : vector<16x1xf32> to vector<16x16xf32>
    %215 = arith.subf %211, %214 : vector<16x16xf32>
    %216 = math.exp %215 : vector<16x16xf32>
    %cst_109 = arith.constant dense<0.000000e+00> : vector<16xf32>
    %217 = vector.multi_reduction <add>, %216, %cst_109 [1] : vector<16x16xf32> to vector<16xf32>
    %218 = vector.shape_cast %217 : vector<16xf32> to vector<16x1xf32>
    %219 = tpu.reciprocal %218 {approx = true} : vector<16x1xf32> -> vector<16x1xf32>
    %220 = vector.broadcast %219 : vector<16x1xf32> to vector<16x16xf32>
    %221 = arith.mulf %216, %220 : vector<16x16xf32>
    %cst_110 = arith.constant dense<0xFF800000> : vector<16xf32>
    %222 = vector.multi_reduction <maximumf>, %211, %cst_110 [0] : vector<16x16xf32> to vector<16xf32>
    %223 = vector.shape_cast %222 : vector<16xf32> to vector<1x16xf32>
    %224 = vector.broadcast %223 : vector<1x16xf32> to vector<16x16xf32>
    %225 = arith.subf %211, %224 : vector<16x16xf32>
    %226 = math.exp %225 : vector<16x16xf32>
    %cst_111 = arith.constant dense<0.000000e+00> : vector<16xf32>
    %227 = vector.multi_reduction <add>, %226, %cst_111 [0] : vector<16x16xf32> to vector<16xf32>
    %228 = vector.shape_cast %227 : vector<16xf32> to vector<1x16xf32>
    %229 = tpu.reciprocal %228 {approx = true} : vector<1x16xf32> -> vector<1x16xf32>
    %230 = vector.broadcast %229 : vector<1x16xf32> to vector<16x16xf32>
    %231 = arith.mulf %226, %230 : vector<16x16xf32>
    %cst_112 = arith.constant dense<0.000000e+00> : vector<16x32xf32>
    %232 = tpu.matmul %221, %205, %cst_112 {dimension_numbers = #tpu.dot_dimension_numbers<[1], [0], [0], [1], [0, 0, 1, 1], [], []>} : vector<16x16xf32>, vector<16x32xf32>, vector<16x32xf32> -> vector<16x32xf32>
    %cst_113 = arith.constant dense<0.000000e+00> : vector<16x32xf32>
    %233 = tpu.matmul %231, %204, %cst_113 {dimension_numbers = #tpu.dot_dimension_numbers<[0], [0], [1], [1], [0, 1, 1, 1], [], []>} : vector<16x16xf32>, vector<16x32xf32>, vector<16x32xf32> -> vector<16x32xf32>
    %c2_114 = arith.constant 2 : index
    %c0_115 = arith.constant 0 : index
    %c288_116 = arith.constant 288 : index
    %234 = vector.load %arg1[%c2_114, %c0_115, %c288_116] : memref<3x64x352xf32, #tpu.memory_space<vmem>>, vector<1x32x64xf32>
    %235 = vector.shape_cast %234 : vector<1x32x64xf32> to vector<32x64xf32>
    %cst_117 = arith.constant dense<0.000000e+00> : vector<16x64xf32>
    %236 = tpu.matmul %232, %235, %cst_117 {dimension_numbers = #tpu.dot_dimension_numbers<[1], [0], [0], [1], [0, 0, 1, 1], [], []>} : vector<16x32xf32>, vector<32x64xf32>, vector<16x64xf32> -> vector<16x64xf32>
    %c2_118 = arith.constant 2 : index
    %c32_119 = arith.constant 32 : index
    %c288_120 = arith.constant 288 : index
    %237 = vector.load %arg1[%c2_118, %c32_119, %c288_120] : memref<3x64x352xf32, #tpu.memory_space<vmem>>, vector<1x32x64xf32>
    %238 = vector.shape_cast %237 : vector<1x32x64xf32> to vector<32x64xf32>
    %cst_121 = arith.constant dense<0.000000e+00> : vector<16x64xf32>
    %239 = tpu.matmul %233, %238, %cst_121 {dimension_numbers = #tpu.dot_dimension_numbers<[1], [0], [0], [1], [0, 0, 1, 1], [], []>} : vector<16x32xf32>, vector<32x64xf32>, vector<16x64xf32> -> vector<16x64xf32>
    %240 = arith.addf %236, %239 : vector<16x64xf32>
    %c2_122 = arith.constant 2 : index
    %c0_123 = arith.constant 0 : index
    %c288_124 = arith.constant 288 : index
    %241 = vector.load %arg2[%c2_122, %c0_123, %c288_124] : memref<3x1x352xf32, #tpu.memory_space<vmem>>, vector<1x1x64xf32>
    %242 = vector.shape_cast %241 : vector<1x1x64xf32> to vector<1x64xf32>
    %243 = vector.broadcast %242 : vector<1x64xf32> to vector<16x64xf32>
    %244 = arith.addf %240, %243 : vector<16x64xf32>
    %245 = math.tanh %244 : vector<16x64xf32>
    %c0_125 = arith.constant 0 : index
    %c80 = arith.constant 80 : index
    %246 = vector.load %arg3[%c0_125, %c80] : memref<64x178xf32, #tpu.memory_space<vmem>>, vector<64x32xf32>
    %cst_126 = arith.constant dense<0.000000e+00> : vector<16x32xf32>
    %247 = tpu.matmul %245, %246, %cst_126 {dimension_numbers = #tpu.dot_dimension_numbers<[1], [0], [0], [1], [0, 0, 1, 1], [], []>} : vector<16x64xf32>, vector<64x32xf32>, vector<16x32xf32> -> vector<16x32xf32>
    %c0_127 = arith.constant 0 : index
    %c114 = arith.constant 114 : index
    %248 = vector.load %arg3[%c0_127, %c114] : memref<64x178xf32, #tpu.memory_space<vmem>>, vector<1x32xf32>
    %249 = vector.broadcast %248 : vector<1x32xf32> to vector<16x32xf32>
    %250 = arith.addf %247, %249 : vector<16x32xf32>
    %cst_128 = arith.constant 0.000000e+00 : f32
    %251 = vector.broadcast %cst_128 : f32 to vector<16x32xf32>
    %252 = arith.cmpf oge, %250, %251 : vector<16x32xf32>
    %cst_129 = arith.constant 0.00999999977 : f32
    %253 = vector.broadcast %cst_129 : f32 to vector<16x32xf32>
    %254 = arith.mulf %253, %250 : vector<16x32xf32>
    %255 = arith.select %252, %250, %254 : vector<16x32xi1>, vector<16x32xf32>
    %c0_130 = arith.constant 0 : index
    %c112 = arith.constant 112 : index
    %256 = vector.load %arg3[%c0_130, %c112] : memref<64x178xf32, #tpu.memory_space<vmem>>, vector<32x2xf32>
    %cst_131 = arith.constant dense<0.000000e+00> : vector<16x2xf32>
    %257 = tpu.matmul %255, %256, %cst_131 {dimension_numbers = #tpu.dot_dimension_numbers<[1], [0], [0], [1], [0, 0, 1, 1], [], []>} : vector<16x32xf32>, vector<32x2xf32>, vector<16x2xf32> -> vector<16x2xf32>
    %c0_132 = arith.constant 0 : index
    %c146 = arith.constant 146 : index
    %258 = vector.load %arg3[%c0_132, %c146] : memref<64x178xf32, #tpu.memory_space<vmem>>, vector<1x2xf32>
    %259 = vector.broadcast %258 : vector<1x2xf32> to vector<16x2xf32>
    %260 = arith.addf %257, %259 : vector<16x2xf32>
    %261 = vector.extract_strided_slice %260 {offsets = [0, 0], sizes = [16, 1], strides = [1, 1]} : vector<16x2xf32> to vector<16x1xf32>
    %c0_133 = arith.constant 0 : index
    %c148 = arith.constant 148 : index
    %262 = vector.load %arg3[%c0_133, %c148] : memref<64x178xf32, #tpu.memory_space<vmem>>, vector<16x4xf32>
    %263 = vector.broadcast %261 : vector<16x1xf32> to vector<16x4xf32>
    %264 = arith.mulf %263, %262 : vector<16x4xf32>
    %265 = vector.extract_strided_slice %260 {offsets = [0, 1], sizes = [16, 1], strides = [1, 1]} : vector<16x2xf32> to vector<16x1xf32>
    %c0_134 = arith.constant 0 : index
    %c152 = arith.constant 152 : index
    %266 = vector.load %arg3[%c0_134, %c152] : memref<64x178xf32, #tpu.memory_space<vmem>>, vector<16x4xf32>
    %267 = vector.broadcast %265 : vector<16x1xf32> to vector<16x4xf32>
    %268 = arith.mulf %267, %266 : vector<16x4xf32>
    %269 = arith.addf %264, %268 : vector<16x4xf32>
    %c0_135 = arith.constant 0 : index
    %c162 = arith.constant 162 : index
    %270 = vector.load %arg3[%c0_135, %c162] : memref<64x178xf32, #tpu.memory_space<vmem>>, vector<2x16xf32>
    %cst_136 = arith.constant dense<0.000000e+00> : vector<2x4xf32>
    %271 = tpu.matmul %270, %269, %cst_136 {dimension_numbers = #tpu.dot_dimension_numbers<[1], [0], [0], [1], [0, 0, 1, 1], [], []>} : vector<2x16xf32>, vector<16x4xf32>, vector<2x4xf32> -> vector<2x4xf32>
    %c0_137 = arith.constant 0 : index
    %c156 = arith.constant 156 : index
    %272 = vector.load %arg3[%c0_137, %c156] : memref<64x178xf32, #tpu.memory_space<vmem>>, vector<1x4xf32>
    %273 = vector.broadcast %272 : vector<1x4xf32> to vector<2x4xf32>
    %274 = arith.addf %271, %273 : vector<2x4xf32>
    %cst_138 = arith.constant 0.000000e+00 : f32
    %275 = vector.broadcast %cst_138 : f32 to vector<2x4xf32>
    %276 = arith.cmpf oge, %274, %275 : vector<2x4xf32>
    %cst_139 = arith.constant 0.00999999977 : f32
    %277 = vector.broadcast %cst_139 : f32 to vector<2x4xf32>
    %278 = arith.mulf %277, %274 : vector<2x4xf32>
    %279 = arith.select %276, %274, %278 : vector<2x4xi1>, vector<2x4xf32>
    %c0_140 = arith.constant 0 : index
    %c160 = arith.constant 160 : index
    %280 = vector.load %arg3[%c0_140, %c160] : memref<64x178xf32, #tpu.memory_space<vmem>>, vector<4x1xf32>
    %cst_141 = arith.constant dense<0.000000e+00> : vector<2x1xf32>
    %281 = tpu.matmul %279, %280, %cst_141 {dimension_numbers = #tpu.dot_dimension_numbers<[1], [0], [0], [1], [0, 0, 1, 1], [], []>} : vector<2x4xf32>, vector<4x1xf32>, vector<2x1xf32> -> vector<2x1xf32>
    %c0_142 = arith.constant 0 : index
    %c161 = arith.constant 161 : index
    %282 = vector.load %arg3[%c0_142, %c161] : memref<64x178xf32, #tpu.memory_space<vmem>>, vector<1x1xf32>
    %283 = vector.broadcast %282 : vector<1x1xf32> to vector<2x1xf32>
    %284 = arith.addf %281, %283 : vector<2x1xf32>
    %cst_143 = arith.constant 0.000000e+00 : f32
    %285 = vector.broadcast %cst_143 : f32 to vector<2x1xf32>
    %286 = arith.subf %285, %284 : vector<2x1xf32>
    %287 = math.exp %286 : vector<2x1xf32>
    %cst_144 = arith.constant 1.000000e+00 : f32
    %288 = vector.broadcast %cst_144 : f32 to vector<2x1xf32>
    %289 = arith.addf %288, %287 : vector<2x1xf32>
    %cst_145 = arith.constant 1.000000e+00 : f32
    %290 = vector.broadcast %cst_145 : f32 to vector<2x1xf32>
    %291 = arith.divf %290, %289 : vector<2x1xf32>
    %c0_146 = arith.constant 0 : index
    %c0_147 = arith.constant 0 : index
    %292 = vector.load %arg4[%c0_146, %c0_147] : memref<2x1xf32, #tpu.memory_space<vmem>>, vector<2x1xf32>
    tpu.vector_store %arg4[%c0_146, %c0_147], %291 {strides = array<i32>} : memref<2x1xf32, #tpu.memory_space<vmem>>, vector<2x1xf32>,
    return
  }
}

</mosaic_0001>

<llo_original>
// kernel: forward.1
$region0: #{forward.1}
  #allocation0 [shape = 'u32[]', space=smem, size = 0x4, offset = 0x4, fixed_abs, tag = 'smem constant byte address 0x4 - core index']
  #allocation1 [shape = 'u32[144,128]{1,0:T(1,128)}', space=vmem, size = 0x12000, scoped, tag = 'internal scratch']
  %s0 = inlined_call_operand.vmem [shape: f32[16,64], index: 0, kind: input, shape index: {}]
  %s1 = inlined_call_operand.hbm [shape: f32[3,64,352], index: 1, kind: input, shape index: {}]
  %s2 = inlined_call_operand.vmem [shape: f32[3,1,352], index: 2, kind: input, shape index: {}]
  %s3 = inlined_call_operand.vmem [shape: f32[64,178], index: 3, kind: input, shape index: {}]
  %s4 = inlined_call_operand.vmem [shape: f32[2,1], index: 4, kind: output, shape index: {}]
  %s5 = sld [smem:[#allocation0]]
  $region30: #{forward.1} parent=0
    _
  %s7 = ssub.s32 1, %s5
  %s8 = scalar_select 0, %s7, %s5
  $region1: #{forward.1} parent=0
    #allocation2 [shape = 'u8[294912]{0}', space=vmem, size = 0x48000, scoped, tag = 'input window, operand 1, single buffered']
    #allocation3 [shape = 's32[1]{0}', space=sflag, size = 0x4, scoped, tag = 'scoped memory for forward.1']
    %9 = vsyncpa [#allocation3], 0
    // Predicated region
    $region2: #{forward.1} parent=1 // pred_check
      _
    $region3: #{forward.1} parent=1 // pred_check_branch
      %11 = sbr.rel (0) target = $region5
    $region4: #{forward.1} parent=1 // pred_region
      _
    $region5: #{forward.1} parent=1 // pred_fallthru
      _
    // Predicated region
    $region6: #{forward.1} parent=1 // pred_check
      _
    $region7: #{forward.1} parent=1 // pred_check_branch
      %13 = sbr.rel (0) target = $region9
    $region8: #{forward.1} parent=1 // pred_region
      %s15 = ssub.s32 9216, 9216
      %16 = vsyncadd [#allocation3], %s15
      %s17 = sshll.u32 [#allocation2], 4
      %s18 = int_to_ptr.vmem [resolvable:$true] %s17
      %23 = dma.hbm_to_vmem [thread:$0]  %s1, 9216, %s18, [#allocation3], 384, 384, 24
    $region9: #{forward.1} parent=1 // pred_fallthru
      _
    // Predicated region
    $region10: #{forward.1} parent=1 // pred_check
      _
    $region11: #{forward.1} parent=1 // pred_check_branch
      %25 = sbr.rel (0) target = $region13
    $region12: #{forward.1} parent=1 // pred_region
      _
    $region13: #{forward.1} parent=1 // pred_fallthru
      _
    // Predicated region
    $region14: #{forward.1} parent=1 // pred_check
      _
    $region15: #{forward.1} parent=1 // pred_check_branch
      %27 = sbr.rel (0) target = $region17
    $region16: #{forward.1} parent=1 // pred_region
      _
    $region17: #{forward.1} parent=1 // pred_fallthru
      _
    // Predicated region
    $region18: #{forward.1} parent=1 // pred_check
      _
    $region19: #{forward.1} parent=1 // pred_check_branch
      %29 = sbr.rel (0) target = $region21
    $region20: #{forward.1} parent=1 // pred_region
      %30 = dma.done [#allocation3], 9216
    $region21: #{forward.1} parent=1 // pred_fallthru
      _
    %v31 = vld [vmem:[%s3] sm:$0xff]
    %v32 = vld [vmem:[%s3 + $0x10] sm:$0xff]
    %v33 = vld [vmem:[%s0] sm:$0xff]
    %v34 = vld [vmem:[%s0 + $0x8] sm:$0xff]
    %v35 = vld [vmem:[#allocation2] sm:$0xff]
    %v36 = vld [vmem:[#allocation2 + $0x8] sm:$0xff]
    %v37 = vld [vmem:[#allocation2 + $0x18] sm:$0xff]
    %v38 = vld [vmem:[#allocation2 + $0x20] sm:$0xff]
    %v39 = vld [vmem:[#allocation2 + $0x30] sm:$0xff]
    %v40 = vld [vmem:[#allocation2 + $0x38] sm:$0xff]
    %v41 = vld [vmem:[#allocation2 + $0x48] sm:$0xff]
    %v42 = vld [vmem:[#allocation2 + $0x50] sm:$0xff]
    %v43 = vld [vmem:[#allocation2 + $0x60] sm:$0xff]
    %v44 = vld [vmem:[#allocation2 + $0x68] sm:$0xff]
    %v45 = vld [vmem:[#allocation2 + $0x78] sm:$0xff]
    %v46 = vld [vmem:[#allocation2 + $0x80] sm:$0xff]
    %v47 = vld [vmem:[#allocation2 + $0x90] sm:$0xff]
    %v48 = vld [vmem:[#allocation2 + $0x98] sm:$0xff]
    %v49 = vld [vmem:[#allocation2 + $0xa8] sm:$0xff]
    %v50 = vld [vmem:[#allocation2 + $0xb0] sm:$0xff]
    %v51 = vld [vmem:[%s2] sm:$0x3]
    %v53 = vlaneseq
    %v54 = vshrl.u32 %v53, 7
    %v55 = vsub.s32 0, %v54
    %v56 = vrot.slane %v51, %v55
    %v57 = vlaneseq
    %v58 = vshrl.u32 %v57, 7
    %v59 = vsub.s32 1, %v58
    %v60 = vrot.slane %v51, %v59
    %vm63 = vcmask 523264
    %v65 = vsel %vm63, %v33, 0
    %v68 = vsel %vm63, %v34, 0
    %70 = vmatprep.subr.mxu0 %v36
    %71 = vmatpush1.msra.mxu0 %v35
    %72 = vmatprep.subr.mxu0 %v38
    %73 = vmatpush1.msra.mxu0 %v37
    %74 = vmatprep.subr.mxu0 %v40
    %75 = vmatpush1.msra.mxu0 %v39
    %76 = vmatprep.subr.mxu0 %v42
    %77 = vmatpush1.msra.mxu0 %v41
    %78 = vmatprep.subr.mxu0 %v44
    %79 = vmatpush1.msra.mxu0 %v43
    %80 = vmatprep.subr.mxu0 %v46
    %81 = vmatpush1.msra.mxu0 %v45
    %82 = vmatprep.subr.mxu0 %v48
    %83 = vmatpush1.msra.mxu0 %v47
    %84 = vmatprep.subr.mxu0 %v50
    %85 = vmatpush1.msra.mxu0 %v49
    %86 = vmatprep.subr.mxu0 0.0
    %87 = vmatpush1.msra.mxu0 0.0
    %88 = vmatprep.subr.mxu0 0.0
    %89 = vmatpush1.msra.mxu0 0.0
    %90 = vmatprep.subr.mxu0 0.0
    %91 = vmatpush1.msra.mxu0 0.0
    %92 = vmatprep.subr.mxu0 0.0
    %93 = vmatpush1.msra.mxu0 0.0
    %94 = vmatprep.subr.mxu0 0.0
    %95 = vmatpush1.msra.mxu0 0.0
    %96 = vmatprep.subr.mxu0 0.0
    %97 = vmatpush1.msra.mxu0 0.0
    %98 = vmatprep.subr.mxu0 0.0
    %99 = vmatpush1.msra.mxu0 0.0
    %100 = vmatprep.subr.mxu0 0.0
    %101 = vmatpush1.msra.mxu0 0.0
    %102 = vmatprep.subr.mxu0 0.0
    %103 = vmatpush1.msra.mxu0 0.0
    %104 = vmatprep.subr.mxu0 0.0
    %105 = vmatpush1.msra.mxu0 0.0
    %106 = vmatprep.subr.mxu0 0.0
    %107 = vmatpush1.msra.mxu0 0.0
    %108 = vmatprep.subr.mxu0 0.0
    %109 = vmatpush1.msra.mxu0 0.0
    %110 = vmatprep.subr.mxu0 0.0
    %111 = vmatpush1.msra.mxu0 0.0
    %112 = vmatprep.subr.mxu0 0.0
    %113 = vmatpush1.msra.mxu0 0.0
    %114 = vmatprep.subr.mxu0 0.0
    %115 = vmatpush1.msra.mxu0 0.0
    %116 = vmatprep.subr.mxu0 0.0
    %117 = vmatpush1.msra.mxu0 0.0
    %118 = vmatprep.subr.mxu0 0.0
    %119 = vmatpush1.msra.mxu0 0.0
    %120 = vmatprep.subr.mxu0 0.0
    %121 = vmatpush1.msra.mxu0 0.0
    %122 = vmatprep.subr.mxu0 0.0
    %123 = vmatpush1.msra.mxu0 0.0
    %124 = vmatprep.subr.mxu0 0.0
    %125 = vmatpush1.msra.mxu0 0.0
    %126 = vmatprep.subr.mxu0 0.0
    %127 = vmatpush1.msra.mxu0 0.0
    %128 = vmatprep.subr.mxu0 0.0
    %129 = vmatpush1.msra.mxu0 0.0
    %130 = vmatprep.subr.mxu0 0.0
    %131 = vmatpush1.msra.mxu0 0.0
    %132 = vmatprep.subr.mxu0 0.0
    %133 = vmatpush1.msra.mxu0 0.0
    %134 = vmatprep.mubr.f32.mxu0 0.0
    %135 = vmatmul.mubr.f32.gmra.mrb[0].mxu0 %v65
    %v136 = vpop.f32.mrb[0].mxu0
    %v137 = vadd.f32 %v56, %v136
    %v138 = vpop.f32.mrb[0].mxu0
    %v139 = vadd.f32 %v60, %v138
    %140 = vmatprep.mubr.f32.mxu0 0.0
    %141 = vmatmul.mubr.f32.gmra.mrb[0].mxu0 %v68
    %v142 = vpop.f32.mrb[0].mxu0
    %v143 = vadd.f32 %v56, %v142
    %v144 = vpop.f32.mrb[0].mxu0
    %v145 = vadd.f32 %v60, %v144
    %146 = vdwg.mxu0
    %v147 = vmul.f32 %v137, 0.35355338
    %v148 = vmul.f32 %v143, 0.35355338
    %151 = vrot.lane.b32.xlu0 %v137, 64
    %v152 = vpop.permute.xlu0 %151
    %153 = vrot.lane.b32.xlu0 %v143, 64
    %v154 = vpop.permute.xlu0 %153
    %v157 = vmul.f32 %v147, %v152
    %v158 = vmul.f32 %v148, %v154
    %v160 = vsel %vm63, %v157, 0
    %v163 = vsel %vm63, %v158, 0
    %v166 = vsel %vm63, %v31, 0
    %168 = vmatprep.subr.mxu0 0.0
    %169 = vmatpush1.xpose.msra.mxu0 %v166
    %170 = vmatprep.subr.mxu0 0.0
    %171 = vmatpush1.xpose.msra.mxu0 0.0
    %172 = vmatprep.subr.mxu0 0.0
    %173 = vmatpush1.xpose.msra.mxu0 0.0
    %174 = vmatprep.subr.mxu0 0.0
    %175 = vmatpush1.xpose.msra.mxu0 0.0
    %176 = vmatprep.subr.mxu0 0.0
    %177 = vmatpush1.xpose.msra.mxu0 0.0
    %178 = vmatprep.subr.mxu0 0.0
    %179 = vmatpush1.xpose.msra.mxu0 0.0
    %180 = vmatprep.subr.mxu0 0.0
    %181 = vmatpush1.xpose.msra.mxu0 0.0
    %182 = vmatprep.subr.mxu0 0.0
    %183 = vmatpush1.xpose.msra.mxu0 0.0
    %184 = vmatprep.subr.mxu0 0.0
    %185 = vmatpush1.xpose.msra.mxu0 0.0
    %186 = vmatprep.subr.mxu0 0.0
    %187 = vmatpush1.xpose.msra.mxu0 0.0
    %188 = vmatprep.subr.mxu0 0.0
    %189 = vmatpush1.xpose.msra.mxu0 0.0
    %190 = vmatprep.subr.mxu0 0.0
    %191 = vmatpush1.xpose.msra.mxu0 0.0
    %192 = vmatprep.subr.mxu0 0.0
    %193 = vmatpush1.xpose.msra.mxu0 0.0
    %194 = vmatprep.subr.mxu0 0.0
    %195 = vmatpush1.xpose.msra.mxu0 0.0
    %196 = vmatprep.subr.mxu0 0.0
    %197 = vmatpush1.xpose.msra.mxu0 0.0
    %198 = vmatprep.subr.mxu0 0.0
    %199 = vmatpush1.xpose.msra.mxu0 0.0
    %200 = vmatprep.subr.mxu0 0.0
    %201 = vmatpush1.xpose.msra.mxu0 0.0
    %202 = vmatprep.subr.mxu0 0.0
    %203 = vmatpush1.xpose.msra.mxu0 0.0
    %204 = vmatprep.subr.mxu0 0.0
    %205 = vmatpush1.xpose.msra.mxu0 0.0
    %206 = vmatprep.subr.mxu0 0.0
    %207 = vmatpush1.xpose.msra.mxu0 0.0
    %208 = vmatprep.subr.mxu0 0.0
    %209 = vmatpush1.xpose.msra.mxu0 0.0
    %210 = vmatprep.subr.mxu0 0.0
    %211 = vmatpush1.xpose.msra.mxu0 0.0
    %212 = vmatprep.subr.mxu0 0.0
    %213 = vmatpush1.xpose.msra.mxu0 0.0
    %214 = vmatprep.subr.mxu0 0.0
    %215 = vmatpush1.xpose.msra.mxu0 0.0
    %216 = vmatprep.subr.mxu0 0.0
    %217 = vmatpush1.xpose.msra.mxu0 0.0
    %218 = vmatprep.subr.mxu0 0.0
    %219 = vmatpush1.xpose.msra.mxu0 0.0
    %220 = vmatprep.subr.mxu0 0.0
    %221 = vmatpush1.xpose.msra.mxu0 0.0
    %222 = vmatprep.subr.mxu0 0.0
    %223 = vmatpush1.xpose.msra.mxu0 0.0
    %224 = vmatprep.subr.mxu0 0.0
    %225 = vmatpush1.xpose.msra.mxu0 0.0
    %226 = vmatprep.subr.mxu0 0.0
    %227 = vmatpush1.xpose.msra.mxu0 0.0
    %228 = vmatprep.subr.mxu0 0.0
    %229 = vmatpush1.xpose.msra.mxu0 0.0
    %230 = vmatprep.subr.mxu0 0.0
    %231 = vmatpush1.xpose.msra.mxu0 0.0
    %232 = vmatprep.mubr.f32.mxu0 0.0
    %233 = vmatmul.mubr.f32.gmra.mrb[0].mxu0 %v160
    %v234 = vpop.f32.mrb[0].mxu0
    %v235 = vadd.f32 0.0, %v234
    %v236 = vpop.f32.mrb[0].mxu0
    %237 = vmatprep.mubr.f32.mxu0 0.0
    %238 = vmatmul.mubr.f32.gmra.mrb[0].mxu0 %v163
    %v239 = vpop.f32.mrb[0].mxu0
    %v240 = vadd.f32 0.0, %v239
    %v241 = vpop.f32.mrb[0].mxu0
    %242 = vdwg.mxu0
    %v243 = vmul.f32 %v147, %v154
    %v244 = vmul.f32 %v148, %v152
    %v246 = vsel %vm63, %v243, 0
    %v249 = vsel %vm63, %v244, 0
    %251 = vmatprep.subr.mxu0 0.0
    %252 = vmatpush1.xpose.msra.mxu0 %v166
    %253 = vmatprep.subr.mxu0 0.0
    %254 = vmatpush1.xpose.msra.mxu0 0.0
    %255 = vmatprep.subr.mxu0 0.0
    %256 = vmatpush1.xpose.msra.mxu0 0.0
    %257 = vmatprep.subr.mxu0 0.0
    %258 = vmatpush1.xpose.msra.mxu0 0.0
    %259 = vmatprep.subr.mxu0 0.0
    %260 = vmatpush1.xpose.msra.mxu0 0.0
    %261 = vmatprep.subr.mxu0 0.0
    %262 = vmatpush1.xpose.msra.mxu0 0.0
    %263 = vmatprep.subr.mxu0 0.0
    %264 = vmatpush1.xpose.msra.mxu0 0.0
    %265 = vmatprep.subr.mxu0 0.0
    %266 = vmatpush1.xpose.msra.mxu0 0.0
    %267 = vmatprep.subr.mxu0 0.0
    %268 = vmatpush1.xpose.msra.mxu0 0.0
    %269 = vmatprep.subr.mxu0 0.0
    %270 = vmatpush1.xpose.msra.mxu0 0.0
    %271 = vmatprep.subr.mxu0 0.0
    %272 = vmatpush1.xpose.msra.mxu0 0.0
    %273 = vmatprep.subr.mxu0 0.0
    %274 = vmatpush1.xpose.msra.mxu0 0.0
    %275 = vmatprep.subr.mxu0 0.0
    %276 = vmatpush1.xpose.msra.mxu0 0.0
    %277 = vmatprep.subr.mxu0 0.0
    %278 = vmatpush1.xpose.msra.mxu0 0.0
    %279 = vmatprep.subr.mxu0 0.0
    %280 = vmatpush1.xpose.msra.mxu0 0.0
    %281 = vmatprep.subr.mxu0 0.0
    %282 = vmatpush1.xpose.msra.mxu0 0.0
    %283 = vmatprep.subr.mxu0 0.0
    %284 = vmatpush1.xpose.msra.mxu0 0.0
    %285 = vmatprep.subr.mxu0 0.0
    %286 = vmatpush1.xpose.msra.mxu0 0.0
    %287 = vmatprep.subr.mxu0 0.0
    %288 = vmatpush1.xpose.msra.mxu0 0.0
    %289 = vmatprep.subr.mxu0 0.0
    %290 = vmatpush1.xpose.msra.mxu0 0.0
    %291 = vmatprep.subr.mxu0 0.0
    %292 = vmatpush1.xpose.msra.mxu0 0.0
    %293 = vmatprep.subr.mxu0 0.0
    %294 = vmatpush1.xpose.msra.mxu0 0.0
    %295 = vmatprep.subr.mxu0 0.0
    %296 = vmatpush1.xpose.msra.mxu0 0.0
    %297 = vmatprep.subr.mxu0 0.0
    %298 = vmatpush1.xpose.msra.mxu0 0.0
    %299 = vmatprep.subr.mxu0 0.0
    %300 = vmatpush1.xpose.msra.mxu0 0.0
    %301 = vmatprep.subr.mxu0 0.0
    %302 = vmatpush1.xpose.msra.mxu0 0.0
    %303 = vmatprep.subr.mxu0 0.0
    %304 = vmatpush1.xpose.msra.mxu0 0.0
    %305 = vmatprep.subr.mxu0 0.0
    %306 = vmatpush1.xpose.msra.mxu0 0.0
    %307 = vmatprep.subr.mxu0 0.0
    %308 = vmatpush1.xpose.msra.mxu0 0.0
    %309 = vmatprep.subr.mxu0 0.0
    %310 = vmatpush1.xpose.msra.mxu0 0.0
    %311 = vmatprep.subr.mxu0 0.0
    %312 = vmatpush1.xpose.msra.mxu0 0.0
    %313 = vmatprep.subr.mxu0 0.0
    %314 = vmatpush1.xpose.msra.mxu0 0.0
    %315 = vmatprep.mubr.f32.mxu0 0.0
    %316 = vmatmul.mubr.f32.gmra.mrb[0].mxu0 %v246
    %v317 = vpop.f32.mrb[0].mxu0
    %v318 = vadd.f32 0.0, %v317
    %v319 = vpop.f32.mrb[0].mxu0
    %320 = vmatprep.mubr.f32.mxu0 0.0
    %321 = vmatmul.mubr.f32.gmra.mrb[0].mxu0 %v249
    %v322 = vpop.f32.mrb[0].mxu0
    %v323 = vadd.f32 0.0, %v322
    %v324 = vpop.f32.mrb[0].mxu0
    %325 = vdwg.mxu0
    %v326 = vmax.f32 %v235, %v318
    %v327 = vmax.f32 %v240, %v323
    %v328 = vsub.f32 %v235, %v326
    %v329 = vsub.f32 %v240, %v327
    %v330 = vmul.f32 %v328, 1.442695
    %v331 = vpow.pop %v330
    %v332 = vmul.f32 %v329, 1.442695
    %v333 = vpow.pop %v332
    %v334 = vsub.f32 %v318, %v326
    %v335 = vsub.f32 %v323, %v327
    %v336 = vmul.f32 %v334, 1.442695
    %v337 = vpow.pop %v336
    %v338 = vmul.f32 %v335, 1.442695
    %v339 = vpow.pop %v338
    %v340 = vadd.f32 %v331, %v337
    %v341 = vadd.f32 %v333, %v339
    %v342 = vrcp.pop %v340
    %v343 = vrcp.pop %v341
    %v344 = vmul.f32 %v331, %v342
    %v345 = vmul.f32 %v333, %v343
    %vm346 = vcmask 64512
    %v348 = vsel %vm346, %v344, 0
    %v351 = vsel %vm346, %v345, 0
    %353 = vmatprep.subr.mxu0 0.0
    %354 = vmatpush1.msra.mxu0 %v31
    %355 = vmatprep.subr.mxu0 0.0
    %356 = vmatpush1.msra.mxu0 0.0
    %357 = vmatprep.subr.mxu0 0.0
    %358 = vmatpush1.msra.mxu0 0.0
    %359 = vmatprep.subr.mxu0 0.0
    %360 = vmatpush1.msra.mxu0 0.0
    %361 = vmatprep.subr.mxu0 0.0
    %362 = vmatpush1.msra.mxu0 0.0
    %363 = vmatprep.subr.mxu0 0.0
    %364 = vmatpush1.msra.mxu0 0.0
    %365 = vmatprep.subr.mxu0 0.0
    %366 = vmatpush1.msra.mxu0 0.0
    %367 = vmatprep.subr.mxu0 0.0
    %368 = vmatpush1.msra.mxu0 0.0
    %369 = vmatprep.subr.mxu0 0.0
    %370 = vmatpush1.msra.mxu0 0.0
    %371 = vmatprep.subr.mxu0 0.0
    %372 = vmatpush1.msra.mxu0 0.0
    %373 = vmatprep.subr.mxu0 0.0
    %374 = vmatpush1.msra.mxu0 0.0
    %375 = vmatprep.subr.mxu0 0.0
    %376 = vmatpush1.msra.mxu0 0.0
    %377 = vmatprep.subr.mxu0 0.0
    %378 = vmatpush1.msra.mxu0 0.0
    %379 = vmatprep.subr.mxu0 0.0
    %380 = vmatpush1.msra.mxu0 0.0
    %381 = vmatprep.subr.mxu0 0.0
    %382 = vmatpush1.msra.mxu0 0.0
    %383 = vmatprep.subr.mxu0 0.0
    %384 = vmatpush1.msra.mxu0 0.0
    %385 = vmatprep.subr.mxu0 0.0
    %386 = vmatpush1.msra.mxu0 0.0
    %387 = vmatprep.subr.mxu0 0.0
    %388 = vmatpush1.msra.mxu0 0.0
    %389 = vmatprep.subr.mxu0 0.0
    %390 = vmatpush1.msra.mxu0 0.0
    %391 = vmatprep.subr.mxu0 0.0
    %392 = vmatpush1.msra.mxu0 0.0
    %393 = vmatprep.subr.mxu0 0.0
    %394 = vmatpush1.msra.mxu0 0.0
    %395 = vmatprep.subr.mxu0 0.0
    %396 = vmatpush1.msra.mxu0 0.0
    %397 = vmatprep.subr.mxu0 0.0
    %398 = vmatpush1.msra.mxu0 0.0
    %399 = vmatprep.subr.mxu0 0.0
    %400 = vmatpush1.msra.mxu0 0.0
    %401 = vmatprep.subr.mxu0 0.0
    %402 = vmatpush1.msra.mxu0 0.0
    %403 = vmatprep.subr.mxu0 0.0
    %404 = vmatpush1.msra.mxu0 0.0
    %405 = vmatprep.subr.mxu0 0.0
    %406 = vmatpush1.msra.mxu0 0.0
    %407 = vmatprep.subr.mxu0 0.0
    %408 = vmatpush1.msra.mxu0 0.0
    %409 = vmatprep.subr.mxu0 0.0
    %410 = vmatpush1.msra.mxu0 0.0
    %411 = vmatprep.subr.mxu0 0.0
    %412 = vmatpush1.msra.mxu0 0.0
    %413 = vmatprep.subr.mxu0 0.0
    %414 = vmatpush1.msra.mxu0 0.0
    %415 = vmatprep.subr.mxu0 0.0
    %416 = vmatpush1.msra.mxu0 0.0
    %417 = vmatprep.mubr.f32.mxu0 0.0
    %418 = vmatmul.mubr.f32.gmra.mrb[0].mxu0 %v348
    %v419 = vpop.f32.mrb[0].mxu0
    %v420 = vadd.f32 0.0, %v419
    %v421 = vpop.f32.mrb[0].mxu0
    %422 = vmatprep.mubr.f32.mxu0 0.0
    %423 = vmatmul.mubr.f32.gmra.mrb[0].mxu0 %v351
    %v424 = vpop.f32.mrb[0].mxu0
    %v425 = vadd.f32 0.0, %v424
    %v426 = vpop.f32.mrb[0].mxu0
    %427 = vdwg.mxu0
    %v428 = vmul.f32 %v420, %v139
    %v429 = vmul.f32 %v425, %v145
    %v430 = vmul.f32 %v337, %v342
    %v431 = vmul.f32 %v339, %v343
    %v433 = vsel %vm346, %v430, 0
    %v436 = vsel %vm346, %v431, 0
    %438 = vmatprep.subr.mxu0 0.0
    %439 = vmatpush1.msra.mxu0 %v31
    %440 = vmatprep.subr.mxu0 0.0
    %441 = vmatpush1.msra.mxu0 0.0
    %442 = vmatprep.subr.mxu0 0.0
    %443 = vmatpush1.msra.mxu0 0.0
    %444 = vmatprep.subr.mxu0 0.0
    %445 = vmatpush1.msra.mxu0 0.0
    %446 = vmatprep.subr.mxu0 0.0
    %447 = vmatpush1.msra.mxu0 0.0
    %448 = vmatprep.subr.mxu0 0.0
    %449 = vmatpush1.msra.mxu0 0.0
    %450 = vmatprep.subr.mxu0 0.0
    %451 = vmatpush1.msra.mxu0 0.0
    %452 = vmatprep.subr.mxu0 0.0
    %453 = vmatpush1.msra.mxu0 0.0
    %454 = vmatprep.subr.mxu0 0.0
    %455 = vmatpush1.msra.mxu0 0.0
    %456 = vmatprep.subr.mxu0 0.0
    %457 = vmatpush1.msra.mxu0 0.0
    %458 = vmatprep.subr.mxu0 0.0
    %459 = vmatpush1.msra.mxu0 0.0
    %460 = vmatprep.subr.mxu0 0.0
    %461 = vmatpush1.msra.mxu0 0.0
    %462 = vmatprep.subr.mxu0 0.0
    %463 = vmatpush1.msra.mxu0 0.0
    %464 = vmatprep.subr.mxu0 0.0
    %465 = vmatpush1.msra.mxu0 0.0
    %466 = vmatprep.subr.mxu0 0.0
    %467 = vmatpush1.msra.mxu0 0.0
    %468 = vmatprep.subr.mxu0 0.0
    %469 = vmatpush1.msra.mxu0 0.0
    %470 = vmatprep.subr.mxu0 0.0
    %471 = vmatpush1.msra.mxu0 0.0
    %472 = vmatprep.subr.mxu0 0.0
    %473 = vmatpush1.msra.mxu0 0.0
    %474 = vmatprep.subr.mxu0 0.0
    %475 = vmatpush1.msra.mxu0 0.0
    %476 = vmatprep.subr.mxu0 0.0
    %477 = vmatpush1.msra.mxu0 0.0
    %478 = vmatprep.subr.mxu0 0.0
    %479 = vmatpush1.msra.mxu0 0.0
    %480 = vmatprep.subr.mxu0 0.0
    %481 = vmatpush1.msra.mxu0 0.0
    %482 = vmatprep.subr.mxu0 0.0
    %483 = vmatpush1.msra.mxu0 0.0
    %484 = vmatprep.subr.mxu0 0.0
    %485 = vmatpush1.msra.mxu0 0.0
    %486 = vmatprep.subr.mxu0 0.0
    %487 = vmatpush1.msra.mxu0 0.0
    %488 = vmatprep.subr.mxu0 0.0
    %489 = vmatpush1.msra.mxu0 0.0
    %490 = vmatprep.subr.mxu0 0.0
    %491 = vmatpush1.msra.mxu0 0.0
    %492 = vmatprep.subr.mxu0 0.0
    %493 = vmatpush1.msra.mxu0 0.0
    %494 = vmatprep.subr.mxu0 0.0
    %495 = vmatpush1.msra.mxu0 0.0
    %496 = vmatprep.subr.mxu0 0.0
    %497 = vmatpush1.msra.mxu0 0.0
    %498 = vmatprep.subr.mxu0 0.0
    %499 = vmatpush1.msra.mxu0 0.0
    %500 = vmatprep.subr.mxu0 0.0
    %501 = vmatpush1.msra.mxu0 0.0
    %502 = vmatprep.mubr.f32.mxu0 0.0
    %503 = vmatmul.mubr.f32.gmra.mrb[0].mxu0 %v433
    %v504 = vpop.f32.mrb[0].mxu0
    %v505 = vadd.f32 0.0, %v504
    %v506 = vpop.f32.mrb[0].mxu0
    %507 = vmatprep.mubr.f32.mxu0 0.0
    %508 = vmatmul.mubr.f32.gmra.mrb[0].mxu0 %v436
    %v509 = vpop.f32.mrb[0].mxu0
    %v510 = vadd.f32 0.0, %v509
    %v511 = vpop.f32.mrb[0].mxu0
    %512 = vdwg.mxu0
    %v513 = vmul.f32 %v505, %v145
    %v514 = vmul.f32 %v510, %v139
    %v515 = vadd.f32 %v428, %v513
    %v516 = vadd.f32 %v429, %v514
    %v517 = vld [vmem:[%s2 + $0x1] sm:$0x1]
    %v519 = vlaneseq
    %v520 = vshrl.u32 %v519, 7
    %v521 = vsub.s32 0, %v520
    %v522 = vrot.slane %v517, %v521
    %531 = vrot.lane.b32.xlu0 %v36, 64
    %v532 = vpop.permute.xlu0 %531
    %533 = vrot.lane.b32.xlu0 %v38, 64
    %v534 = vpop.permute.xlu0 %533
    %535 = vrot.lane.b32.xlu0 %v40, 64
    %v536 = vpop.permute.xlu0 %535
    %537 = vrot.lane.b32.xlu0 %v42, 64
    %v538 = vpop.permute.xlu0 %537
    %539 = vrot.lane.b32.xlu0 %v44, 64
    %v540 = vpop.permute.xlu0 %539
    %541 = vrot.lane.b32.xlu0 %v46, 64
    %v542 = vpop.permute.xlu0 %541
    %543 = vrot.lane.b32.xlu0 %v48, 64
    %v544 = vpop.permute.xlu0 %543
    %545 = vrot.lane.b32.xlu0 %v50, 64
    %v546 = vpop.permute.xlu0 %545
    %555 = vrot.lane.b32.xlu0 %v522, 64
    %v556 = vpop.permute.xlu0 %555
    %v559 = vsel %vm63, %v515, 0
    %v562 = vsel %vm63, %v516, 0
    %564 = vmatprep.subr.mxu0 0.0
    %565 = vmatpush1.msra.mxu0 %v532
    %566 = vmatprep.subr.mxu0 0.0
    %567 = vmatpush1.msra.mxu0 %v534
    %568 = vmatprep.subr.mxu0 0.0
    %569 = vmatpush1.msra.mxu0 %v536
    %570 = vmatprep.subr.mxu0 0.0
    %571 = vmatpush1.msra.mxu0 %v538
    %572 = vmatprep.subr.mxu0 0.0
    %573 = vmatpush1.msra.mxu0 %v540
    %574 = vmatprep.subr.mxu0 0.0
    %575 = vmatpush1.msra.mxu0 %v542
    %576 = vmatprep.subr.mxu0 0.0
    %577 = vmatpush1.msra.mxu0 %v544
    %578 = vmatprep.subr.mxu0 0.0
    %579 = vmatpush1.msra.mxu0 %v546
    %580 = vmatprep.subr.mxu0 0.0
    %581 = vmatpush1.msra.mxu0 0.0
    %582 = vmatprep.subr.mxu0 0.0
    %583 = vmatpush1.msra.mxu0 0.0
    %584 = vmatprep.subr.mxu0 0.0
    %585 = vmatpush1.msra.mxu0 0.0
    %586 = vmatprep.subr.mxu0 0.0
    %587 = vmatpush1.msra.mxu0 0.0
    %588 = vmatprep.subr.mxu0 0.0
    %589 = vmatpush1.msra.mxu0 0.0
    %590 = vmatprep.subr.mxu0 0.0
    %591 = vmatpush1.msra.mxu0 0.0
    %592 = vmatprep.subr.mxu0 0.0
    %593 = vmatpush1.msra.mxu0 0.0
    %594 = vmatprep.subr.mxu0 0.0
    %595 = vmatpush1.msra.mxu0 0.0
    %596 = vmatprep.subr.mxu0 0.0
    %597 = vmatpush1.msra.mxu0 0.0
    %598 = vmatprep.subr.mxu0 0.0
    %599 = vmatpush1.msra.mxu0 0.0
    %600 = vmatprep.subr.mxu0 0.0
    %601 = vmatpush1.msra.mxu0 0.0
    %602 = vmatprep.subr.mxu0 0.0
    %603 = vmatpush1.msra.mxu0 0.0
    %604 = vmatprep.subr.mxu0 0.0
    %605 = vmatpush1.msra.mxu0 0.0
    %606 = vmatprep.subr.mxu0 0.0
    %607 = vmatpush1.msra.mxu0 0.0
    %608 = vmatprep.subr.mxu0 0.0
    %609 = vmatpush1.msra.mxu0 0.0
    %610 = vmatprep.subr.mxu0 0.0
    %611 = vmatpush1.msra.mxu0 0.0
    %612 = vmatprep.subr.mxu0 0.0
    %613 = vmatpush1.msra.mxu0 0.0
    %614 = vmatprep.subr.mxu0 0.0
    %615 = vmatpush1.msra.mxu0 0.0
    %616 = vmatprep.subr.mxu0 0.0
    %617 = vmatpush1.msra.mxu0 0.0
    %618 = vmatprep.subr.mxu0 0.0
    %619 = vmatpush1.msra.mxu0 0.0
    %620 = vmatprep.subr.mxu0 0.0
    %621 = vmatpush1.msra.mxu0 0.0
    %622 = vmatprep.subr.mxu0 0.0
    %623 = vmatpush1.msra.mxu0 0.0
    %624 = vmatprep.subr.mxu0 0.0
    %625 = vmatpush1.msra.mxu0 0.0
    %626 = vmatprep.subr.mxu0 0.0
    %627 = vmatpush1.msra.mxu0 0.0
    %628 = vmatprep.mubr.f32.mxu0 0.0
    %629 = vmatmul.mubr.f32.gmra.mrb[0].mxu0 %v559
    %v630 = vpop.f32.mrb[0].mxu0
    %v631 = vadd.f32 %v556, %v630
    %v632 = vpop.f32.mrb[0].mxu0
    %633 = vmatprep.mubr.f32.mxu0 0.0
    %634 = vmatmul.mubr.f32.gmra.mrb[0].mxu0 %v562
    %v635 = vpop.f32.mrb[0].mxu0
    %v636 = vadd.f32 %v556, %v635
    %v637 = vpop.f32.mrb[0].mxu0
    %638 = vdwg.mxu0
    %v639 = vld [vmem:[#allocation2 + $0x10] sm:$0xff]
    %v640 = vld [vmem:[#allocation2 + $0x28] sm:$0xff]
    %v641 = vld [vmem:[#allocation2 + $0x40] sm:$0xff]
    %v642 = vld [vmem:[#allocation2 + $0x58] sm:$0xff]
    %vm643 = vcmask 261120
    %v645 = vsel %vm643, %v631, 0
    %v648 = vsel %vm643, %v636, 0
    %650 = vmatprep.subr.mxu0 0.0
    %651 = vmatpush1.msra.mxu0 %v639
    %652 = vmatprep.subr.mxu0 0.0
    %653 = vmatpush1.msra.mxu0 %v640
    %654 = vmatprep.subr.mxu0 0.0
    %655 = vmatpush1.msra.mxu0 %v641
    %656 = vmatprep.subr.mxu0 0.0
    %657 = vmatpush1.msra.mxu0 %v642
    %658 = vmatprep.subr.mxu0 0.0
    %659 = vmatpush1.msra.mxu0 0.0
    %660 = vmatprep.subr.mxu0 0.0
    %661 = vmatpush1.msra.mxu0 0.0
    %662 = vmatprep.subr.mxu0 0.0
    %663 = vmatpush1.msra.mxu0 0.0
    %664 = vmatprep.subr.mxu0 0.0
    %665 = vmatpush1.msra.mxu0 0.0
    %666 = vmatprep.subr.mxu0 0.0
    %667 = vmatpush1.msra.mxu0 0.0
    %668 = vmatprep.subr.mxu0 0.0
    %669 = vmatpush1.msra.mxu0 0.0
    %670 = vmatprep.subr.mxu0 0.0
    %671 = vmatpush1.msra.mxu0 0.0
    %672 = vmatprep.subr.mxu0 0.0
    %673 = vmatpush1.msra.mxu0 0.0
    %674 = vmatprep.subr.mxu0 0.0
    %675 = vmatpush1.msra.mxu0 0.0
    %676 = vmatprep.subr.mxu0 0.0
    %677 = vmatpush1.msra.mxu0 0.0
    %678 = vmatprep.subr.mxu0 0.0
    %679 = vmatpush1.msra.mxu0 0.0
    %680 = vmatprep.subr.mxu0 0.0
    %681 = vmatpush1.msra.mxu0 0.0
    %682 = vmatprep.subr.mxu0 0.0
    %683 = vmatpush1.msra.mxu0 0.0
    %684 = vmatprep.subr.mxu0 0.0
    %685 = vmatpush1.msra.mxu0 0.0
    %686 = vmatprep.subr.mxu0 0.0
    %687 = vmatpush1.msra.mxu0 0.0
    %688 = vmatprep.subr.mxu0 0.0
    %689 = vmatpush1.msra.mxu0 0.0
    %690 = vmatprep.subr.mxu0 0.0
    %691 = vmatpush1.msra.mxu0 0.0
    %692 = vmatprep.subr.mxu0 0.0
    %693 = vmatpush1.msra.mxu0 0.0
    %694 = vmatprep.subr.mxu0 0.0
    %695 = vmatpush1.msra.mxu0 0.0
    %696 = vmatprep.subr.mxu0 0.0
    %697 = vmatpush1.msra.mxu0 0.0
    %698 = vmatprep.subr.mxu0 0.0
    %699 = vmatpush1.msra.mxu0 0.0
    %700 = vmatprep.subr.mxu0 0.0
    %701 = vmatpush1.msra.mxu0 0.0
    %702 = vmatprep.subr.mxu0 0.0
    %703 = vmatpush1.msra.mxu0 0.0
    %704 = vmatprep.subr.mxu0 0.0
    %705 = vmatpush1.msra.mxu0 0.0
    %706 = vmatprep.subr.mxu0 0.0
    %707 = vmatpush1.msra.mxu0 0.0
    %708 = vmatprep.subr.mxu0 0.0
    %709 = vmatpush1.msra.mxu0 0.0
    %710 = vmatprep.subr.mxu0 0.0
    %711 = vmatpush1.msra.mxu0 0.0
    %712 = vmatprep.subr.mxu0 0.0
    %713 = vmatpush1.msra.mxu0 0.0
    %714 = vmatprep.mubr.f32.mxu0 0.0
    %715 = vmatmul.mubr.f32.gmra.mrb[0].mxu0 %v645
    %v716 = vpop.f32.mrb[0].mxu0
    %v717 = vadd.f32 0.0, %v716
    %v718 = vpop.f32.mrb[0].mxu0
    %719 = vmatprep.mubr.f32.mxu0 0.0
    %720 = vmatmul.mubr.f32.gmra.mrb[0].mxu0 %v648
    %v721 = vpop.f32.mrb[0].mxu0
    %v722 = vadd.f32 0.0, %v721
    %v723 = vpop.f32.mrb[0].mxu0
    %724 = vdwg.mxu0
    %725 = vrot.lane.b32.xlu0 %v631, 96
    %v726 = vpop.permute.xlu0 %725
    %727 = vrot.lane.b32.xlu0 %v636, 96
    %v728 = vpop.permute.xlu0 %727
    %v730 = vsel %vm643, %v717, 0
    %v733 = vsel %vm643, %v722, 0
    %v735 = vsel %vm643, %v726, 0
    %v737 = vsel %vm643, %v728, 0
    %739 = vmatprep.subr.mxu0 0.0
    %740 = vmatpush1.xpose.msra.mxu0 %v735
    %741 = vmatprep.subr.mxu0 0.0
    %742 = vmatpush1.xpose.msra.mxu0 %v737
    %743 = vmatprep.subr.mxu0 0.0
    %744 = vmatpush1.xpose.msra.mxu0 0.0
    %745 = vmatprep.subr.mxu0 0.0
    %746 = vmatpush1.xpose.msra.mxu0 0.0
    %747 = vmatprep.subr.mxu0 0.0
    %748 = vmatpush1.xpose.msra.mxu0 0.0
    %749 = vmatprep.subr.mxu0 0.0
    %750 = vmatpush1.xpose.msra.mxu0 0.0
    %751 = vmatprep.subr.mxu0 0.0
    %752 = vmatpush1.xpose.msra.mxu0 0.0
    %753 = vmatprep.subr.mxu0 0.0
    %754 = vmatpush1.xpose.msra.mxu0 0.0
    %755 = vmatprep.subr.mxu0 0.0
    %756 = vmatpush1.xpose.msra.mxu0 0.0
    %757 = vmatprep.subr.mxu0 0.0
    %758 = vmatpush1.xpose.msra.mxu0 0.0
    %759 = vmatprep.subr.mxu0 0.0
    %760 = vmatpush1.xpose.msra.mxu0 0.0
    %761 = vmatprep.subr.mxu0 0.0
    %762 = vmatpush1.xpose.msra.mxu0 0.0
    %763 = vmatprep.subr.mxu0 0.0
    %764 = vmatpush1.xpose.msra.mxu0 0.0
    %765 = vmatprep.subr.mxu0 0.0
    %766 = vmatpush1.xpose.msra.mxu0 0.0
    %767 = vmatprep.subr.mxu0 0.0
    %768 = vmatpush1.xpose.msra.mxu0 0.0
    %769 = vmatprep.subr.mxu0 0.0
    %770 = vmatpush1.xpose.msra.mxu0 0.0
    %771 = vmatprep.subr.mxu0 0.0
    %772 = vmatpush1.xpose.msra.mxu0 0.0
    %773 = vmatprep.subr.mxu0 0.0
    %774 = vmatpush1.xpose.msra.mxu0 0.0
    %775 = vmatprep.subr.mxu0 0.0
    %776 = vmatpush1.xpose.msra.mxu0 0.0
    %777 = vmatprep.subr.mxu0 0.0
    %778 = vmatpush1.xpose.msra.mxu0 0.0
    %779 = vmatprep.subr.mxu0 0.0
    %780 = vmatpush1.xpose.msra.mxu0 0.0
    %781 = vmatprep.subr.mxu0 0.0
    %782 = vmatpush1.xpose.msra.mxu0 0.0
    %783 = vmatprep.subr.mxu0 0.0
    %784 = vmatpush1.xpose.msra.mxu0 0.0
    %785 = vmatprep.subr.mxu0 0.0
    %786 = vmatpush1.xpose.msra.mxu0 0.0
    %787 = vmatprep.subr.mxu0 0.0
    %788 = vmatpush1.xpose.msra.mxu0 0.0
    %789 = vmatprep.subr.mxu0 0.0
    %790 = vmatpush1.xpose.msra.mxu0 0.0
    %791 = vmatprep.subr.mxu0 0.0
    %792 = vmatpush1.xpose.msra.mxu0 0.0
    %793 = vmatprep.subr.mxu0 0.0
    %794 = vmatpush1.xpose.msra.mxu0 0.0
    %795 = vmatprep.subr.mxu0 0.0
    %796 = vmatpush1.xpose.msra.mxu0 0.0
    %797 = vmatprep.subr.mxu0 0.0
    %798 = vmatpush1.xpose.msra.mxu0 0.0
    %799 = vmatprep.subr.mxu0 0.0
    %800 = vmatpush1.xpose.msra.mxu0 0.0
    %801 = vmatprep.subr.mxu0 0.0
    %802 = vmatpush1.xpose.msra.mxu0 0.0
    %803 = vmatprep.mubr.f32.mxu0 0.0
    %804 = vmatmul.mubr.f32.gmra.mrb[0].mxu0 %v730
    %v805 = vpop.f32.mrb[0].mxu0
    %v806 = vadd.f32 0.0, %v805
    %v807 = vpop.f32.mrb[0].mxu0
    %808 = vmatprep.mubr.f32.mxu0 0.0
    %809 = vmatmul.mubr.f32.gmra.mrb[0].mxu0 %v733
    %v810 = vpop.f32.mrb[0].mxu0
    %v811 = vadd.f32 0.0, %v810
    %v812 = vpop.f32.mrb[0].mxu0
    %813 = vdwg.mxu0
    %v814 = vtanh.pop %v806
    %v815 = vtanh.pop %v811
    %817 = vrot.lane.b32.xlu0 %v31, 64
    %v818 = vpop.permute.xlu0 %817
    %819 = vrot.lane.b32.xlu0 %v32, 64
    %v820 = vpop.permute.xlu0 %819
    %v823 = vadd.f32 %v814, %v818
    %v824 = vadd.f32 %v815, %v820
    %vm825 = vcmask 130048
    %v826 = vsel %vm825, %v823, -inf
    %827 = vmax.xlane.f32.xlu0 %v826
    %v828 = vpop.xlane.xlu0 %827
    %v829 = vsel %vm825, %v824, -inf
    %830 = vmax.xlane.f32.xlu0 %v829
    %v831 = vpop.xlane.xlu0 %830
    %v832 = vsub.f32 %v823, %v828
    %v833 = vsub.f32 %v824, %v831
    %v834 = vmul.f32 %v832, 1.442695
    %v835 = vpow.pop %v834
    %v836 = vmul.f32 %v833, 1.442695
    %v837 = vpow.pop %v836
    %v838 = vsel %vm825, %v835, 0.0
    %839 = vadd.xlane.f32.xlu0 %v838
    %v840 = vpop.xlane.xlu0 %839
    %v841 = vsel %vm825, %v837, 0.0
    %842 = vadd.xlane.f32.xlu0 %v841
    %v843 = vpop.xlane.xlu0 %842
    %v844 = vrcp.pop %v840
    %v845 = vrcp.pop %v843
    %v846 = vmul.f32 %v835, %v844
    %v847 = vmul.f32 %v837, %v845
    %v848 = vmax.f32 %v826, %v829
    %v849 = vrot.slane %v848, 4
    %v850 = vmax.f32 %v848, %v849
    %v851 = vrot.slane %v850, 2
    %v852 = vmax.f32 %v850, %v851
    %v853 = vrot.slane %v852, 1
    %v854 = vmax.f32 %v852, %v853
    %v855 = vsub.f32 %v823, %v854
    %v856 = vsub.f32 %v824, %v854
    %v857 = vmul.f32 %v855, 1.442695
    %v858 = vpow.pop %v857
    %v859 = vmul.f32 %v856, 1.442695
    %v860 = vpow.pop %v859
    %v861 = vsel %vm825, %v858, 0.0
    %v862 = vsel %vm825, %v860, 0.0
    %v863 = vadd.f32 %v861, %v862
    %v864 = vrot.slane %v863, 4
    %v865 = vadd.f32 %v863, %v864
    %v866 = vrot.slane %v865, 2
    %v867 = vadd.f32 %v865, %v866
    %v868 = vrot.slane %v867, 1
    %v869 = vadd.f32 %v867, %v868
    %v870 = vrcp.pop %v869
    %v871 = vmul.f32 %v858, %v870
    %v872 = vmul.f32 %v860, %v870
    %v876 = vsel %vm825, %v846, 0
    %v879 = vsel %vm825, %v847, 0
    %881 = vmatprep.subr.mxu0 0.0
    %882 = vmatpush1.msra.mxu0 %v726
    %883 = vmatprep.subr.mxu0 0.0
    %884 = vmatpush1.msra.mxu0 %v728
    %885 = vmatprep.subr.mxu0 0.0
    %886 = vmatpush1.msra.mxu0 0.0
    %887 = vmatprep.subr.mxu0 0.0
    %888 = vmatpush1.msra.mxu0 0.0
    %889 = vmatprep.subr.mxu0 0.0
    %890 = vmatpush1.msra.mxu0 0.0
    %891 = vmatprep.subr.mxu0 0.0
    %892 = vmatpush1.msra.mxu0 0.0
    %893 = vmatprep.subr.mxu0 0.0
    %894 = vmatpush1.msra.mxu0 0.0
    %895 = vmatprep.subr.mxu0 0.0
    %896 = vmatpush1.msra.mxu0 0.0
    %897 = vmatprep.subr.mxu0 0.0
    %898 = vmatpush1.msra.mxu0 0.0
    %899 = vmatprep.subr.mxu0 0.0
    %900 = vmatpush1.msra.mxu0 0.0
    %901 = vmatprep.subr.mxu0 0.0
    %902 = vmatpush1.msra.mxu0 0.0
    %903 = vmatprep.subr.mxu0 0.0
    %904 = vmatpush1.msra.mxu0 0.0
    %905 = vmatprep.subr.mxu0 0.0
    %906 = vmatpush1.msra.mxu0 0.0
    %907 = vmatprep.subr.mxu0 0.0
    %908 = vmatpush1.msra.mxu0 0.0
    %909 = vmatprep.subr.mxu0 0.0
    %910 = vmatpush1.msra.mxu0 0.0
    %911 = vmatprep.subr.mxu0 0.0
    %912 = vmatpush1.msra.mxu0 0.0
    %913 = vmatprep.subr.mxu0 0.0
    %914 = vmatpush1.msra.mxu0 0.0
    %915 = vmatprep.subr.mxu0 0.0
    %916 = vmatpush1.msra.mxu0 0.0
    %917 = vmatprep.subr.mxu0 0.0
    %918 = vmatpush1.msra.mxu0 0.0
    %919 = vmatprep.subr.mxu0 0.0
    %920 = vmatpush1.msra.mxu0 0.0
    %921 = vmatprep.subr.mxu0 0.0
    %922 = vmatpush1.msra.mxu0 0.0
    %923 = vmatprep.subr.mxu0 0.0
    %924 = vmatpush1.msra.mxu0 0.0
    %925 = vmatprep.subr.mxu0 0.0
    %926 = vmatpush1.msra.mxu0 0.0
    %927 = vmatprep.subr.mxu0 0.0
    %928 = vmatpush1.msra.mxu0 0.0
    %929 = vmatprep.subr.mxu0 0.0
    %930 = vmatpush1.msra.mxu0 0.0
    %931 = vmatprep.subr.mxu0 0.0
    %932 = vmatpush1.msra.mxu0 0.0
    %933 = vmatprep.subr.mxu0 0.0
    %934 = vmatpush1.msra.mxu0 0.0
    %935 = vmatprep.subr.mxu0 0.0
    %936 = vmatpush1.msra.mxu0 0.0
    %937 = vmatprep.subr.mxu0 0.0
    %938 = vmatpush1.msra.mxu0 0.0
    %939 = vmatprep.subr.mxu0 0.0
    %940 = vmatpush1.msra.mxu0 0.0
    %941 = vmatprep.subr.mxu0 0.0
    %942 = vmatpush1.msra.mxu0 0.0
    %943 = vmatprep.subr.mxu0 0.0
    %944 = vmatpush1.msra.mxu0 0.0
    %945 = vmatprep.mubr.f32.mxu0 0.0
    %946 = vmatmul.mubr.f32.gmra.mrb[0].mxu0 %v876
    %v947 = vpop.f32.mrb[0].mxu0
    %v948 = vadd.f32 0.0, %v947
    %v949 = vpop.f32.mrb[0].mxu0
    %950 = vmatprep.mubr.f32.mxu0 0.0
    %951 = vmatmul.mubr.f32.gmra.mrb[0].mxu0 %v879
    %v952 = vpop.f32.mrb[0].mxu0
    %v953 = vadd.f32 0.0, %v952
    %v954 = vpop.f32.mrb[0].mxu0
    %955 = vdwg.mxu0
    %956 = vxpose.xlu0.b32.start [1/16] %v871, 128
    %957 = vxpose.xlu0.b32.cont [2/16] %v872, 128
    %958 = vxpose.xlu0.b32.cont [3/16] 0.0, 128
    %959 = vxpose.xlu0.b32.cont [4/16] 0.0, 128
    %960 = vxpose.xlu0.b32.cont [5/16] 0.0, 128
    %961 = vxpose.xlu0.b32.cont [6/16] 0.0, 128
    %962 = vxpose.xlu0.b32.cont [7/16] 0.0, 128
    %963 = vxpose.xlu0.b32.cont [8/16] 0.0, 128
    %964 = vxpose.xlu0.b32.cont [9/16] 0.0, 128
    %965 = vxpose.xlu0.b32.cont [10/16] 0.0, 128
    %966 = vxpose.xlu0.b32.cont [11/16] 0.0, 128
    %967 = vxpose.xlu0.b32.cont [12/16] 0.0, 128
    %968 = vxpose.xlu0.b32.cont [13/16] 0.0, 128
    %969 = vxpose.xlu0.b32.cont [14/16] 0.0, 128
    %970 = vxpose.xlu0.b32.cont [15/16] 0.0, 128
    %971 = vxpose.xlu0.b32.end [16/16] 0.0, 128
    %v972 = vpop.trf.xlu0
    %v973 = vpop.trf.xlu0
    %v974 = vpop.trf.xlu0
    %v975 = vpop.trf.xlu0
    %v976 = vpop.trf.xlu0
    %v977 = vpop.trf.xlu0
    %v978 = vpop.trf.xlu0
    %v979 = vpop.trf.xlu0
    %v980 = vpop.trf.xlu0
    %v981 = vpop.trf.xlu0
    %v982 = vpop.trf.xlu0
    %v983 = vpop.trf.xlu0
    %v984 = vpop.trf.xlu0
    %v985 = vpop.trf.xlu0
    %v986 = vpop.trf.xlu0
    %v987 = vpop.trf.xlu0
    %v989 = vsel %vm825, %v972, 0
    %v992 = vsel %vm825, %v973, 0
    %994 = vmatprep.subr.mxu0 0.0
    %995 = vmatpush1.msra.mxu0 %v631
    %996 = vmatprep.subr.mxu0 0.0
    %997 = vmatpush1.msra.mxu0 %v636
    %998 = vmatprep.subr.mxu0 0.0
    %999 = vmatpush1.msra.mxu0 0.0
    %1000 = vmatprep.subr.mxu0 0.0
    %1001 = vmatpush1.msra.mxu0 0.0
    %1002 = vmatprep.subr.mxu0 0.0
    %1003 = vmatpush1.msra.mxu0 0.0
    %1004 = vmatprep.subr.mxu0 0.0
    %1005 = vmatpush1.msra.mxu0 0.0
    %1006 = vmatprep.subr.mxu0 0.0
    %1007 = vmatpush1.msra.mxu0 0.0
    %1008 = vmatprep.subr.mxu0 0.0
    %1009 = vmatpush1.msra.mxu0 0.0
    %1010 = vmatprep.subr.mxu0 0.0
    %1011 = vmatpush1.msra.mxu0 0.0
    %1012 = vmatprep.subr.mxu0 0.0
    %1013 = vmatpush1.msra.mxu0 0.0
    %1014 = vmatprep.subr.mxu0 0.0
    %1015 = vmatpush1.msra.mxu0 0.0
    %1016 = vmatprep.subr.mxu0 0.0
    %1017 = vmatpush1.msra.mxu0 0.0
    %1018 = vmatprep.subr.mxu0 0.0
    %1019 = vmatpush1.msra.mxu0 0.0
    %1020 = vmatprep.subr.mxu0 0.0
    %1021 = vmatpush1.msra.mxu0 0.0
    %1022 = vmatprep.subr.mxu0 0.0
    %1023 = vmatpush1.msra.mxu0 0.0
    %1024 = vmatprep.subr.mxu0 0.0
    %1025 = vmatpush1.msra.mxu0 0.0
    %1026 = vmatprep.subr.mxu0 0.0
    %1027 = vmatpush1.msra.mxu0 0.0
    %1028 = vmatprep.subr.mxu0 0.0
    %1029 = vmatpush1.msra.mxu0 0.0
    %1030 = vmatprep.subr.mxu0 0.0
    %1031 = vmatpush1.msra.mxu0 0.0
    %1032 = vmatprep.subr.mxu0 0.0
    %1033 = vmatpush1.msra.mxu0 0.0
    %1034 = vmatprep.subr.mxu0 0.0
    %1035 = vmatpush1.msra.mxu0 0.0
    %1036 = vmatprep.subr.mxu0 0.0
    %1037 = vmatpush1.msra.mxu0 0.0
    %1038 = vmatprep.subr.mxu0 0.0
    %1039 = vmatpush1.msra.mxu0 0.0
    %1040 = vmatprep.subr.mxu0 0.0
    %1041 = vmatpush1.msra.mxu0 0.0
    %1042 = vmatprep.subr.mxu0 0.0
    %1043 = vmatpush1.msra.mxu0 0.0
    %1044 = vmatprep.subr.mxu0 0.0
    %1045 = vmatpush1.msra.mxu0 0.0
    %1046 = vmatprep.subr.mxu0 0.0
    %1047 = vmatpush1.msra.mxu0 0.0
    %1048 = vmatprep.subr.mxu0 0.0
    %1049 = vmatpush1.msra.mxu0 0.0
    %1050 = vmatprep.subr.mxu0 0.0
    %1051 = vmatpush1.msra.mxu0 0.0
    %1052 = vmatprep.subr.mxu0 0.0
    %1053 = vmatpush1.msra.mxu0 0.0
    %1054 = vmatprep.subr.mxu0 0.0
    %1055 = vmatpush1.msra.mxu0 0.0
    %1056 = vmatprep.subr.mxu0 0.0
    %1057 = vmatpush1.msra.mxu0 0.0
    %1058 = vmatprep.mubr.f32.mxu0 0.0
    %1059 = vmatmul.mubr.f32.gmra.mrb[0].mxu0 %v989
    %v1060 = vpop.f32.mrb[0].mxu0
    %v1061 = vadd.f32 0.0, %v1060
    %v1062 = vpop.f32.mrb[0].mxu0
    %1063 = vmatprep.mubr.f32.mxu0 0.0
    %1064 = vmatmul.mubr.f32.gmra.mrb[0].mxu0 %v992
    %v1065 = vpop.f32.mrb[0].mxu0
    %v1066 = vadd.f32 0.0, %v1065
    %v1067 = vpop.f32.mrb[0].mxu0
    %1068 = vdwg.mxu0
    %v1069 = vld [vmem:[#allocation2 + $0x70] sm:$0xff]
    %v1070 = vld [vmem:[#allocation2 + $0x88] sm:$0xff]
    %v1071 = vld [vmem:[#allocation2 + $0xa0] sm:$0xff]
    %v1072 = vld [vmem:[#allocation2 + $0xb8] sm:$0xff]
    %1077 = vrot.lane.b32.xlu0 %v1069, 96
    %v1078 = vpop.permute.xlu0 %1077
    %1079 = vrot.lane.b32.xlu0 %v1070, 96
    %v1080 = vpop.permute.xlu0 %1079
    %1081 = vrot.lane.b32.xlu0 %v1071, 96
    %v1082 = vpop.permute.xlu0 %1081
    %1083 = vrot.lane.b32.xlu0 %v1072, 96
    %v1084 = vpop.permute.xlu0 %1083
    %v1090 = vsel %vm643, %v1061, 0
    %v1093 = vsel %vm643, %v1066, 0
    %1095 = vmatprep.subr.mxu0 0.0
    %1096 = vmatpush1.msra.mxu0 %v1078
    %1097 = vmatprep.subr.mxu0 0.0
    %1098 = vmatpush1.msra.mxu0 %v1080
    %1099 = vmatprep.subr.mxu0 0.0
    %1100 = vmatpush1.msra.mxu0 %v1082
    %1101 = vmatprep.subr.mxu0 0.0
    %1102 = vmatpush1.msra.mxu0 %v1084
    %1103 = vmatprep.subr.mxu0 0.0
    %1104 = vmatpush1.msra.mxu0 0.0
    %1105 = vmatprep.subr.mxu0 0.0
    %1106 = vmatpush1.msra.mxu0 0.0
    %1107 = vmatprep.subr.mxu0 0.0
    %1108 = vmatpush1.msra.mxu0 0.0
    %1109 = vmatprep.subr.mxu0 0.0
    %1110 = vmatpush1.msra.mxu0 0.0
    %1111 = vmatprep.subr.mxu0 0.0
    %1112 = vmatpush1.msra.mxu0 0.0
    %1113 = vmatprep.subr.mxu0 0.0
    %1114 = vmatpush1.msra.mxu0 0.0
    %1115 = vmatprep.subr.mxu0 0.0
    %1116 = vmatpush1.msra.mxu0 0.0
    %1117 = vmatprep.subr.mxu0 0.0
    %1118 = vmatpush1.msra.mxu0 0.0
    %1119 = vmatprep.subr.mxu0 0.0
    %1120 = vmatpush1.msra.mxu0 0.0
    %1121 = vmatprep.subr.mxu0 0.0
    %1122 = vmatpush1.msra.mxu0 0.0
    %1123 = vmatprep.subr.mxu0 0.0
    %1124 = vmatpush1.msra.mxu0 0.0
    %1125 = vmatprep.subr.mxu0 0.0
    %1126 = vmatpush1.msra.mxu0 0.0
    %1127 = vmatprep.subr.mxu0 0.0
    %1128 = vmatpush1.msra.mxu0 0.0
    %1129 = vmatprep.subr.mxu0 0.0
    %1130 = vmatpush1.msra.mxu0 0.0
    %1131 = vmatprep.subr.mxu0 0.0
    %1132 = vmatpush1.msra.mxu0 0.0
    %1133 = vmatprep.subr.mxu0 0.0
    %1134 = vmatpush1.msra.mxu0 0.0
    %1135 = vmatprep.subr.mxu0 0.0
    %1136 = vmatpush1.msra.mxu0 0.0
    %1137 = vmatprep.subr.mxu0 0.0
    %1138 = vmatpush1.msra.mxu0 0.0
    %1139 = vmatprep.subr.mxu0 0.0
    %1140 = vmatpush1.msra.mxu0 0.0
    %1141 = vmatprep.subr.mxu0 0.0
    %1142 = vmatpush1.msra.mxu0 0.0
    %1143 = vmatprep.subr.mxu0 0.0
    %1144 = vmatpush1.msra.mxu0 0.0
    %1145 = vmatprep.subr.mxu0 0.0
    %1146 = vmatpush1.msra.mxu0 0.0
    %1147 = vmatprep.subr.mxu0 0.0
    %1148 = vmatpush1.msra.mxu0 0.0
    %1149 = vmatprep.subr.mxu0 0.0
    %1150 = vmatpush1.msra.mxu0 0.0
    %1151 = vmatprep.subr.mxu0 0.0
    %1152 = vmatpush1.msra.mxu0 0.0
    %1153 = vmatprep.subr.mxu0 0.0
    %1154 = vmatpush1.msra.mxu0 0.0
    %1155 = vmatprep.subr.mxu0 0.0
    %1156 = vmatpush1.msra.mxu0 0.0
    %1157 = vmatprep.subr.mxu0 0.0
    %1158 = vmatpush1.msra.mxu0 0.0
    %1159 = vmatprep.mubr.f32.mxu0 0.0
    %1160 = vmatmul.mubr.f32.gmra.mrb[0].mxu0 %v1090
    %v1161 = vpop.f32.mrb[0].mxu0
    %v1162 = vadd.f32 0.0, %v1161
    %v1163 = vpop.f32.mrb[0].mxu0
    %1164 = vmatprep.mubr.f32.mxu0 0.0
    %1165 = vmatmul.mubr.f32.gmra.mrb[0].mxu0 %v1093
    %v1166 = vpop.f32.mrb[0].mxu0
    %v1167 = vadd.f32 0.0, %v1166
    %v1168 = vpop.f32.mrb[0].mxu0
    %1169 = vdwg.mxu0
    %1174 = vrot.lane.b32.xlu0 %v639, 96
    %v1175 = vpop.permute.xlu0 %1174
    %1176 = vrot.lane.b32.xlu0 %v640, 96
    %v1177 = vpop.permute.xlu0 %1176
    %1178 = vrot.lane.b32.xlu0 %v641, 96
    %v1179 = vpop.permute.xlu0 %1178
    %1180 = vrot.lane.b32.xlu0 %v642, 96
    %v1181 = vpop.permute.xlu0 %1180
    %v1187 = vsel %vm643, %v948, 0
    %v1190 = vsel %vm643, %v953, 0
    %1192 = vmatprep.subr.mxu0 0.0
    %1193 = vmatpush1.msra.mxu0 %v1175
    %1194 = vmatprep.subr.mxu0 0.0
    %1195 = vmatpush1.msra.mxu0 %v1177
    %1196 = vmatprep.subr.mxu0 0.0
    %1197 = vmatpush1.msra.mxu0 %v1179
    %1198 = vmatprep.subr.mxu0 0.0
    %1199 = vmatpush1.msra.mxu0 %v1181
    %1200 = vmatprep.subr.mxu0 0.0
    %1201 = vmatpush1.msra.mxu0 0.0
    %1202 = vmatprep.subr.mxu0 0.0
    %1203 = vmatpush1.msra.mxu0 0.0
    %1204 = vmatprep.subr.mxu0 0.0
    %1205 = vmatpush1.msra.mxu0 0.0
    %1206 = vmatprep.subr.mxu0 0.0
    %1207 = vmatpush1.msra.mxu0 0.0
    %1208 = vmatprep.subr.mxu0 0.0
    %1209 = vmatpush1.msra.mxu0 0.0
    %1210 = vmatprep.subr.mxu0 0.0
    %1211 = vmatpush1.msra.mxu0 0.0
    %1212 = vmatprep.subr.mxu0 0.0
    %1213 = vmatpush1.msra.mxu0 0.0
    %1214 = vmatprep.subr.mxu0 0.0
    %1215 = vmatpush1.msra.mxu0 0.0
    %1216 = vmatprep.subr.mxu0 0.0
    %1217 = vmatpush1.msra.mxu0 0.0
    %1218 = vmatprep.subr.mxu0 0.0
    %1219 = vmatpush1.msra.mxu0 0.0
    %1220 = vmatprep.subr.mxu0 0.0
    %1221 = vmatpush1.msra.mxu0 0.0
    %1222 = vmatprep.subr.mxu0 0.0
    %1223 = vmatpush1.msra.mxu0 0.0
    %1224 = vmatprep.subr.mxu0 0.0
    %1225 = vmatpush1.msra.mxu0 0.0
    %1226 = vmatprep.subr.mxu0 0.0
    %1227 = vmatpush1.msra.mxu0 0.0
    %1228 = vmatprep.subr.mxu0 0.0
    %1229 = vmatpush1.msra.mxu0 0.0
    %1230 = vmatprep.subr.mxu0 0.0
    %1231 = vmatpush1.msra.mxu0 0.0
    %1232 = vmatprep.subr.mxu0 0.0
    %1233 = vmatpush1.msra.mxu0 0.0
    %1234 = vmatprep.subr.mxu0 0.0
    %1235 = vmatpush1.msra.mxu0 0.0
    %1236 = vmatprep.subr.mxu0 0.0
    %1237 = vmatpush1.msra.mxu0 0.0
    %1238 = vmatprep.subr.mxu0 0.0
    %1239 = vmatpush1.msra.mxu0 0.0
    %1240 = vmatprep.subr.mxu0 0.0
    %1241 = vmatpush1.msra.mxu0 0.0
    %1242 = vmatprep.subr.mxu0 0.0
    %1243 = vmatpush1.msra.mxu0 0.0
    %1244 = vmatprep.subr.mxu0 0.0
    %1245 = vmatpush1.msra.mxu0 0.0
    %1246 = vmatprep.subr.mxu0 0.0
    %1247 = vmatpush1.msra.mxu0 0.0
    %1248 = vmatprep.subr.mxu0 0.0
    %1249 = vmatpush1.msra.mxu0 0.0
    %1250 = vmatprep.subr.mxu0 0.0
    %1251 = vmatpush1.msra.mxu0 0.0
    %1252 = vmatprep.subr.mxu0 0.0
    %1253 = vmatpush1.msra.mxu0 0.0
    %1254 = vmatprep.subr.mxu0 0.0
    %1255 = vmatpush1.msra.mxu0 0.0
    %1256 = vmatprep.mubr.f32.mxu0 0.0
    %1257 = vmatmul.mubr.f32.gmra.mrb[0].mxu0 %v1187
    %v1258 = vpop.f32.mrb[0].mxu0
    %v1259 = vadd.f32 %v1162, %v1258
    %v1260 = vpop.f32.mrb[0].mxu0
    %1261 = vmatprep.mubr.f32.mxu0 0.0
    %1262 = vmatmul.mubr.f32.gmra.mrb[0].mxu0 %v1190
    %v1263 = vpop.f32.mrb[0].mxu0
    %v1264 = vadd.f32 %v1167, %v1263
    %v1265 = vpop.f32.mrb[0].mxu0
    %1266 = vdwg.mxu0
    %v1267 = vld [vmem:[%s2 + $0x2] sm:$0x1]
    %v1269 = vlaneseq
    %v1270 = vshrl.u32 %v1269, 7
    %v1271 = vsub.s32 0, %v1270
    %v1272 = vrot.slane %v1267, %v1271
    %1273 = vrot.lane.b32.xlu0 %v1272, 96
    %v1274 = vpop.permute.xlu0 %1273
    %v1276 = vadd.f32 %v1259, %v1274
    %v1277 = vadd.f32 %v1264, %v1274
    %v1278 = vtanh.pop %v1276
    %v1279 = vtanh.pop %v1277
    %s1280 = scalar_lea.vmem [#allocation2], 192
    %v1281 = vld [vmem:[%s1280] sm:$0xff]
    %v1282 = vld [vmem:[%s1280 + $0x8] sm:$0xff]
    %v1283 = vld [vmem:[%s1280 + $0x18] sm:$0xff]
    %v1284 = vld [vmem:[%s1280 + $0x20] sm:$0xff]
    %v1285 = vld [vmem:[%s1280 + $0x30] sm:$0xff]
    %v1286 = vld [vmem:[%s1280 + $0x38] sm:$0xff]
    %v1287 = vld [vmem:[%s1280 + $0x48] sm:$0xff]
    %v1288 = vld [vmem:[%s1280 + $0x50] sm:$0xff]
    %v1289 = vld [vmem:[%s1280 + $0x60] sm:$0xff]
    %v1290 = vld [vmem:[%s1280 + $0x68] sm:$0xff]
    %v1291 = vld [vmem:[%s1280 + $0x78] sm:$0xff]
    %v1292 = vld [vmem:[%s1280 + $0x80] sm:$0xff]
    %v1293 = vld [vmem:[%s1280 + $0x90] sm:$0xff]
    %v1294 = vld [vmem:[%s1280 + $0x98] sm:$0xff]
    %v1295 = vld [vmem:[%s1280 + $0xa8] sm:$0xff]
    %v1296 = vld [vmem:[%s1280 + $0xb0] sm:$0xff]
    %s1297 = scalar_lea.vmem %s2, 3
    %v1298 = vld [vmem:[%s1297] sm:$0x3]
    %v1300 = vlaneseq
    %v1301 = vshrl.u32 %v1300, 7
    %v1302 = vsub.s32 0, %v1301
    %v1303 = vrot.slane %v1298, %v1302
    %v1304 = vlaneseq
    %v1305 = vshrl.u32 %v1304, 7
    %v1306 = vsub.s32 1, %v1305
    %v1307 = vrot.slane %v1298, %v1306
    %v1311 = vsel %vm63, %v1278, 0
    %v1314 = vsel %vm63, %v1279, 0
    %1316 = vmatprep.subr.mxu0 %v1282
    %1317 = vmatpush1.msra.mxu0 %v1281
    %1318 = vmatprep.subr.mxu0 %v1284
    %1319 = vmatpush1.msra.mxu0 %v1283
    %1320 = vmatprep.subr.mxu0 %v1286
    %1321 = vmatpush1.msra.mxu0 %v1285
    %1322 = vmatprep.subr.mxu0 %v1288
    %1323 = vmatpush1.msra.mxu0 %v1287
    %1324 = vmatprep.subr.mxu0 %v1290
    %1325 = vmatpush1.msra.mxu0 %v1289
    %1326 = vmatprep.subr.mxu0 %v1292
    %1327 = vmatpush1.msra.mxu0 %v1291
    %1328 = vmatprep.subr.mxu0 %v1294
    %1329 = vmatpush1.msra.mxu0 %v1293
    %1330 = vmatprep.subr.mxu0 %v1296
    %1331 = vmatpush1.msra.mxu0 %v1295
    %1332 = vmatprep.subr.mxu0 0.0
    %1333 = vmatpush1.msra.mxu0 0.0
    %1334 = vmatprep.subr.mxu0 0.0
    %1335 = vmatpush1.msra.mxu0 0.0
    %1336 = vmatprep.subr.mxu0 0.0
    %1337 = vmatpush1.msra.mxu0 0.0
    %1338 = vmatprep.subr.mxu0 0.0
    %1339 = vmatpush1.msra.mxu0 0.0
    %1340 = vmatprep.subr.mxu0 0.0
    %1341 = vmatpush1.msra.mxu0 0.0
    %1342 = vmatprep.subr.mxu0 0.0
    %1343 = vmatpush1.msra.mxu0 0.0
    %1344 = vmatprep.subr.mxu0 0.0
    %1345 = vmatpush1.msra.mxu0 0.0
    %1346 = vmatprep.subr.mxu0 0.0
    %1347 = vmatpush1.msra.mxu0 0.0
    %1348 = vmatprep.subr.mxu0 0.0
    %1349 = vmatpush1.msra.mxu0 0.0
    %1350 = vmatprep.subr.mxu0 0.0
    %1351 = vmatpush1.msra.mxu0 0.0
    %1352 = vmatprep.subr.mxu0 0.0
    %1353 = vmatpush1.msra.mxu0 0.0
    %1354 = vmatprep.subr.mxu0 0.0
    %1355 = vmatpush1.msra.mxu0 0.0
    %1356 = vmatprep.subr.mxu0 0.0
    %1357 = vmatpush1.msra.mxu0 0.0
    %1358 = vmatprep.subr.mxu0 0.0
    %1359 = vmatpush1.msra.mxu0 0.0
    %1360 = vmatprep.subr.mxu0 0.0
    %1361 = vmatpush1.msra.mxu0 0.0
    %1362 = vmatprep.subr.mxu0 0.0
    %1363 = vmatpush1.msra.mxu0 0.0
    %1364 = vmatprep.subr.mxu0 0.0
    %1365 = vmatpush1.msra.mxu0 0.0
    %1366 = vmatprep.subr.mxu0 0.0
    %1367 = vmatpush1.msra.mxu0 0.0
    %1368 = vmatprep.subr.mxu0 0.0
    %1369 = vmatpush1.msra.mxu0 0.0
    %1370 = vmatprep.subr.mxu0 0.0
    %1371 = vmatpush1.msra.mxu0 0.0
    %1372 = vmatprep.subr.mxu0 0.0
    %1373 = vmatpush1.msra.mxu0 0.0
    %1374 = vmatprep.subr.mxu0 0.0
    %1375 = vmatpush1.msra.mxu0 0.0
    %1376 = vmatprep.subr.mxu0 0.0
    %1377 = vmatpush1.msra.mxu0 0.0
    %1378 = vmatprep.subr.mxu0 0.0
    %1379 = vmatpush1.msra.mxu0 0.0
    %1380 = vmatprep.mubr.f32.mxu0 0.0
    %1381 = vmatmul.mubr.f32.gmra.mrb[0].mxu0 %v1311
    %v1382 = vpop.f32.mrb[0].mxu0
    %v1383 = vadd.f32 %v1303, %v1382
    %v1384 = vpop.f32.mrb[0].mxu0
    %v1385 = vadd.f32 %v1307, %v1384
    %1386 = vmatprep.mubr.f32.mxu0 0.0
    %1387 = vmatmul.mubr.f32.gmra.mrb[0].mxu0 %v1314
    %v1388 = vpop.f32.mrb[0].mxu0
    %v1389 = vadd.f32 %v1303, %v1388
    %v1390 = vpop.f32.mrb[0].mxu0
    %v1391 = vadd.f32 %v1307, %v1390
    %1392 = vdwg.mxu0
    %v1393 = vmul.f32 %v1383, 0.35355338
    %v1394 = vmul.f32 %v1389, 0.35355338
    %1397 = vrot.lane.b32.xlu0 %v1383, 64
    %v1398 = vpop.permute.xlu0 %1397
    %1399 = vrot.lane.b32.xlu0 %v1389, 64
    %v1400 = vpop.permute.xlu0 %1399
    %v1403 = vmul.f32 %v1393, %v1398
    %v1404 = vmul.f32 %v1394, %v1400
    %v1406 = vsel %vm63, %v1403, 0
    %v1409 = vsel %vm63, %v1404, 0
    %1411 = vmatprep.subr.mxu0 0.0
    %1412 = vmatpush1.xpose.msra.mxu0 %v166
    %1413 = vmatprep.subr.mxu0 0.0
    %1414 = vmatpush1.xpose.msra.mxu0 0.0
    %1415 = vmatprep.subr.mxu0 0.0
    %1416 = vmatpush1.xpose.msra.mxu0 0.0
    %1417 = vmatprep.subr.mxu0 0.0
    %1418 = vmatpush1.xpose.msra.mxu0 0.0
    %1419 = vmatprep.subr.mxu0 0.0
    %1420 = vmatpush1.xpose.msra.mxu0 0.0
    %1421 = vmatprep.subr.mxu0 0.0
    %1422 = vmatpush1.xpose.msra.mxu0 0.0
    %1423 = vmatprep.subr.mxu0 0.0
    %1424 = vmatpush1.xpose.msra.mxu0 0.0
    %1425 = vmatprep.subr.mxu0 0.0
    %1426 = vmatpush1.xpose.msra.mxu0 0.0
    %1427 = vmatprep.subr.mxu0 0.0
    %1428 = vmatpush1.xpose.msra.mxu0 0.0
    %1429 = vmatprep.subr.mxu0 0.0
    %1430 = vmatpush1.xpose.msra.mxu0 0.0
    %1431 = vmatprep.subr.mxu0 0.0
    %1432 = vmatpush1.xpose.msra.mxu0 0.0
    %1433 = vmatprep.subr.mxu0 0.0
    %1434 = vmatpush1.xpose.msra.mxu0 0.0
    %1435 = vmatprep.subr.mxu0 0.0
    %1436 = vmatpush1.xpose.msra.mxu0 0.0
    %1437 = vmatprep.subr.mxu0 0.0
    %1438 = vmatpush1.xpose.msra.mxu0 0.0
    %1439 = vmatprep.subr.mxu0 0.0
    %1440 = vmatpush1.xpose.msra.mxu0 0.0
    %1441 = vmatprep.subr.mxu0 0.0
    %1442 = vmatpush1.xpose.msra.mxu0 0.0
    %1443 = vmatprep.subr.mxu0 0.0
    %1444 = vmatpush1.xpose.msra.mxu0 0.0
    %1445 = vmatprep.subr.mxu0 0.0
    %1446 = vmatpush1.xpose.msra.mxu0 0.0
    %1447 = vmatprep.subr.mxu0 0.0
    %1448 = vmatpush1.xpose.msra.mxu0 0.0
    %1449 = vmatprep.subr.mxu0 0.0
    %1450 = vmatpush1.xpose.msra.mxu0 0.0
    %1451 = vmatprep.subr.mxu0 0.0
    %1452 = vmatpush1.xpose.msra.mxu0 0.0
    %1453 = vmatprep.subr.mxu0 0.0
    %1454 = vmatpush1.xpose.msra.mxu0 0.0
    %1455 = vmatprep.subr.mxu0 0.0
    %1456 = vmatpush1.xpose.msra.mxu0 0.0
    %1457 = vmatprep.subr.mxu0 0.0
    %1458 = vmatpush1.xpose.msra.mxu0 0.0
    %1459 = vmatprep.subr.mxu0 0.0
    %1460 = vmatpush1.xpose.msra.mxu0 0.0
    %1461 = vmatprep.subr.mxu0 0.0
    %1462 = vmatpush1.xpose.msra.mxu0 0.0
    %1463 = vmatprep.subr.mxu0 0.0
    %1464 = vmatpush1.xpose.msra.mxu0 0.0
    %1465 = vmatprep.subr.mxu0 0.0
    %1466 = vmatpush1.xpose.msra.mxu0 0.0
    %1467 = vmatprep.subr.mxu0 0.0
    %1468 = vmatpush1.xpose.msra.mxu0 0.0
    %1469 = vmatprep.subr.mxu0 0.0
    %1470 = vmatpush1.xpose.msra.mxu0 0.0
    %1471 = vmatprep.subr.mxu0 0.0
    %1472 = vmatpush1.xpose.msra.mxu0 0.0
    %1473 = vmatprep.subr.mxu0 0.0
    %1474 = vmatpush1.xpose.msra.mxu0 0.0
    %1475 = vmatprep.mubr.f32.mxu0 0.0
    %1476 = vmatmul.mubr.f32.gmra.mrb[0].mxu0 %v1406
    %v1477 = vpop.f32.mrb[0].mxu0
    %v1478 = vadd.f32 0.0, %v1477
    %v1479 = vpop.f32.mrb[0].mxu0
    %1480 = vmatprep.mubr.f32.mxu0 0.0
    %1481 = vmatmul.mubr.f32.gmra.mrb[0].mxu0 %v1409
    %v1482 = vpop.f32.mrb[0].mxu0
    %v1483 = vadd.f32 0.0, %v1482
    %v1484 = vpop.f32.mrb[0].mxu0
    %1485 = vdwg.mxu0
    %v1486 = vmul.f32 %v1393, %v1400
    %v1487 = vmul.f32 %v1394, %v1398
    %v1489 = vsel %vm63, %v1486, 0
    %v1492 = vsel %vm63, %v1487, 0
    %1494 = vmatprep.subr.mxu0 0.0
    %1495 = vmatpush1.xpose.msra.mxu0 %v166
    %1496 = vmatprep.subr.mxu0 0.0
    %1497 = vmatpush1.xpose.msra.mxu0 0.0
    %1498 = vmatprep.subr.mxu0 0.0
    %1499 = vmatpush1.xpose.msra.mxu0 0.0
    %1500 = vmatprep.subr.mxu0 0.0
    %1501 = vmatpush1.xpose.msra.mxu0 0.0
    %1502 = vmatprep.subr.mxu0 0.0
    %1503 = vmatpush1.xpose.msra.mxu0 0.0
    %1504 = vmatprep.subr.mxu0 0.0
    %1505 = vmatpush1.xpose.msra.mxu0 0.0
    %1506 = vmatprep.subr.mxu0 0.0
    %1507 = vmatpush1.xpose.msra.mxu0 0.0
    %1508 = vmatprep.subr.mxu0 0.0
    %1509 = vmatpush1.xpose.msra.mxu0 0.0
    %1510 = vmatprep.subr.mxu0 0.0
    %1511 = vmatpush1.xpose.msra.mxu0 0.0
    %1512 = vmatprep.subr.mxu0 0.0
    %1513 = vmatpush1.xpose.msra.mxu0 0.0
    %1514 = vmatprep.subr.mxu0 0.0
    %1515 = vmatpush1.xpose.msra.mxu0 0.0
    %1516 = vmatprep.subr.mxu0 0.0
    %1517 = vmatpush1.xpose.msra.mxu0 0.0
    %1518 = vmatprep.subr.mxu0 0.0
    %1519 = vmatpush1.xpose.msra.mxu0 0.0
    %1520 = vmatprep.subr.mxu0 0.0
    %1521 = vmatpush1.xpose.msra.mxu0 0.0
    %1522 = vmatprep.subr.mxu0 0.0
    %1523 = vmatpush1.xpose.msra.mxu0 0.0
    %1524 = vmatprep.subr.mxu0 0.0
    %1525 = vmatpush1.xpose.msra.mxu0 0.0
    %1526 = vmatprep.subr.mxu0 0.0
    %1527 = vmatpush1.xpose.msra.mxu0 0.0
    %1528 = vmatprep.subr.mxu0 0.0
    %1529 = vmatpush1.xpose.msra.mxu0 0.0
    %1530 = vmatprep.subr.mxu0 0.0
    %1531 = vmatpush1.xpose.msra.mxu0 0.0
    %1532 = vmatprep.subr.mxu0 0.0
    %1533 = vmatpush1.xpose.msra.mxu0 0.0
    %1534 = vmatprep.subr.mxu0 0.0
    %1535 = vmatpush1.xpose.msra.mxu0 0.0
    %1536 = vmatprep.subr.mxu0 0.0
    %1537 = vmatpush1.xpose.msra.mxu0 0.0
    %1538 = vmatprep.subr.mxu0 0.0
    %1539 = vmatpush1.xpose.msra.mxu0 0.0
    %1540 = vmatprep.subr.mxu0 0.0
    %1541 = vmatpush1.xpose.msra.mxu0 0.0
    %1542 = vmatprep.subr.mxu0 0.0
    %1543 = vmatpush1.xpose.msra.mxu0 0.0
    %1544 = vmatprep.subr.mxu0 0.0
    %1545 = vmatpush1.xpose.msra.mxu0 0.0
    %1546 = vmatprep.subr.mxu0 0.0
    %1547 = vmatpush1.xpose.msra.mxu0 0.0
    %1548 = vmatprep.subr.mxu0 0.0
    %1549 = vmatpush1.xpose.msra.mxu0 0.0
    %1550 = vmatprep.subr.mxu0 0.0
    %1551 = vmatpush1.xpose.msra.mxu0 0.0
    %1552 = vmatprep.subr.mxu0 0.0
    %1553 = vmatpush1.xpose.msra.mxu0 0.0
    %1554 = vmatprep.subr.mxu0 0.0
    %1555 = vmatpush1.xpose.msra.mxu0 0.0
    %1556 = vmatprep.subr.mxu0 0.0
    %1557 = vmatpush1.xpose.msra.mxu0 0.0
    %1558 = vmatprep.mubr.f32.mxu0 0.0
    %1559 = vmatmul.mubr.f32.gmra.mrb[0].mxu0 %v1489
    %v1560 = vpop.f32.mrb[0].mxu0
    %v1561 = vadd.f32 0.0, %v1560
    %v1562 = vpop.f32.mrb[0].mxu0
    %1563 = vmatprep.mubr.f32.mxu0 0.0
    %1564 = vmatmul.mubr.f32.gmra.mrb[0].mxu0 %v1492
    %v1565 = vpop.f32.mrb[0].mxu0
    %v1566 = vadd.f32 0.0, %v1565
    %v1567 = vpop.f32.mrb[0].mxu0
    %1568 = vdwg.mxu0
    %v1569 = vmax.f32 %v1478, %v1561
    %v1570 = vmax.f32 %v1483, %v1566
    %v1571 = vsub.f32 %v1478, %v1569
    %v1572 = vsub.f32 %v1483, %v1570
    %v1573 = vmul.f32 %v1571, 1.442695
    %v1574 = vpow.pop %v1573
    %v1575 = vmul.f32 %v1572, 1.442695
    %v1576 = vpow.pop %v1575
    %v1577 = vsub.f32 %v1561, %v1569
    %v1578 = vsub.f32 %v1566, %v1570
    %v1579 = vmul.f32 %v1577, 1.442695
    %v1580 = vpow.pop %v1579
    %v1581 = vmul.f32 %v1578, 1.442695
    %v1582 = vpow.pop %v1581
    %v1583 = vadd.f32 %v1574, %v1580
    %v1584 = vadd.f32 %v1576, %v1582
    %v1585 = vrcp.pop %v1583
    %v1586 = vrcp.pop %v1584
    %v1587 = vmul.f32 %v1574, %v1585
    %v1588 = vmul.f32 %v1576, %v1586
    %v1590 = vsel %vm346, %v1587, 0
    %v1593 = vsel %vm346, %v1588, 0
    %1595 = vmatprep.subr.mxu0 0.0
    %1596 = vmatpush1.msra.mxu0 %v31
    %1597 = vmatprep.subr.mxu0 0.0
    %1598 = vmatpush1.msra.mxu0 0.0
    %1599 = vmatprep.subr.mxu0 0.0
    %1600 = vmatpush1.msra.mxu0 0.0
    %1601 = vmatprep.subr.mxu0 0.0
    %1602 = vmatpush1.msra.mxu0 0.0
    %1603 = vmatprep.subr.mxu0 0.0
    %1604 = vmatpush1.msra.mxu0 0.0
    %1605 = vmatprep.subr.mxu0 0.0
    %1606 = vmatpush1.msra.mxu0 0.0
    %1607 = vmatprep.subr.mxu0 0.0
    %1608 = vmatpush1.msra.mxu0 0.0
    %1609 = vmatprep.subr.mxu0 0.0
    %1610 = vmatpush1.msra.mxu0 0.0
    %1611 = vmatprep.subr.mxu0 0.0
    %1612 = vmatpush1.msra.mxu0 0.0
    %1613 = vmatprep.subr.mxu0 0.0
    %1614 = vmatpush1.msra.mxu0 0.0
    %1615 = vmatprep.subr.mxu0 0.0
    %1616 = vmatpush1.msra.mxu0 0.0
    %1617 = vmatprep.subr.mxu0 0.0
    %1618 = vmatpush1.msra.mxu0 0.0
    %1619 = vmatprep.subr.mxu0 0.0
    %1620 = vmatpush1.msra.mxu0 0.0
    %1621 = vmatprep.subr.mxu0 0.0
    %1622 = vmatpush1.msra.mxu0 0.0
    %1623 = vmatprep.subr.mxu0 0.0
    %1624 = vmatpush1.msra.mxu0 0.0
    %1625 = vmatprep.subr.mxu0 0.0
    %1626 = vmatpush1.msra.mxu0 0.0
    %1627 = vmatprep.subr.mxu0 0.0
    %1628 = vmatpush1.msra.mxu0 0.0
    %1629 = vmatprep.subr.mxu0 0.0
    %1630 = vmatpush1.msra.mxu0 0.0
    %1631 = vmatprep.subr.mxu0 0.0
    %1632 = vmatpush1.msra.mxu0 0.0
    %1633 = vmatprep.subr.mxu0 0.0
    %1634 = vmatpush1.msra.mxu0 0.0
    %1635 = vmatprep.subr.mxu0 0.0
    %1636 = vmatpush1.msra.mxu0 0.0
    %1637 = vmatprep.subr.mxu0 0.0
    %1638 = vmatpush1.msra.mxu0 0.0
    %1639 = vmatprep.subr.mxu0 0.0
    %1640 = vmatpush1.msra.mxu0 0.0
    %1641 = vmatprep.subr.mxu0 0.0
    %1642 = vmatpush1.msra.mxu0 0.0
    %1643 = vmatprep.subr.mxu0 0.0
    %1644 = vmatpush1.msra.mxu0 0.0
    %1645 = vmatprep.subr.mxu0 0.0
    %1646 = vmatpush1.msra.mxu0 0.0
    %1647 = vmatprep.subr.mxu0 0.0
    %1648 = vmatpush1.msra.mxu0 0.0
    %1649 = vmatprep.subr.mxu0 0.0
    %1650 = vmatpush1.msra.mxu0 0.0
    %1651 = vmatprep.subr.mxu0 0.0
    %1652 = vmatpush1.msra.mxu0 0.0
    %1653 = vmatprep.subr.mxu0 0.0
    %1654 = vmatpush1.msra.mxu0 0.0
    %1655 = vmatprep.subr.mxu0 0.0
    %1656 = vmatpush1.msra.mxu0 0.0
    %1657 = vmatprep.subr.mxu0 0.0
    %1658 = vmatpush1.msra.mxu0 0.0
    %1659 = vmatprep.mubr.f32.mxu0 0.0
    %1660 = vmatmul.mubr.f32.gmra.mrb[0].mxu0 %v1590
    %v1661 = vpop.f32.mrb[0].mxu0
    %v1662 = vadd.f32 0.0, %v1661
    %v1663 = vpop.f32.mrb[0].mxu0
    %1664 = vmatprep.mubr.f32.mxu0 0.0
    %1665 = vmatmul.mubr.f32.gmra.mrb[0].mxu0 %v1593
    %v1666 = vpop.f32.mrb[0].mxu0
    %v1667 = vadd.f32 0.0, %v1666
    %v1668 = vpop.f32.mrb[0].mxu0
    %1669 = vdwg.mxu0
    %v1670 = vmul.f32 %v1662, %v1385
    %v1671 = vmul.f32 %v1667, %v1391
    %v1672 = vmul.f32 %v1580, %v1585
    %v1673 = vmul.f32 %v1582, %v1586
    %v1675 = vsel %vm346, %v1672, 0
    %v1678 = vsel %vm346, %v1673, 0
    %1680 = vmatprep.subr.mxu0 0.0
    %1681 = vmatpush1.msra.mxu0 %v31
    %1682 = vmatprep.subr.mxu0 0.0
    %1683 = vmatpush1.msra.mxu0 0.0
    %1684 = vmatprep.subr.mxu0 0.0
    %1685 = vmatpush1.msra.mxu0 0.0
    %1686 = vmatprep.subr.mxu0 0.0
    %1687 = vmatpush1.msra.mxu0 0.0
    %1688 = vmatprep.subr.mxu0 0.0
    %1689 = vmatpush1.msra.mxu0 0.0
    %1690 = vmatprep.subr.mxu0 0.0
    %1691 = vmatpush1.msra.mxu0 0.0
    %1692 = vmatprep.subr.mxu0 0.0
    %1693 = vmatpush1.msra.mxu0 0.0
    %1694 = vmatprep.subr.mxu0 0.0
    %1695 = vmatpush1.msra.mxu0 0.0
    %1696 = vmatprep.subr.mxu0 0.0
    %1697 = vmatpush1.msra.mxu0 0.0
    %1698 = vmatprep.subr.mxu0 0.0
    %1699 = vmatpush1.msra.mxu0 0.0
    %1700 = vmatprep.subr.mxu0 0.0
    %1701 = vmatpush1.msra.mxu0 0.0
    %1702 = vmatprep.subr.mxu0 0.0
    %1703 = vmatpush1.msra.mxu0 0.0
    %1704 = vmatprep.subr.mxu0 0.0
    %1705 = vmatpush1.msra.mxu0 0.0
    %1706 = vmatprep.subr.mxu0 0.0
    %1707 = vmatpush1.msra.mxu0 0.0
    %1708 = vmatprep.subr.mxu0 0.0
    %1709 = vmatpush1.msra.mxu0 0.0
    %1710 = vmatprep.subr.mxu0 0.0
    %1711 = vmatpush1.msra.mxu0 0.0
    %1712 = vmatprep.subr.mxu0 0.0
    %1713 = vmatpush1.msra.mxu0 0.0
    %1714 = vmatprep.subr.mxu0 0.0
    %1715 = vmatpush1.msra.mxu0 0.0
    %1716 = vmatprep.subr.mxu0 0.0
    %1717 = vmatpush1.msra.mxu0 0.0
    %1718 = vmatprep.subr.mxu0 0.0
    %1719 = vmatpush1.msra.mxu0 0.0
    %1720 = vmatprep.subr.mxu0 0.0
    %1721 = vmatpush1.msra.mxu0 0.0
    %1722 = vmatprep.subr.mxu0 0.0
    %1723 = vmatpush1.msra.mxu0 0.0
    %1724 = vmatprep.subr.mxu0 0.0
    %1725 = vmatpush1.msra.mxu0 0.0
    %1726 = vmatprep.subr.mxu0 0.0
    %1727 = vmatpush1.msra.mxu0 0.0
    %1728 = vmatprep.subr.mxu0 0.0
    %1729 = vmatpush1.msra.mxu0 0.0
    %1730 = vmatprep.subr.mxu0 0.0
    %1731 = vmatpush1.msra.mxu0 0.0
    %1732 = vmatprep.subr.mxu0 0.0
    %1733 = vmatpush1.msra.mxu0 0.0
    %1734 = vmatprep.subr.mxu0 0.0
    %1735 = vmatpush1.msra.mxu0 0.0
    %1736 = vmatprep.subr.mxu0 0.0
    %1737 = vmatpush1.msra.mxu0 0.0
    %1738 = vmatprep.subr.mxu0 0.0
    %1739 = vmatpush1.msra.mxu0 0.0
    %1740 = vmatprep.subr.mxu0 0.0
    %1741 = vmatpush1.msra.mxu0 0.0
    %1742 = vmatprep.subr.mxu0 0.0
    %1743 = vmatpush1.msra.mxu0 0.0
    %1744 = vmatprep.mubr.f32.mxu0 0.0
    %1745 = vmatmul.mubr.f32.gmra.mrb[0].mxu0 %v1675
    %v1746 = vpop.f32.mrb[0].mxu0
    %v1747 = vadd.f32 0.0, %v1746
    %v1748 = vpop.f32.mrb[0].mxu0
    %1749 = vmatprep.mubr.f32.mxu0 0.0
    %1750 = vmatmul.mubr.f32.gmra.mrb[0].mxu0 %v1678
    %v1751 = vpop.f32.mrb[0].mxu0
    %v1752 = vadd.f32 0.0, %v1751
    %v1753 = vpop.f32.mrb[0].mxu0
    %1754 = vdwg.mxu0
    %v1755 = vmul.f32 %v1747, %v1391
    %v1756 = vmul.f32 %v1752, %v1385
    %v1757 = vadd.f32 %v1670, %v1755
    %v1758 = vadd.f32 %v1671, %v1756
    %v1759 = vld [vmem:[%s1297 + $0x1] sm:$0x1]
    %v1761 = vlaneseq
    %v1762 = vshrl.u32 %v1761, 7
    %v1763 = vsub.s32 0, %v1762
    %v1764 = vrot.slane %v1759, %v1763
    %1773 = vrot.lane.b32.xlu0 %v1282, 64
    %v1774 = vpop.permute.xlu0 %1773
    %1775 = vrot.lane.b32.xlu0 %v1284, 64
    %v1776 = vpop.permute.xlu0 %1775
    %1777 = vrot.lane.b32.xlu0 %v1286, 64
    %v1778 = vpop.permute.xlu0 %1777
    %1779 = vrot.lane.b32.xlu0 %v1288, 64
    %v1780 = vpop.permute.xlu0 %1779
    %1781 = vrot.lane.b32.xlu0 %v1290, 64
    %v1782 = vpop.permute.xlu0 %1781
    %1783 = vrot.lane.b32.xlu0 %v1292, 64
    %v1784 = vpop.permute.xlu0 %1783
    %1785 = vrot.lane.b32.xlu0 %v1294, 64
    %v1786 = vpop.permute.xlu0 %1785
    %1787 = vrot.lane.b32.xlu0 %v1296, 64
    %v1788 = vpop.permute.xlu0 %1787
    %1797 = vrot.lane.b32.xlu0 %v1764, 64
    %v1798 = vpop.permute.xlu0 %1797
    %v1801 = vsel %vm63, %v1757, 0
    %v1804 = vsel %vm63, %v1758, 0
    %1806 = vmatprep.subr.mxu0 0.0
    %1807 = vmatpush1.msra.mxu0 %v1774
    %1808 = vmatprep.subr.mxu0 0.0
    %1809 = vmatpush1.msra.mxu0 %v1776
    %1810 = vmatprep.subr.mxu0 0.0
    %1811 = vmatpush1.msra.mxu0 %v1778
    %1812 = vmatprep.subr.mxu0 0.0
    %1813 = vmatpush1.msra.mxu0 %v1780
    %1814 = vmatprep.subr.mxu0 0.0
    %1815 = vmatpush1.msra.mxu0 %v1782
    %1816 = vmatprep.subr.mxu0 0.0
    %1817 = vmatpush1.msra.mxu0 %v1784
    %1818 = vmatprep.subr.mxu0 0.0
    %1819 = vmatpush1.msra.mxu0 %v1786
    %1820 = vmatprep.subr.mxu0 0.0
    %1821 = vmatpush1.msra.mxu0 %v1788
    %1822 = vmatprep.subr.mxu0 0.0
    %1823 = vmatpush1.msra.mxu0 0.0
    %1824 = vmatprep.subr.mxu0 0.0
    %1825 = vmatpush1.msra.mxu0 0.0
    %1826 = vmatprep.subr.mxu0 0.0
    %1827 = vmatpush1.msra.mxu0 0.0
    %1828 = vmatprep.subr.mxu0 0.0
    %1829 = vmatpush1.msra.mxu0 0.0
    %1830 = vmatprep.subr.mxu0 0.0
    %1831 = vmatpush1.msra.mxu0 0.0
    %1832 = vmatprep.subr.mxu0 0.0
    %1833 = vmatpush1.msra.mxu0 0.0
    %1834 = vmatprep.subr.mxu0 0.0
    %1835 = vmatpush1.msra.mxu0 0.0
    %1836 = vmatprep.subr.mxu0 0.0
    %1837 = vmatpush1.msra.mxu0 0.0
    %1838 = vmatprep.subr.mxu0 0.0
    %1839 = vmatpush1.msra.mxu0 0.0
    %1840 = vmatprep.subr.mxu0 0.0
    %1841 = vmatpush1.msra.mxu0 0.0
    %1842 = vmatprep.subr.mxu0 0.0
    %1843 = vmatpush1.msra.mxu0 0.0
    %1844 = vmatprep.subr.mxu0 0.0
    %1845 = vmatpush1.msra.mxu0 0.0
    %1846 = vmatprep.subr.mxu0 0.0
    %1847 = vmatpush1.msra.mxu0 0.0
    %1848 = vmatprep.subr.mxu0 0.0
    %1849 = vmatpush1.msra.mxu0 0.0
    %1850 = vmatprep.subr.mxu0 0.0
    %1851 = vmatpush1.msra.mxu0 0.0
    %1852 = vmatprep.subr.mxu0 0.0
    %1853 = vmatpush1.msra.mxu0 0.0
    %1854 = vmatprep.subr.mxu0 0.0
    %1855 = vmatpush1.msra.mxu0 0.0
    %1856 = vmatprep.subr.mxu0 0.0
    %1857 = vmatpush1.msra.mxu0 0.0
    %1858 = vmatprep.subr.mxu0 0.0
    %1859 = vmatpush1.msra.mxu0 0.0
    %1860 = vmatprep.subr.mxu0 0.0
    %1861 = vmatpush1.msra.mxu0 0.0
    %1862 = vmatprep.subr.mxu0 0.0
    %1863 = vmatpush1.msra.mxu0 0.0
    %1864 = vmatprep.subr.mxu0 0.0
    %1865 = vmatpush1.msra.mxu0 0.0
    %1866 = vmatprep.subr.mxu0 0.0
    %1867 = vmatpush1.msra.mxu0 0.0
    %1868 = vmatprep.subr.mxu0 0.0
    %1869 = vmatpush1.msra.mxu0 0.0
    %1870 = vmatprep.mubr.f32.mxu0 0.0
    %1871 = vmatmul.mubr.f32.gmra.mrb[0].mxu0 %v1801
    %v1872 = vpop.f32.mrb[0].mxu0
    %v1873 = vadd.f32 %v1798, %v1872
    %v1874 = vpop.f32.mrb[0].mxu0
    %1875 = vmatprep.mubr.f32.mxu0 0.0
    %1876 = vmatmul.mubr.f32.gmra.mrb[0].mxu0 %v1804
    %v1877 = vpop.f32.mrb[0].mxu0
    %v1878 = vadd.f32 %v1798, %v1877
    %v1879 = vpop.f32.mrb[0].mxu0
    %1880 = vdwg.mxu0
    %v1881 = vld [vmem:[%s1280 + $0x10] sm:$0xff]
    %v1882 = vld [vmem:[%s1280 + $0x28] sm:$0xff]
    %v1883 = vld [vmem:[%s1280 + $0x40] sm:$0xff]
    %v1884 = vld [vmem:[%s1280 + $0x58] sm:$0xff]
    %v1886 = vsel %vm643, %v1873, 0
    %v1889 = vsel %vm643, %v1878, 0
    %1891 = vmatprep.subr.mxu0 0.0
    %1892 = vmatpush1.msra.mxu0 %v1881
    %1893 = vmatprep.subr.mxu0 0.0
    %1894 = vmatpush1.msra.mxu0 %v1882
    %1895 = vmatprep.subr.mxu0 0.0
    %1896 = vmatpush1.msra.mxu0 %v1883
    %1897 = vmatprep.subr.mxu0 0.0
    %1898 = vmatpush1.msra.mxu0 %v1884
    %1899 = vmatprep.subr.mxu0 0.0
    %1900 = vmatpush1.msra.mxu0 0.0
    %1901 = vmatprep.subr.mxu0 0.0
    %1902 = vmatpush1.msra.mxu0 0.0
    %1903 = vmatprep.subr.mxu0 0.0
    %1904 = vmatpush1.msra.mxu0 0.0
    %1905 = vmatprep.subr.mxu0 0.0
    %1906 = vmatpush1.msra.mxu0 0.0
    %1907 = vmatprep.subr.mxu0 0.0
    %1908 = vmatpush1.msra.mxu0 0.0
    %1909 = vmatprep.subr.mxu0 0.0
    %1910 = vmatpush1.msra.mxu0 0.0
    %1911 = vmatprep.subr.mxu0 0.0
    %1912 = vmatpush1.msra.mxu0 0.0
    %1913 = vmatprep.subr.mxu0 0.0
    %1914 = vmatpush1.msra.mxu0 0.0
    %1915 = vmatprep.subr.mxu0 0.0
    %1916 = vmatpush1.msra.mxu0 0.0
    %1917 = vmatprep.subr.mxu0 0.0
    %1918 = vmatpush1.msra.mxu0 0.0
    %1919 = vmatprep.subr.mxu0 0.0
    %1920 = vmatpush1.msra.mxu0 0.0
    %1921 = vmatprep.subr.mxu0 0.0
    %1922 = vmatpush1.msra.mxu0 0.0
    %1923 = vmatprep.subr.mxu0 0.0
    %1924 = vmatpush1.msra.mxu0 0.0
    %1925 = vmatprep.subr.mxu0 0.0
    %1926 = vmatpush1.msra.mxu0 0.0
    %1927 = vmatprep.subr.mxu0 0.0
    %1928 = vmatpush1.msra.mxu0 0.0
    %1929 = vmatprep.subr.mxu0 0.0
    %1930 = vmatpush1.msra.mxu0 0.0
    %1931 = vmatprep.subr.mxu0 0.0
    %1932 = vmatpush1.msra.mxu0 0.0
    %1933 = vmatprep.subr.mxu0 0.0
    %1934 = vmatpush1.msra.mxu0 0.0
    %1935 = vmatprep.subr.mxu0 0.0
    %1936 = vmatpush1.msra.mxu0 0.0
    %1937 = vmatprep.subr.mxu0 0.0
    %1938 = vmatpush1.msra.mxu0 0.0
    %1939 = vmatprep.subr.mxu0 0.0
    %1940 = vmatpush1.msra.mxu0 0.0
    %1941 = vmatprep.subr.mxu0 0.0
    %1942 = vmatpush1.msra.mxu0 0.0
    %1943 = vmatprep.subr.mxu0 0.0
    %1944 = vmatpush1.msra.mxu0 0.0
    %1945 = vmatprep.subr.mxu0 0.0
    %1946 = vmatpush1.msra.mxu0 0.0
    %1947 = vmatprep.subr.mxu0 0.0
    %1948 = vmatpush1.msra.mxu0 0.0
    %1949 = vmatprep.subr.mxu0 0.0
    %1950 = vmatpush1.msra.mxu0 0.0
    %1951 = vmatprep.subr.mxu0 0.0
    %1952 = vmatpush1.msra.mxu0 0.0
    %1953 = vmatprep.subr.mxu0 0.0
    %1954 = vmatpush1.msra.mxu0 0.0
    %1955 = vmatprep.mubr.f32.mxu0 0.0
    %1956 = vmatmul.mubr.f32.gmra.mrb[0].mxu0 %v1886
    %v1957 = vpop.f32.mrb[0].mxu0
    %v1958 = vadd.f32 0.0, %v1957
    %v1959 = vpop.f32.mrb[0].mxu0
    %1960 = vmatprep.mubr.f32.mxu0 0.0
    %1961 = vmatmul.mubr.f32.gmra.mrb[0].mxu0 %v1889
    %v1962 = vpop.f32.mrb[0].mxu0
    %v1963 = vadd.f32 0.0, %v1962
    %v1964 = vpop.f32.mrb[0].mxu0
    %1965 = vdwg.mxu0
    %1966 = vrot.lane.b32.xlu0 %v1873, 96
    %v1967 = vpop.permute.xlu0 %1966
    %1968 = vrot.lane.b32.xlu0 %v1878, 96
    %v1969 = vpop.permute.xlu0 %1968
    %v1971 = vsel %vm643, %v1958, 0
    %v1974 = vsel %vm643, %v1963, 0
    %v1976 = vsel %vm643, %v1967, 0
    %v1978 = vsel %vm643, %v1969, 0
    %1980 = vmatprep.subr.mxu0 0.0
    %1981 = vmatpush1.xpose.msra.mxu0 %v1976
    %1982 = vmatprep.subr.mxu0 0.0
    %1983 = vmatpush1.xpose.msra.mxu0 %v1978
    %1984 = vmatprep.subr.mxu0 0.0
    %1985 = vmatpush1.xpose.msra.mxu0 0.0
    %1986 = vmatprep.subr.mxu0 0.0
    %1987 = vmatpush1.xpose.msra.mxu0 0.0
    %1988 = vmatprep.subr.mxu0 0.0
    %1989 = vmatpush1.xpose.msra.mxu0 0.0
    %1990 = vmatprep.subr.mxu0 0.0
    %1991 = vmatpush1.xpose.msra.mxu0 0.0
    %1992 = vmatprep.subr.mxu0 0.0
    %1993 = vmatpush1.xpose.msra.mxu0 0.0
    %1994 = vmatprep.subr.mxu0 0.0
    %1995 = vmatpush1.xpose.msra.mxu0 0.0
    %1996 = vmatprep.subr.mxu0 0.0
    %1997 = vmatpush1.xpose.msra.mxu0 0.0
    %1998 = vmatprep.subr.mxu0 0.0
    %1999 = vmatpush1.xpose.msra.mxu0 0.0
    %2000 = vmatprep.subr.mxu0 0.0
    %2001 = vmatpush1.xpose.msra.mxu0 0.0
    %2002 = vmatprep.subr.mxu0 0.0
    %2003 = vmatpush1.xpose.msra.mxu0 0.0
    %2004 = vmatprep.subr.mxu0 0.0
    %2005 = vmatpush1.xpose.msra.mxu0 0.0
    %2006 = vmatprep.subr.mxu0 0.0
    %2007 = vmatpush1.xpose.msra.mxu0 0.0
    %2008 = vmatprep.subr.mxu0 0.0
    %2009 = vmatpush1.xpose.msra.mxu0 0.0
    %2010 = vmatprep.subr.mxu0 0.0
    %2011 = vmatpush1.xpose.msra.mxu0 0.0
    %2012 = vmatprep.subr.mxu0 0.0
    %2013 = vmatpush1.xpose.msra.mxu0 0.0
    %2014 = vmatprep.subr.mxu0 0.0
    %2015 = vmatpush1.xpose.msra.mxu0 0.0
    %2016 = vmatprep.subr.mxu0 0.0
    %2017 = vmatpush1.xpose.msra.mxu0 0.0
    %2018 = vmatprep.subr.mxu0 0.0
    %2019 = vmatpush1.xpose.msra.mxu0 0.0
    %2020 = vmatprep.subr.mxu0 0.0
    %2021 = vmatpush1.xpose.msra.mxu0 0.0
    %2022 = vmatprep.subr.mxu0 0.0
    %2023 = vmatpush1.xpose.msra.mxu0 0.0
    %2024 = vmatprep.subr.mxu0 0.0
    %2025 = vmatpush1.xpose.msra.mxu0 0.0
    %2026 = vmatprep.subr.mxu0 0.0
    %2027 = vmatpush1.xpose.msra.mxu0 0.0
    %2028 = vmatprep.subr.mxu0 0.0
    %2029 = vmatpush1.xpose.msra.mxu0 0.0
    %2030 = vmatprep.subr.mxu0 0.0
    %2031 = vmatpush1.xpose.msra.mxu0 0.0
    %2032 = vmatprep.subr.mxu0 0.0
    %2033 = vmatpush1.xpose.msra.mxu0 0.0
    %2034 = vmatprep.subr.mxu0 0.0
    %2035 = vmatpush1.xpose.msra.mxu0 0.0
    %2036 = vmatprep.subr.mxu0 0.0
    %2037 = vmatpush1.xpose.msra.mxu0 0.0
    %2038 = vmatprep.subr.mxu0 0.0
    %2039 = vmatpush1.xpose.msra.mxu0 0.0
    %2040 = vmatprep.subr.mxu0 0.0
    %2041 = vmatpush1.xpose.msra.mxu0 0.0
    %2042 = vmatprep.subr.mxu0 0.0
    %2043 = vmatpush1.xpose.msra.mxu0 0.0
    %2044 = vmatprep.mubr.f32.mxu0 0.0
    %2045 = vmatmul.mubr.f32.gmra.mrb[0].mxu0 %v1971
    %v2046 = vpop.f32.mrb[0].mxu0
    %v2047 = vadd.f32 0.0, %v2046
    %v2048 = vpop.f32.mrb[0].mxu0
    %2049 = vmatprep.mubr.f32.mxu0 0.0
    %2050 = vmatmul.mubr.f32.gmra.mrb[0].mxu0 %v1974
    %v2051 = vpop.f32.mrb[0].mxu0
    %v2052 = vadd.f32 0.0, %v2051
    %v2053 = vpop.f32.mrb[0].mxu0
    %2054 = vdwg.mxu0
    %v2055 = vtanh.pop %v2047
    %v2056 = vtanh.pop %v2052
    %v2057 = vadd.f32 %v2055, %v818
    %v2058 = vadd.f32 %v2056, %v820
    %v2059 = vsel %vm825, %v2057, -inf
    %2060 = vmax.xlane.f32.xlu0 %v2059
    %v2061 = vpop.xlane.xlu0 %2060
    %v2062 = vsel %vm825, %v2058, -inf
    %2063 = vmax.xlane.f32.xlu0 %v2062
    %v2064 = vpop.xlane.xlu0 %2063
    %v2065 = vsub.f32 %v2057, %v2061
    %v2066 = vsub.f32 %v2058, %v2064
    %v2067 = vmul.f32 %v2065, 1.442695
    %v2068 = vpow.pop %v2067
    %v2069 = vmul.f32 %v2066, 1.442695
    %v2070 = vpow.pop %v2069
    %v2071 = vsel %vm825, %v2068, 0.0
    %2072 = vadd.xlane.f32.xlu0 %v2071
    %v2073 = vpop.xlane.xlu0 %2072
    %v2074 = vsel %vm825, %v2070, 0.0
    %2075 = vadd.xlane.f32.xlu0 %v2074
    %v2076 = vpop.xlane.xlu0 %2075
    %v2077 = vrcp.pop %v2073
    %v2078 = vrcp.pop %v2076
    %v2079 = vmul.f32 %v2068, %v2077
    %v2080 = vmul.f32 %v2070, %v2078
    %v2081 = vmax.f32 %v2059, %v2062
    %v2082 = vrot.slane %v2081, 4
    %v2083 = vmax.f32 %v2081, %v2082
    %v2084 = vrot.slane %v2083, 2
    %v2085 = vmax.f32 %v2083, %v2084
    %v2086 = vrot.slane %v2085, 1
    %v2087 = vmax.f32 %v2085, %v2086
    %v2088 = vsub.f32 %v2057, %v2087
    %v2089 = vsub.f32 %v2058, %v2087
    %v2090 = vmul.f32 %v2088, 1.442695
    %v2091 = vpow.pop %v2090
    %v2092 = vmul.f32 %v2089, 1.442695
    %v2093 = vpow.pop %v2092
    %v2094 = vsel %vm825, %v2091, 0.0
    %v2095 = vsel %vm825, %v2093, 0.0
    %v2096 = vadd.f32 %v2094, %v2095
    %v2097 = vrot.slane %v2096, 4
    %v2098 = vadd.f32 %v2096, %v2097
    %v2099 = vrot.slane %v2098, 2
    %v2100 = vadd.f32 %v2098, %v2099
    %v2101 = vrot.slane %v2100, 1
    %v2102 = vadd.f32 %v2100, %v2101
    %v2103 = vrcp.pop %v2102
    %v2104 = vmul.f32 %v2091, %v2103
    %v2105 = vmul.f32 %v2093, %v2103
    %v2109 = vsel %vm825, %v2079, 0
    %v2112 = vsel %vm825, %v2080, 0
    %2114 = vmatprep.subr.mxu0 0.0
    %2115 = vmatpush1.msra.mxu0 %v1967
    %2116 = vmatprep.subr.mxu0 0.0
    %2117 = vmatpush1.msra.mxu0 %v1969
    %2118 = vmatprep.subr.mxu0 0.0
    %2119 = vmatpush1.msra.mxu0 0.0
    %2120 = vmatprep.subr.mxu0 0.0
    %2121 = vmatpush1.msra.mxu0 0.0
    %2122 = vmatprep.subr.mxu0 0.0
    %2123 = vmatpush1.msra.mxu0 0.0
    %2124 = vmatprep.subr.mxu0 0.0
    %2125 = vmatpush1.msra.mxu0 0.0
    %2126 = vmatprep.subr.mxu0 0.0
    %2127 = vmatpush1.msra.mxu0 0.0
    %2128 = vmatprep.subr.mxu0 0.0
    %2129 = vmatpush1.msra.mxu0 0.0
    %2130 = vmatprep.subr.mxu0 0.0
    %2131 = vmatpush1.msra.mxu0 0.0
    %2132 = vmatprep.subr.mxu0 0.0
    %2133 = vmatpush1.msra.mxu0 0.0
    %2134 = vmatprep.subr.mxu0 0.0
    %2135 = vmatpush1.msra.mxu0 0.0
    %2136 = vmatprep.subr.mxu0 0.0
    %2137 = vmatpush1.msra.mxu0 0.0
    %2138 = vmatprep.subr.mxu0 0.0
    %2139 = vmatpush1.msra.mxu0 0.0
    %2140 = vmatprep.subr.mxu0 0.0
    %2141 = vmatpush1.msra.mxu0 0.0
    %2142 = vmatprep.subr.mxu0 0.0
    %2143 = vmatpush1.msra.mxu0 0.0
    %2144 = vmatprep.subr.mxu0 0.0
    %2145 = vmatpush1.msra.mxu0 0.0
    %2146 = vmatprep.subr.mxu0 0.0
    %2147 = vmatpush1.msra.mxu0 0.0
    %2148 = vmatprep.subr.mxu0 0.0
    %2149 = vmatpush1.msra.mxu0 0.0
    %2150 = vmatprep.subr.mxu0 0.0
    %2151 = vmatpush1.msra.mxu0 0.0
    %2152 = vmatprep.subr.mxu0 0.0
    %2153 = vmatpush1.msra.mxu0 0.0
    %2154 = vmatprep.subr.mxu0 0.0
    %2155 = vmatpush1.msra.mxu0 0.0
    %2156 = vmatprep.subr.mxu0 0.0
    %2157 = vmatpush1.msra.mxu0 0.0
    %2158 = vmatprep.subr.mxu0 0.0
    %2159 = vmatpush1.msra.mxu0 0.0
    %2160 = vmatprep.subr.mxu0 0.0
    %2161 = vmatpush1.msra.mxu0 0.0
    %2162 = vmatprep.subr.mxu0 0.0
    %2163 = vmatpush1.msra.mxu0 0.0
    %2164 = vmatprep.subr.mxu0 0.0
    %2165 = vmatpush1.msra.mxu0 0.0
    %2166 = vmatprep.subr.mxu0 0.0
    %2167 = vmatpush1.msra.mxu0 0.0
    %2168 = vmatprep.subr.mxu0 0.0
    %2169 = vmatpush1.msra.mxu0 0.0
    %2170 = vmatprep.subr.mxu0 0.0
    %2171 = vmatpush1.msra.mxu0 0.0
    %2172 = vmatprep.subr.mxu0 0.0
    %2173 = vmatpush1.msra.mxu0 0.0
    %2174 = vmatprep.subr.mxu0 0.0
    %2175 = vmatpush1.msra.mxu0 0.0
    %2176 = vmatprep.subr.mxu0 0.0
    %2177 = vmatpush1.msra.mxu0 0.0
    %2178 = vmatprep.mubr.f32.mxu0 0.0
    %2179 = vmatmul.mubr.f32.gmra.mrb[0].mxu0 %v2109
    %v2180 = vpop.f32.mrb[0].mxu0
    %v2181 = vadd.f32 0.0, %v2180
    %v2182 = vpop.f32.mrb[0].mxu0
    %2183 = vmatprep.mubr.f32.mxu0 0.0
    %2184 = vmatmul.mubr.f32.gmra.mrb[0].mxu0 %v2112
    %v2185 = vpop.f32.mrb[0].mxu0
    %v2186 = vadd.f32 0.0, %v2185
    %v2187 = vpop.f32.mrb[0].mxu0
    %2188 = vdwg.mxu0
    %2189 = vxpose.xlu0.b32.start [1/16] %v2104, 128
    %2190 = vxpose.xlu0.b32.cont [2/16] %v2105, 128
    %2191 = vxpose.xlu0.b32.cont [3/16] 0.0, 128
    %2192 = vxpose.xlu0.b32.cont [4/16] 0.0, 128
    %2193 = vxpose.xlu0.b32.cont [5/16] 0.0, 128
    %2194 = vxpose.xlu0.b32.cont [6/16] 0.0, 128
    %2195 = vxpose.xlu0.b32.cont [7/16] 0.0, 128
    %2196 = vxpose.xlu0.b32.cont [8/16] 0.0, 128
    %2197 = vxpose.xlu0.b32.cont [9/16] 0.0, 128
    %2198 = vxpose.xlu0.b32.cont [10/16] 0.0, 128
    %2199 = vxpose.xlu0.b32.cont [11/16] 0.0, 128
    %2200 = vxpose.xlu0.b32.cont [12/16] 0.0, 128
    %2201 = vxpose.xlu0.b32.cont [13/16] 0.0, 128
    %2202 = vxpose.xlu0.b32.cont [14/16] 0.0, 128
    %2203 = vxpose.xlu0.b32.cont [15/16] 0.0, 128
    %2204 = vxpose.xlu0.b32.end [16/16] 0.0, 128
    %v2205 = vpop.trf.xlu0
    %v2206 = vpop.trf.xlu0
    %v2207 = vpop.trf.xlu0
    %v2208 = vpop.trf.xlu0
    %v2209 = vpop.trf.xlu0
    %v2210 = vpop.trf.xlu0
    %v2211 = vpop.trf.xlu0
    %v2212 = vpop.trf.xlu0
    %v2213 = vpop.trf.xlu0
    %v2214 = vpop.trf.xlu0
    %v2215 = vpop.trf.xlu0
    %v2216 = vpop.trf.xlu0
    %v2217 = vpop.trf.xlu0
    %v2218 = vpop.trf.xlu0
    %v2219 = vpop.trf.xlu0
    %v2220 = vpop.trf.xlu0
    %v2222 = vsel %vm825, %v2205, 0
    %v2225 = vsel %vm825, %v2206, 0
    %2227 = vmatprep.subr.mxu0 0.0
    %2228 = vmatpush1.msra.mxu0 %v1873
    %2229 = vmatprep.subr.mxu0 0.0
    %2230 = vmatpush1.msra.mxu0 %v1878
    %2231 = vmatprep.subr.mxu0 0.0
    %2232 = vmatpush1.msra.mxu0 0.0
    %2233 = vmatprep.subr.mxu0 0.0
    %2234 = vmatpush1.msra.mxu0 0.0
    %2235 = vmatprep.subr.mxu0 0.0
    %2236 = vmatpush1.msra.mxu0 0.0
    %2237 = vmatprep.subr.mxu0 0.0
    %2238 = vmatpush1.msra.mxu0 0.0
    %2239 = vmatprep.subr.mxu0 0.0
    %2240 = vmatpush1.msra.mxu0 0.0
    %2241 = vmatprep.subr.mxu0 0.0
    %2242 = vmatpush1.msra.mxu0 0.0
    %2243 = vmatprep.subr.mxu0 0.0
    %2244 = vmatpush1.msra.mxu0 0.0
    %2245 = vmatprep.subr.mxu0 0.0
    %2246 = vmatpush1.msra.mxu0 0.0
    %2247 = vmatprep.subr.mxu0 0.0
    %2248 = vmatpush1.msra.mxu0 0.0
    %2249 = vmatprep.subr.mxu0 0.0
    %2250 = vmatpush1.msra.mxu0 0.0
    %2251 = vmatprep.subr.mxu0 0.0
    %2252 = vmatpush1.msra.mxu0 0.0
    %2253 = vmatprep.subr.mxu0 0.0
    %2254 = vmatpush1.msra.mxu0 0.0
    %2255 = vmatprep.subr.mxu0 0.0
    %2256 = vmatpush1.msra.mxu0 0.0
    %2257 = vmatprep.subr.mxu0 0.0
    %2258 = vmatpush1.msra.mxu0 0.0
    %2259 = vmatprep.subr.mxu0 0.0
    %2260 = vmatpush1.msra.mxu0 0.0
    %2261 = vmatprep.subr.mxu0 0.0
    %2262 = vmatpush1.msra.mxu0 0.0
    %2263 = vmatprep.subr.mxu0 0.0
    %2264 = vmatpush1.msra.mxu0 0.0
    %2265 = vmatprep.subr.mxu0 0.0
    %2266 = vmatpush1.msra.mxu0 0.0
    %2267 = vmatprep.subr.mxu0 0.0
    %2268 = vmatpush1.msra.mxu0 0.0
    %2269 = vmatprep.subr.mxu0 0.0
    %2270 = vmatpush1.msra.mxu0 0.0
    %2271 = vmatprep.subr.mxu0 0.0
    %2272 = vmatpush1.msra.mxu0 0.0
    %2273 = vmatprep.subr.mxu0 0.0
    %2274 = vmatpush1.msra.mxu0 0.0
    %2275 = vmatprep.subr.mxu0 0.0
    %2276 = vmatpush1.msra.mxu0 0.0
    %2277 = vmatprep.subr.mxu0 0.0
    %2278 = vmatpush1.msra.mxu0 0.0
    %2279 = vmatprep.subr.mxu0 0.0
    %2280 = vmatpush1.msra.mxu0 0.0
    %2281 = vmatprep.subr.mxu0 0.0
    %2282 = vmatpush1.msra.mxu0 0.0
    %2283 = vmatprep.subr.mxu0 0.0
    %2284 = vmatpush1.msra.mxu0 0.0
    %2285 = vmatprep.subr.mxu0 0.0
    %2286 = vmatpush1.msra.mxu0 0.0
    %2287 = vmatprep.subr.mxu0 0.0
    %2288 = vmatpush1.msra.mxu0 0.0
    %2289 = vmatprep.subr.mxu0 0.0
    %2290 = vmatpush1.msra.mxu0 0.0
    %2291 = vmatprep.mubr.f32.mxu0 0.0
    %2292 = vmatmul.mubr.f32.gmra.mrb[0].mxu0 %v2222
    %v2293 = vpop.f32.mrb[0].mxu0
    %v2294 = vadd.f32 0.0, %v2293
    %v2295 = vpop.f32.mrb[0].mxu0
    %2296 = vmatprep.mubr.f32.mxu0 0.0
    %2297 = vmatmul.mubr.f32.gmra.mrb[0].mxu0 %v2225
    %v2298 = vpop.f32.mrb[0].mxu0
    %v2299 = vadd.f32 0.0, %v2298
    %v2300 = vpop.f32.mrb[0].mxu0
    %2301 = vdwg.mxu0
    %v2302 = vld [vmem:[%s1280 + $0x70] sm:$0xff]
    %v2303 = vld [vmem:[%s1280 + $0x88] sm:$0xff]
    %v2304 = vld [vmem:[%s1280 + $0xa0] sm:$0xff]
    %v2305 = vld [vmem:[%s1280 + $0xb8] sm:$0xff]
    %2310 = vrot.lane.b32.xlu0 %v2302, 96
    %v2311 = vpop.permute.xlu0 %2310
    %2312 = vrot.lane.b32.xlu0 %v2303, 96
    %v2313 = vpop.permute.xlu0 %2312
    %2314 = vrot.lane.b32.xlu0 %v2304, 96
    %v2315 = vpop.permute.xlu0 %2314
    %2316 = vrot.lane.b32.xlu0 %v2305, 96
    %v2317 = vpop.permute.xlu0 %2316
    %v2323 = vsel %vm643, %v2294, 0
    %v2326 = vsel %vm643, %v2299, 0
    %2328 = vmatprep.subr.mxu0 0.0
    %2329 = vmatpush1.msra.mxu0 %v2311
    %2330 = vmatprep.subr.mxu0 0.0
    %2331 = vmatpush1.msra.mxu0 %v2313
    %2332 = vmatprep.subr.mxu0 0.0
    %2333 = vmatpush1.msra.mxu0 %v2315
    %2334 = vmatprep.subr.mxu0 0.0
    %2335 = vmatpush1.msra.mxu0 %v2317
    %2336 = vmatprep.subr.mxu0 0.0
    %2337 = vmatpush1.msra.mxu0 0.0
    %2338 = vmatprep.subr.mxu0 0.0
    %2339 = vmatpush1.msra.mxu0 0.0
    %2340 = vmatprep.subr.mxu0 0.0
    %2341 = vmatpush1.msra.mxu0 0.0
    %2342 = vmatprep.subr.mxu0 0.0
    %2343 = vmatpush1.msra.mxu0 0.0
    %2344 = vmatprep.subr.mxu0 0.0
    %2345 = vmatpush1.msra.mxu0 0.0
    %2346 = vmatprep.subr.mxu0 0.0
    %2347 = vmatpush1.msra.mxu0 0.0
    %2348 = vmatprep.subr.mxu0 0.0
    %2349 = vmatpush1.msra.mxu0 0.0
    %2350 = vmatprep.subr.mxu0 0.0
    %2351 = vmatpush1.msra.mxu0 0.0
    %2352 = vmatprep.subr.mxu0 0.0
    %2353 = vmatpush1.msra.mxu0 0.0
    %2354 = vmatprep.subr.mxu0 0.0
    %2355 = vmatpush1.msra.mxu0 0.0
    %2356 = vmatprep.subr.mxu0 0.0
    %2357 = vmatpush1.msra.mxu0 0.0
    %2358 = vmatprep.subr.mxu0 0.0
    %2359 = vmatpush1.msra.mxu0 0.0
    %2360 = vmatprep.subr.mxu0 0.0
    %2361 = vmatpush1.msra.mxu0 0.0
    %2362 = vmatprep.subr.mxu0 0.0
    %2363 = vmatpush1.msra.mxu0 0.0
    %2364 = vmatprep.subr.mxu0 0.0
    %2365 = vmatpush1.msra.mxu0 0.0
    %2366 = vmatprep.subr.mxu0 0.0
    %2367 = vmatpush1.msra.mxu0 0.0
    %2368 = vmatprep.subr.mxu0 0.0
    %2369 = vmatpush1.msra.mxu0 0.0
    %2370 = vmatprep.subr.mxu0 0.0
    %2371 = vmatpush1.msra.mxu0 0.0
    %2372 = vmatprep.subr.mxu0 0.0
    %2373 = vmatpush1.msra.mxu0 0.0
    %2374 = vmatprep.subr.mxu0 0.0
    %2375 = vmatpush1.msra.mxu0 0.0
    %2376 = vmatprep.subr.mxu0 0.0
    %2377 = vmatpush1.msra.mxu0 0.0
    %2378 = vmatprep.subr.mxu0 0.0
    %2379 = vmatpush1.msra.mxu0 0.0
    %2380 = vmatprep.subr.mxu0 0.0
    %2381 = vmatpush1.msra.mxu0 0.0
    %2382 = vmatprep.subr.mxu0 0.0
    %2383 = vmatpush1.msra.mxu0 0.0
    %2384 = vmatprep.subr.mxu0 0.0
    %2385 = vmatpush1.msra.mxu0 0.0
    %2386 = vmatprep.subr.mxu0 0.0
    %2387 = vmatpush1.msra.mxu0 0.0
    %2388 = vmatprep.subr.mxu0 0.0
    %2389 = vmatpush1.msra.mxu0 0.0
    %2390 = vmatprep.subr.mxu0 0.0
    %2391 = vmatpush1.msra.mxu0 0.0
    %2392 = vmatprep.mubr.f32.mxu0 0.0
    %2393 = vmatmul.mubr.f32.gmra.mrb[0].mxu0 %v2323
    %v2394 = vpop.f32.mrb[0].mxu0
    %v2395 = vadd.f32 0.0, %v2394
    %v2396 = vpop.f32.mrb[0].mxu0
    %2397 = vmatprep.mubr.f32.mxu0 0.0
    %2398 = vmatmul.mubr.f32.gmra.mrb[0].mxu0 %v2326
    %v2399 = vpop.f32.mrb[0].mxu0
    %v2400 = vadd.f32 0.0, %v2399
    %v2401 = vpop.f32.mrb[0].mxu0
    %2402 = vdwg.mxu0
    %2407 = vrot.lane.b32.xlu0 %v1881, 96
    %v2408 = vpop.permute.xlu0 %2407
    %2409 = vrot.lane.b32.xlu0 %v1882, 96
    %v2410 = vpop.permute.xlu0 %2409
    %2411 = vrot.lane.b32.xlu0 %v1883, 96
    %v2412 = vpop.permute.xlu0 %2411
    %2413 = vrot.lane.b32.xlu0 %v1884, 96
    %v2414 = vpop.permute.xlu0 %2413
    %v2420 = vsel %vm643, %v2181, 0
    %v2423 = vsel %vm643, %v2186, 0
    %2425 = vmatprep.subr.mxu0 0.0
    %2426 = vmatpush1.msra.mxu0 %v2408
    %2427 = vmatprep.subr.mxu0 0.0
    %2428 = vmatpush1.msra.mxu0 %v2410
    %2429 = vmatprep.subr.mxu0 0.0
    %2430 = vmatpush1.msra.mxu0 %v2412
    %2431 = vmatprep.subr.mxu0 0.0
    %2432 = vmatpush1.msra.mxu0 %v2414
    %2433 = vmatprep.subr.mxu0 0.0
    %2434 = vmatpush1.msra.mxu0 0.0
    %2435 = vmatprep.subr.mxu0 0.0
    %2436 = vmatpush1.msra.mxu0 0.0
    %2437 = vmatprep.subr.mxu0 0.0
    %2438 = vmatpush1.msra.mxu0 0.0
    %2439 = vmatprep.subr.mxu0 0.0
    %2440 = vmatpush1.msra.mxu0 0.0
    %2441 = vmatprep.subr.mxu0 0.0
    %2442 = vmatpush1.msra.mxu0 0.0
    %2443 = vmatprep.subr.mxu0 0.0
    %2444 = vmatpush1.msra.mxu0 0.0
    %2445 = vmatprep.subr.mxu0 0.0
    %2446 = vmatpush1.msra.mxu0 0.0
    %2447 = vmatprep.subr.mxu0 0.0
    %2448 = vmatpush1.msra.mxu0 0.0
    %2449 = vmatprep.subr.mxu0 0.0
    %2450 = vmatpush1.msra.mxu0 0.0
    %2451 = vmatprep.subr.mxu0 0.0
    %2452 = vmatpush1.msra.mxu0 0.0
    %2453 = vmatprep.subr.mxu0 0.0
    %2454 = vmatpush1.msra.mxu0 0.0
    %2455 = vmatprep.subr.mxu0 0.0
    %2456 = vmatpush1.msra.mxu0 0.0
    %2457 = vmatprep.subr.mxu0 0.0
    %2458 = vmatpush1.msra.mxu0 0.0
    %2459 = vmatprep.subr.mxu0 0.0
    %2460 = vmatpush1.msra.mxu0 0.0
    %2461 = vmatprep.subr.mxu0 0.0
    %2462 = vmatpush1.msra.mxu0 0.0
    %2463 = vmatprep.subr.mxu0 0.0
    %2464 = vmatpush1.msra.mxu0 0.0
    %2465 = vmatprep.subr.mxu0 0.0
    %2466 = vmatpush1.msra.mxu0 0.0
    %2467 = vmatprep.subr.mxu0 0.0
    %2468 = vmatpush1.msra.mxu0 0.0
    %2469 = vmatprep.subr.mxu0 0.0
    %2470 = vmatpush1.msra.mxu0 0.0
    %2471 = vmatprep.subr.mxu0 0.0
    %2472 = vmatpush1.msra.mxu0 0.0
    %2473 = vmatprep.subr.mxu0 0.0
    %2474 = vmatpush1.msra.mxu0 0.0
    %2475 = vmatprep.subr.mxu0 0.0
    %2476 = vmatpush1.msra.mxu0 0.0
    %2477 = vmatprep.subr.mxu0 0.0
    %2478 = vmatpush1.msra.mxu0 0.0
    %2479 = vmatprep.subr.mxu0 0.0
    %2480 = vmatpush1.msra.mxu0 0.0
    %2481 = vmatprep.subr.mxu0 0.0
    %2482 = vmatpush1.msra.mxu0 0.0
    %2483 = vmatprep.subr.mxu0 0.0
    %2484 = vmatpush1.msra.mxu0 0.0
    %2485 = vmatprep.subr.mxu0 0.0
    %2486 = vmatpush1.msra.mxu0 0.0
    %2487 = vmatprep.subr.mxu0 0.0
    %2488 = vmatpush1.msra.mxu0 0.0
    %2489 = vmatprep.mubr.f32.mxu0 0.0
    %2490 = vmatmul.mubr.f32.gmra.mrb[0].mxu0 %v2420
    %v2491 = vpop.f32.mrb[0].mxu0
    %v2492 = vadd.f32 %v2395, %v2491
    %v2493 = vpop.f32.mrb[0].mxu0
    %2494 = vmatprep.mubr.f32.mxu0 0.0
    %2495 = vmatmul.mubr.f32.gmra.mrb[0].mxu0 %v2423
    %v2496 = vpop.f32.mrb[0].mxu0
    %v2497 = vadd.f32 %v2400, %v2496
    %v2498 = vpop.f32.mrb[0].mxu0
    %2499 = vdwg.mxu0
    %v2500 = vld [vmem:[%s1297 + $0x2] sm:$0x1]
    %v2502 = vlaneseq
    %v2503 = vshrl.u32 %v2502, 7
    %v2504 = vsub.s32 0, %v2503
    %v2505 = vrot.slane %v2500, %v2504
    %2506 = vrot.lane.b32.xlu0 %v2505, 96
    %v2507 = vpop.permute.xlu0 %2506
    %v2509 = vadd.f32 %v2492, %v2507
    %v2510 = vadd.f32 %v2497, %v2507
    %v2511 = vtanh.pop %v2509
    %v2512 = vtanh.pop %v2510
    %s2513 = scalar_lea.vmem [#allocation2], 384
    %v2514 = vld [vmem:[%s2513] sm:$0xff]
    %v2515 = vld [vmem:[%s2513 + $0x8] sm:$0xff]
    %v2516 = vld [vmem:[%s2513 + $0x18] sm:$0xff]
    %v2517 = vld [vmem:[%s2513 + $0x20] sm:$0xff]
    %v2518 = vld [vmem:[%s2513 + $0x30] sm:$0xff]
    %v2519 = vld [vmem:[%s2513 + $0x38] sm:$0xff]
    %v2520 = vld [vmem:[%s2513 + $0x48] sm:$0xff]
    %v2521 = vld [vmem:[%s2513 + $0x50] sm:$0xff]
    %v2522 = vld [vmem:[%s2513 + $0x60] sm:$0xff]
    %v2523 = vld [vmem:[%s2513 + $0x68] sm:$0xff]
    %v2524 = vld [vmem:[%s2513 + $0x78] sm:$0xff]
    %v2525 = vld [vmem:[%s2513 + $0x80] sm:$0xff]
    %v2526 = vld [vmem:[%s2513 + $0x90] sm:$0xff]
    %v2527 = vld [vmem:[%s2513 + $0x98] sm:$0xff]
    %v2528 = vld [vmem:[%s2513 + $0xa8] sm:$0xff]
    %v2529 = vld [vmem:[%s2513 + $0xb0] sm:$0xff]
    %s2530 = scalar_lea.vmem %s2, 6
    %v2531 = vld [vmem:[%s2530] sm:$0x3]
    %v2533 = vlaneseq
    %v2534 = vshrl.u32 %v2533, 7
    %v2535 = vsub.s32 0, %v2534
    %v2536 = vrot.slane %v2531, %v2535
    %v2537 = vlaneseq
    %v2538 = vshrl.u32 %v2537, 7
    %v2539 = vsub.s32 1, %v2538
    %v2540 = vrot.slane %v2531, %v2539
    %v2544 = vsel %vm63, %v2511, 0
    %v2547 = vsel %vm63, %v2512, 0
    %2549 = vmatprep.subr.mxu0 %v2515
    %2550 = vmatpush1.msra.mxu0 %v2514
    %2551 = vmatprep.subr.mxu0 %v2517
    %2552 = vmatpush1.msra.mxu0 %v2516
    %2553 = vmatprep.subr.mxu0 %v2519
    %2554 = vmatpush1.msra.mxu0 %v2518
    %2555 = vmatprep.subr.mxu0 %v2521
    %2556 = vmatpush1.msra.mxu0 %v2520
    %2557 = vmatprep.subr.mxu0 %v2523
    %2558 = vmatpush1.msra.mxu0 %v2522
    %2559 = vmatprep.subr.mxu0 %v2525
    %2560 = vmatpush1.msra.mxu0 %v2524
    %2561 = vmatprep.subr.mxu0 %v2527
    %2562 = vmatpush1.msra.mxu0 %v2526
    %2563 = vmatprep.subr.mxu0 %v2529
    %2564 = vmatpush1.msra.mxu0 %v2528
    %2565 = vmatprep.subr.mxu0 0.0
    %2566 = vmatpush1.msra.mxu0 0.0
    %2567 = vmatprep.subr.mxu0 0.0
    %2568 = vmatpush1.msra.mxu0 0.0
    %2569 = vmatprep.subr.mxu0 0.0
    %2570 = vmatpush1.msra.mxu0 0.0
    %2571 = vmatprep.subr.mxu0 0.0
    %2572 = vmatpush1.msra.mxu0 0.0
    %2573 = vmatprep.subr.mxu0 0.0
    %2574 = vmatpush1.msra.mxu0 0.0
    %2575 = vmatprep.subr.mxu0 0.0
    %2576 = vmatpush1.msra.mxu0 0.0
    %2577 = vmatprep.subr.mxu0 0.0
    %2578 = vmatpush1.msra.mxu0 0.0
    %2579 = vmatprep.subr.mxu0 0.0
    %2580 = vmatpush1.msra.mxu0 0.0
    %2581 = vmatprep.subr.mxu0 0.0
    %2582 = vmatpush1.msra.mxu0 0.0
    %2583 = vmatprep.subr.mxu0 0.0
    %2584 = vmatpush1.msra.mxu0 0.0
    %2585 = vmatprep.subr.mxu0 0.0
    %2586 = vmatpush1.msra.mxu0 0.0
    %2587 = vmatprep.subr.mxu0 0.0
    %2588 = vmatpush1.msra.mxu0 0.0
    %2589 = vmatprep.subr.mxu0 0.0
    %2590 = vmatpush1.msra.mxu0 0.0
    %2591 = vmatprep.subr.mxu0 0.0
    %2592 = vmatpush1.msra.mxu0 0.0
    %2593 = vmatprep.subr.mxu0 0.0
    %2594 = vmatpush1.msra.mxu0 0.0
    %2595 = vmatprep.subr.mxu0 0.0
    %2596 = vmatpush1.msra.mxu0 0.0
    %2597 = vmatprep.subr.mxu0 0.0
    %2598 = vmatpush1.msra.mxu0 0.0
    %2599 = vmatprep.subr.mxu0 0.0
    %2600 = vmatpush1.msra.mxu0 0.0
    %2601 = vmatprep.subr.mxu0 0.0
    %2602 = vmatpush1.msra.mxu0 0.0
    %2603 = vmatprep.subr.mxu0 0.0
    %2604 = vmatpush1.msra.mxu0 0.0
    %2605 = vmatprep.subr.mxu0 0.0
    %2606 = vmatpush1.msra.mxu0 0.0
    %2607 = vmatprep.subr.mxu0 0.0
    %2608 = vmatpush1.msra.mxu0 0.0
    %2609 = vmatprep.subr.mxu0 0.0
    %2610 = vmatpush1.msra.mxu0 0.0
    %2611 = vmatprep.subr.mxu0 0.0
    %2612 = vmatpush1.msra.mxu0 0.0
    %2613 = vmatprep.mubr.f32.mxu0 0.0
    %2614 = vmatmul.mubr.f32.gmra.mrb[0].mxu0 %v2544
    %v2615 = vpop.f32.mrb[0].mxu0
    %v2616 = vadd.f32 %v2536, %v2615
    %v2617 = vpop.f32.mrb[0].mxu0
    %v2618 = vadd.f32 %v2540, %v2617
    %2619 = vmatprep.mubr.f32.mxu0 0.0
    %2620 = vmatmul.mubr.f32.gmra.mrb[0].mxu0 %v2547
    %v2621 = vpop.f32.mrb[0].mxu0
    %v2622 = vadd.f32 %v2536, %v2621
    %v2623 = vpop.f32.mrb[0].mxu0
    %v2624 = vadd.f32 %v2540, %v2623
    %2625 = vdwg.mxu0
    %v2626 = vmul.f32 %v2616, 0.35355338
    %v2627 = vmul.f32 %v2622, 0.35355338
    %2630 = vrot.lane.b32.xlu0 %v2616, 64
    %v2631 = vpop.permute.xlu0 %2630
    %2632 = vrot.lane.b32.xlu0 %v2622, 64
    %v2633 = vpop.permute.xlu0 %2632
    %v2636 = vmul.f32 %v2626, %v2631
    %v2637 = vmul.f32 %v2627, %v2633
    %v2639 = vsel %vm63, %v2636, 0
    %v2642 = vsel %vm63, %v2637, 0
    %2644 = vmatprep.subr.mxu0 0.0
    %2645 = vmatpush1.xpose.msra.mxu0 %v166
    %2646 = vmatprep.subr.mxu0 0.0
    %2647 = vmatpush1.xpose.msra.mxu0 0.0
    %2648 = vmatprep.subr.mxu0 0.0
    %2649 = vmatpush1.xpose.msra.mxu0 0.0
    %2650 = vmatprep.subr.mxu0 0.0
    %2651 = vmatpush1.xpose.msra.mxu0 0.0
    %2652 = vmatprep.subr.mxu0 0.0
    %2653 = vmatpush1.xpose.msra.mxu0 0.0
    %2654 = vmatprep.subr.mxu0 0.0
    %2655 = vmatpush1.xpose.msra.mxu0 0.0
    %2656 = vmatprep.subr.mxu0 0.0
    %2657 = vmatpush1.xpose.msra.mxu0 0.0
    %2658 = vmatprep.subr.mxu0 0.0
    %2659 = vmatpush1.xpose.msra.mxu0 0.0
    %2660 = vmatprep.subr.mxu0 0.0
    %2661 = vmatpush1.xpose.msra.mxu0 0.0
    %2662 = vmatprep.subr.mxu0 0.0
    %2663 = vmatpush1.xpose.msra.mxu0 0.0
    %2664 = vmatprep.subr.mxu0 0.0
    %2665 = vmatpush1.xpose.msra.mxu0 0.0
    %2666 = vmatprep.subr.mxu0 0.0
    %2667 = vmatpush1.xpose.msra.mxu0 0.0
    %2668 = vmatprep.subr.mxu0 0.0
    %2669 = vmatpush1.xpose.msra.mxu0 0.0
    %2670 = vmatprep.subr.mxu0 0.0
    %2671 = vmatpush1.xpose.msra.mxu0 0.0
    %2672 = vmatprep.subr.mxu0 0.0
    %2673 = vmatpush1.xpose.msra.mxu0 0.0
    %2674 = vmatprep.subr.mxu0 0.0
    %2675 = vmatpush1.xpose.msra.mxu0 0.0
    %2676 = vmatprep.subr.mxu0 0.0
    %2677 = vmatpush1.xpose.msra.mxu0 0.0
    %2678 = vmatprep.subr.mxu0 0.0
    %2679 = vmatpush1.xpose.msra.mxu0 0.0
    %2680 = vmatprep.subr.mxu0 0.0
    %2681 = vmatpush1.xpose.msra.mxu0 0.0
    %2682 = vmatprep.subr.mxu0 0.0
    %2683 = vmatpush1.xpose.msra.mxu0 0.0
    %2684 = vmatprep.subr.mxu0 0.0
    %2685 = vmatpush1.xpose.msra.mxu0 0.0
    %2686 = vmatprep.subr.mxu0 0.0
    %2687 = vmatpush1.xpose.msra.mxu0 0.0
    %2688 = vmatprep.subr.mxu0 0.0
    %2689 = vmatpush1.xpose.msra.mxu0 0.0
    %2690 = vmatprep.subr.mxu0 0.0
    %2691 = vmatpush1.xpose.msra.mxu0 0.0
    %2692 = vmatprep.subr.mxu0 0.0
    %2693 = vmatpush1.xpose.msra.mxu0 0.0
    %2694 = vmatprep.subr.mxu0 0.0
    %2695 = vmatpush1.xpose.msra.mxu0 0.0
    %2696 = vmatprep.subr.mxu0 0.0
    %2697 = vmatpush1.xpose.msra.mxu0 0.0
    %2698 = vmatprep.subr.mxu0 0.0
    %2699 = vmatpush1.xpose.msra.mxu0 0.0
    %2700 = vmatprep.subr.mxu0 0.0
    %2701 = vmatpush1.xpose.msra.mxu0 0.0
    %2702 = vmatprep.subr.mxu0 0.0
    %2703 = vmatpush1.xpose.msra.mxu0 0.0
    %2704 = vmatprep.subr.mxu0 0.0
    %2705 = vmatpush1.xpose.msra.mxu0 0.0
    %2706 = vmatprep.subr.mxu0 0.0
    %2707 = vmatpush1.xpose.msra.mxu0 0.0
    %2708 = vmatprep.mubr.f32.mxu0 0.0
    %2709 = vmatmul.mubr.f32.gmra.mrb[0].mxu0 %v2639
    %v2710 = vpop.f32.mrb[0].mxu0
    %v2711 = vadd.f32 0.0, %v2710
    %v2712 = vpop.f32.mrb[0].mxu0
    %2713 = vmatprep.mubr.f32.mxu0 0.0
    %2714 = vmatmul.mubr.f32.gmra.mrb[0].mxu0 %v2642
    %v2715 = vpop.f32.mrb[0].mxu0
    %v2716 = vadd.f32 0.0, %v2715
    %v2717 = vpop.f32.mrb[0].mxu0
    %2718 = vdwg.mxu0
    %v2719 = vmul.f32 %v2626, %v2633
    %v2720 = vmul.f32 %v2627, %v2631
    %v2722 = vsel %vm63, %v2719, 0
    %v2725 = vsel %vm63, %v2720, 0
    %2727 = vmatprep.subr.mxu0 0.0
    %2728 = vmatpush1.xpose.msra.mxu0 %v166
    %2729 = vmatprep.subr.mxu0 0.0
    %2730 = vmatpush1.xpose.msra.mxu0 0.0
    %2731 = vmatprep.subr.mxu0 0.0
    %2732 = vmatpush1.xpose.msra.mxu0 0.0
    %2733 = vmatprep.subr.mxu0 0.0
    %2734 = vmatpush1.xpose.msra.mxu0 0.0
    %2735 = vmatprep.subr.mxu0 0.0
    %2736 = vmatpush1.xpose.msra.mxu0 0.0
    %2737 = vmatprep.subr.mxu0 0.0
    %2738 = vmatpush1.xpose.msra.mxu0 0.0
    %2739 = vmatprep.subr.mxu0 0.0
    %2740 = vmatpush1.xpose.msra.mxu0 0.0
    %2741 = vmatprep.subr.mxu0 0.0
    %2742 = vmatpush1.xpose.msra.mxu0 0.0
    %2743 = vmatprep.subr.mxu0 0.0
    %2744 = vmatpush1.xpose.msra.mxu0 0.0
    %2745 = vmatprep.subr.mxu0 0.0
    %2746 = vmatpush1.xpose.msra.mxu0 0.0
    %2747 = vmatprep.subr.mxu0 0.0
    %2748 = vmatpush1.xpose.msra.mxu0 0.0
    %2749 = vmatprep.subr.mxu0 0.0
    %2750 = vmatpush1.xpose.msra.mxu0 0.0
    %2751 = vmatprep.subr.mxu0 0.0
    %2752 = vmatpush1.xpose.msra.mxu0 0.0
    %2753 = vmatprep.subr.mxu0 0.0
    %2754 = vmatpush1.xpose.msra.mxu0 0.0
    %2755 = vmatprep.subr.mxu0 0.0
    %2756 = vmatpush1.xpose.msra.mxu0 0.0
    %2757 = vmatprep.subr.mxu0 0.0
    %2758 = vmatpush1.xpose.msra.mxu0 0.0
    %2759 = vmatprep.subr.mxu0 0.0
    %2760 = vmatpush1.xpose.msra.mxu0 0.0
    %2761 = vmatprep.subr.mxu0 0.0
    %2762 = vmatpush1.xpose.msra.mxu0 0.0
    %2763 = vmatprep.subr.mxu0 0.0
    %2764 = vmatpush1.xpose.msra.mxu0 0.0
    %2765 = vmatprep.subr.mxu0 0.0
    %2766 = vmatpush1.xpose.msra.mxu0 0.0
    %2767 = vmatprep.subr.mxu0 0.0
    %2768 = vmatpush1.xpose.msra.mxu0 0.0
    %2769 = vmatprep.subr.mxu0 0.0
    %2770 = vmatpush1.xpose.msra.mxu0 0.0
    %2771 = vmatprep.subr.mxu0 0.0
    %2772 = vmatpush1.xpose.msra.mxu0 0.0
    %2773 = vmatprep.subr.mxu0 0.0
    %2774 = vmatpush1.xpose.msra.mxu0 0.0
    %2775 = vmatprep.subr.mxu0 0.0
    %2776 = vmatpush1.xpose.msra.mxu0 0.0
    %2777 = vmatprep.subr.mxu0 0.0
    %2778 = vmatpush1.xpose.msra.mxu0 0.0
    %2779 = vmatprep.subr.mxu0 0.0
    %2780 = vmatpush1.xpose.msra.mxu0 0.0
    %2781 = vmatprep.subr.mxu0 0.0
    %2782 = vmatpush1.xpose.msra.mxu0 0.0
    %2783 = vmatprep.subr.mxu0 0.0
    %2784 = vmatpush1.xpose.msra.mxu0 0.0
    %2785 = vmatprep.subr.mxu0 0.0
    %2786 = vmatpush1.xpose.msra.mxu0 0.0
    %2787 = vmatprep.subr.mxu0 0.0
    %2788 = vmatpush1.xpose.msra.mxu0 0.0
    %2789 = vmatprep.subr.mxu0 0.0
    %2790 = vmatpush1.xpose.msra.mxu0 0.0
    %2791 = vmatprep.mubr.f32.mxu0 0.0
    %2792 = vmatmul.mubr.f32.gmra.mrb[0].mxu0 %v2722
    %v2793 = vpop.f32.mrb[0].mxu0
    %v2794 = vadd.f32 0.0, %v2793
    %v2795 = vpop.f32.mrb[0].mxu0
    %2796 = vmatprep.mubr.f32.mxu0 0.0
    %2797 = vmatmul.mubr.f32.gmra.mrb[0].mxu0 %v2725
    %v2798 = vpop.f32.mrb[0].mxu0
    %v2799 = vadd.f32 0.0, %v2798
    %v2800 = vpop.f32.mrb[0].mxu0
    %2801 = vdwg.mxu0
    %v2802 = vmax.f32 %v2711, %v2794
    %v2803 = vmax.f32 %v2716, %v2799
    %v2804 = vsub.f32 %v2711, %v2802
    %v2805 = vsub.f32 %v2716, %v2803
    %v2806 = vmul.f32 %v2804, 1.442695
    %v2807 = vpow.pop %v2806
    %v2808 = vmul.f32 %v2805, 1.442695
    %v2809 = vpow.pop %v2808
    %v2810 = vsub.f32 %v2794, %v2802
    %v2811 = vsub.f32 %v2799, %v2803
    %v2812 = vmul.f32 %v2810, 1.442695
    %v2813 = vpow.pop %v2812
    %v2814 = vmul.f32 %v2811, 1.442695
    %v2815 = vpow.pop %v2814
    %v2816 = vadd.f32 %v2807, %v2813
    %v2817 = vadd.f32 %v2809, %v2815
    %v2818 = vrcp.pop %v2816
    %v2819 = vrcp.pop %v2817
    %v2820 = vmul.f32 %v2807, %v2818
    %v2821 = vmul.f32 %v2809, %v2819
    %v2823 = vsel %vm346, %v2820, 0
    %v2826 = vsel %vm346, %v2821, 0
    %2828 = vmatprep.subr.mxu0 0.0
    %2829 = vmatpush1.msra.mxu0 %v31
    %2830 = vmatprep.subr.mxu0 0.0
    %2831 = vmatpush1.msra.mxu0 0.0
    %2832 = vmatprep.subr.mxu0 0.0
    %2833 = vmatpush1.msra.mxu0 0.0
    %2834 = vmatprep.subr.mxu0 0.0
    %2835 = vmatpush1.msra.mxu0 0.0
    %2836 = vmatprep.subr.mxu0 0.0
    %2837 = vmatpush1.msra.mxu0 0.0
    %2838 = vmatprep.subr.mxu0 0.0
    %2839 = vmatpush1.msra.mxu0 0.0
    %2840 = vmatprep.subr.mxu0 0.0
    %2841 = vmatpush1.msra.mxu0 0.0
    %2842 = vmatprep.subr.mxu0 0.0
    %2843 = vmatpush1.msra.mxu0 0.0
    %2844 = vmatprep.subr.mxu0 0.0
    %2845 = vmatpush1.msra.mxu0 0.0
    %2846 = vmatprep.subr.mxu0 0.0
    %2847 = vmatpush1.msra.mxu0 0.0
    %2848 = vmatprep.subr.mxu0 0.0
    %2849 = vmatpush1.msra.mxu0 0.0
    %2850 = vmatprep.subr.mxu0 0.0
    %2851 = vmatpush1.msra.mxu0 0.0
    %2852 = vmatprep.subr.mxu0 0.0
    %2853 = vmatpush1.msra.mxu0 0.0
    %2854 = vmatprep.subr.mxu0 0.0
    %2855 = vmatpush1.msra.mxu0 0.0
    %2856 = vmatprep.subr.mxu0 0.0
    %2857 = vmatpush1.msra.mxu0 0.0
    %2858 = vmatprep.subr.mxu0 0.0
    %2859 = vmatpush1.msra.mxu0 0.0
    %2860 = vmatprep.subr.mxu0 0.0
    %2861 = vmatpush1.msra.mxu0 0.0
    %2862 = vmatprep.subr.mxu0 0.0
    %2863 = vmatpush1.msra.mxu0 0.0
    %2864 = vmatprep.subr.mxu0 0.0
    %2865 = vmatpush1.msra.mxu0 0.0
    %2866 = vmatprep.subr.mxu0 0.0
    %2867 = vmatpush1.msra.mxu0 0.0
    %2868 = vmatprep.subr.mxu0 0.0
    %2869 = vmatpush1.msra.mxu0 0.0
    %2870 = vmatprep.subr.mxu0 0.0
    %2871 = vmatpush1.msra.mxu0 0.0
    %2872 = vmatprep.subr.mxu0 0.0
    %2873 = vmatpush1.msra.mxu0 0.0
    %2874 = vmatprep.subr.mxu0 0.0
    %2875 = vmatpush1.msra.mxu0 0.0
    %2876 = vmatprep.subr.mxu0 0.0
    %2877 = vmatpush1.msra.mxu0 0.0
    %2878 = vmatprep.subr.mxu0 0.0
    %2879 = vmatpush1.msra.mxu0 0.0
    %2880 = vmatprep.subr.mxu0 0.0
    %2881 = vmatpush1.msra.mxu0 0.0
    %2882 = vmatprep.subr.mxu0 0.0
    %2883 = vmatpush1.msra.mxu0 0.0
    %2884 = vmatprep.subr.mxu0 0.0
    %2885 = vmatpush1.msra.mxu0 0.0
    %2886 = vmatprep.subr.mxu0 0.0
    %2887 = vmatpush1.msra.mxu0 0.0
    %2888 = vmatprep.subr.mxu0 0.0
    %2889 = vmatpush1.msra.mxu0 0.0
    %2890 = vmatprep.subr.mxu0 0.0
    %2891 = vmatpush1.msra.mxu0 0.0
    %2892 = vmatprep.mubr.f32.mxu0 0.0
    %2893 = vmatmul.mubr.f32.gmra.mrb[0].mxu0 %v2823
    %v2894 = vpop.f32.mrb[0].mxu0
    %v2895 = vadd.f32 0.0, %v2894
    %v2896 = vpop.f32.mrb[0].mxu0
    %2897 = vmatprep.mubr.f32.mxu0 0.0
    %2898 = vmatmul.mubr.f32.gmra.mrb[0].mxu0 %v2826
    %v2899 = vpop.f32.mrb[0].mxu0
    %v2900 = vadd.f32 0.0, %v2899
    %v2901 = vpop.f32.mrb[0].mxu0
    %2902 = vdwg.mxu0
    %v2903 = vmul.f32 %v2895, %v2618
    %v2904 = vmul.f32 %v2900, %v2624
    %v2905 = vmul.f32 %v2813, %v2818
    %v2906 = vmul.f32 %v2815, %v2819
    %v2908 = vsel %vm346, %v2905, 0
    %v2911 = vsel %vm346, %v2906, 0
    %2913 = vmatprep.subr.mxu0 0.0
    %2914 = vmatpush1.msra.mxu0 %v31
    %2915 = vmatprep.subr.mxu0 0.0
    %2916 = vmatpush1.msra.mxu0 0.0
    %2917 = vmatprep.subr.mxu0 0.0
    %2918 = vmatpush1.msra.mxu0 0.0
    %2919 = vmatprep.subr.mxu0 0.0
    %2920 = vmatpush1.msra.mxu0 0.0
    %2921 = vmatprep.subr.mxu0 0.0
    %2922 = vmatpush1.msra.mxu0 0.0
    %2923 = vmatprep.subr.mxu0 0.0
    %2924 = vmatpush1.msra.mxu0 0.0
    %2925 = vmatprep.subr.mxu0 0.0
    %2926 = vmatpush1.msra.mxu0 0.0
    %2927 = vmatprep.subr.mxu0 0.0
    %2928 = vmatpush1.msra.mxu0 0.0
    %2929 = vmatprep.subr.mxu0 0.0
    %2930 = vmatpush1.msra.mxu0 0.0
    %2931 = vmatprep.subr.mxu0 0.0
    %2932 = vmatpush1.msra.mxu0 0.0
    %2933 = vmatprep.subr.mxu0 0.0
    %2934 = vmatpush1.msra.mxu0 0.0
    %2935 = vmatprep.subr.mxu0 0.0
    %2936 = vmatpush1.msra.mxu0 0.0
    %2937 = vmatprep.subr.mxu0 0.0
    %2938 = vmatpush1.msra.mxu0 0.0
    %2939 = vmatprep.subr.mxu0 0.0
    %2940 = vmatpush1.msra.mxu0 0.0
    %2941 = vmatprep.subr.mxu0 0.0
    %2942 = vmatpush1.msra.mxu0 0.0
    %2943 = vmatprep.subr.mxu0 0.0
    %2944 = vmatpush1.msra.mxu0 0.0
    %2945 = vmatprep.subr.mxu0 0.0
    %2946 = vmatpush1.msra.mxu0 0.0
    %2947 = vmatprep.subr.mxu0 0.0
    %2948 = vmatpush1.msra.mxu0 0.0
    %2949 = vmatprep.subr.mxu0 0.0
    %2950 = vmatpush1.msra.mxu0 0.0
    %2951 = vmatprep.subr.mxu0 0.0
    %2952 = vmatpush1.msra.mxu0 0.0
    %2953 = vmatprep.subr.mxu0 0.0
    %2954 = vmatpush1.msra.mxu0 0.0
    %2955 = vmatprep.subr.mxu0 0.0
    %2956 = vmatpush1.msra.mxu0 0.0
    %2957 = vmatprep.subr.mxu0 0.0
    %2958 = vmatpush1.msra.mxu0 0.0
    %2959 = vmatprep.subr.mxu0 0.0
    %2960 = vmatpush1.msra.mxu0 0.0
    %2961 = vmatprep.subr.mxu0 0.0
    %2962 = vmatpush1.msra.mxu0 0.0
    %2963 = vmatprep.subr.mxu0 0.0
    %2964 = vmatpush1.msra.mxu0 0.0
    %2965 = vmatprep.subr.mxu0 0.0
    %2966 = vmatpush1.msra.mxu0 0.0
    %2967 = vmatprep.subr.mxu0 0.0
    %2968 = vmatpush1.msra.mxu0 0.0
    %2969 = vmatprep.subr.mxu0 0.0
    %2970 = vmatpush1.msra.mxu0 0.0
    %2971 = vmatprep.subr.mxu0 0.0
    %2972 = vmatpush1.msra.mxu0 0.0
    %2973 = vmatprep.subr.mxu0 0.0
    %2974 = vmatpush1.msra.mxu0 0.0
    %2975 = vmatprep.subr.mxu0 0.0
    %2976 = vmatpush1.msra.mxu0 0.0
    %2977 = vmatprep.mubr.f32.mxu0 0.0
    %2978 = vmatmul.mubr.f32.gmra.mrb[0].mxu0 %v2908
    %v2979 = vpop.f32.mrb[0].mxu0
    %v2980 = vadd.f32 0.0, %v2979
    %v2981 = vpop.f32.mrb[0].mxu0
    %2982 = vmatprep.mubr.f32.mxu0 0.0
    %2983 = vmatmul.mubr.f32.gmra.mrb[0].mxu0 %v2911
    %v2984 = vpop.f32.mrb[0].mxu0
    %v2985 = vadd.f32 0.0, %v2984
    %v2986 = vpop.f32.mrb[0].mxu0
    %2987 = vdwg.mxu0
    %v2988 = vmul.f32 %v2980, %v2624
    %v2989 = vmul.f32 %v2985, %v2618
    %v2990 = vadd.f32 %v2903, %v2988
    %v2991 = vadd.f32 %v2904, %v2989
    %v2992 = vld [vmem:[%s2530 + $0x1] sm:$0x1]
    %v2994 = vlaneseq
    %v2995 = vshrl.u32 %v2994, 7
    %v2996 = vsub.s32 0, %v2995
    %v2997 = vrot.slane %v2992, %v2996
    %3006 = vrot.lane.b32.xlu0 %v2515, 64
    %v3007 = vpop.permute.xlu0 %3006
    %3008 = vrot.lane.b32.xlu0 %v2517, 64
    %v3009 = vpop.permute.xlu0 %3008
    %3010 = vrot.lane.b32.xlu0 %v2519, 64
    %v3011 = vpop.permute.xlu0 %3010
    %3012 = vrot.lane.b32.xlu0 %v2521, 64
    %v3013 = vpop.permute.xlu0 %3012
    %3014 = vrot.lane.b32.xlu0 %v2523, 64
    %v3015 = vpop.permute.xlu0 %3014
    %3016 = vrot.lane.b32.xlu0 %v2525, 64
    %v3017 = vpop.permute.xlu0 %3016
    %3018 = vrot.lane.b32.xlu0 %v2527, 64
    %v3019 = vpop.permute.xlu0 %3018
    %3020 = vrot.lane.b32.xlu0 %v2529, 64
    %v3021 = vpop.permute.xlu0 %3020
    %3030 = vrot.lane.b32.xlu0 %v2997, 64
    %v3031 = vpop.permute.xlu0 %3030
    %v3034 = vsel %vm63, %v2990, 0
    %v3037 = vsel %vm63, %v2991, 0
    %3039 = vmatprep.subr.mxu0 0.0
    %3040 = vmatpush1.msra.mxu0 %v3007
    %3041 = vmatprep.subr.mxu0 0.0
    %3042 = vmatpush1.msra.mxu0 %v3009
    %3043 = vmatprep.subr.mxu0 0.0
    %3044 = vmatpush1.msra.mxu0 %v3011
    %3045 = vmatprep.subr.mxu0 0.0
    %3046 = vmatpush1.msra.mxu0 %v3013
    %3047 = vmatprep.subr.mxu0 0.0
    %3048 = vmatpush1.msra.mxu0 %v3015
    %3049 = vmatprep.subr.mxu0 0.0
    %3050 = vmatpush1.msra.mxu0 %v3017
    %3051 = vmatprep.subr.mxu0 0.0
    %3052 = vmatpush1.msra.mxu0 %v3019
    %3053 = vmatprep.subr.mxu0 0.0
    %3054 = vmatpush1.msra.mxu0 %v3021
    %3055 = vmatprep.subr.mxu0 0.0
    %3056 = vmatpush1.msra.mxu0 0.0
    %3057 = vmatprep.subr.mxu0 0.0
    %3058 = vmatpush1.msra.mxu0 0.0
    %3059 = vmatprep.subr.mxu0 0.0
    %3060 = vmatpush1.msra.mxu0 0.0
    %3061 = vmatprep.subr.mxu0 0.0
    %3062 = vmatpush1.msra.mxu0 0.0
    %3063 = vmatprep.subr.mxu0 0.0
    %3064 = vmatpush1.msra.mxu0 0.0
    %3065 = vmatprep.subr.mxu0 0.0
    %3066 = vmatpush1.msra.mxu0 0.0
    %3067 = vmatprep.subr.mxu0 0.0
    %3068 = vmatpush1.msra.mxu0 0.0
    %3069 = vmatprep.subr.mxu0 0.0
    %3070 = vmatpush1.msra.mxu0 0.0
    %3071 = vmatprep.subr.mxu0 0.0
    %3072 = vmatpush1.msra.mxu0 0.0
    %3073 = vmatprep.subr.mxu0 0.0
    %3074 = vmatpush1.msra.mxu0 0.0
    %3075 = vmatprep.subr.mxu0 0.0
    %3076 = vmatpush1.msra.mxu0 0.0
    %3077 = vmatprep.subr.mxu0 0.0
    %3078 = vmatpush1.msra.mxu0 0.0
    %3079 = vmatprep.subr.mxu0 0.0
    %3080 = vmatpush1.msra.mxu0 0.0
    %3081 = vmatprep.subr.mxu0 0.0
    %3082 = vmatpush1.msra.mxu0 0.0
    %3083 = vmatprep.subr.mxu0 0.0
    %3084 = vmatpush1.msra.mxu0 0.0
    %3085 = vmatprep.subr.mxu0 0.0
    %3086 = vmatpush1.msra.mxu0 0.0
    %3087 = vmatprep.subr.mxu0 0.0
    %3088 = vmatpush1.msra.mxu0 0.0
    %3089 = vmatprep.subr.mxu0 0.0
    %3090 = vmatpush1.msra.mxu0 0.0
    %3091 = vmatprep.subr.mxu0 0.0
    %3092 = vmatpush1.msra.mxu0 0.0
    %3093 = vmatprep.subr.mxu0 0.0
    %3094 = vmatpush1.msra.mxu0 0.0
    %3095 = vmatprep.subr.mxu0 0.0
    %3096 = vmatpush1.msra.mxu0 0.0
    %3097 = vmatprep.subr.mxu0 0.0
    %3098 = vmatpush1.msra.mxu0 0.0
    %3099 = vmatprep.subr.mxu0 0.0
    %3100 = vmatpush1.msra.mxu0 0.0
    %3101 = vmatprep.subr.mxu0 0.0
    %3102 = vmatpush1.msra.mxu0 0.0
    %3103 = vmatprep.mubr.f32.mxu0 0.0
    %3104 = vmatmul.mubr.f32.gmra.mrb[0].mxu0 %v3034
    %v3105 = vpop.f32.mrb[0].mxu0
    %v3106 = vadd.f32 %v3031, %v3105
    %v3107 = vpop.f32.mrb[0].mxu0
    %3108 = vmatprep.mubr.f32.mxu0 0.0
    %3109 = vmatmul.mubr.f32.gmra.mrb[0].mxu0 %v3037
    %v3110 = vpop.f32.mrb[0].mxu0
    %v3111 = vadd.f32 %v3031, %v3110
    %v3112 = vpop.f32.mrb[0].mxu0
    %3113 = vdwg.mxu0
    %v3114 = vld [vmem:[%s2513 + $0x10] sm:$0xff]
    %v3115 = vld [vmem:[%s2513 + $0x28] sm:$0xff]
    %v3116 = vld [vmem:[%s2513 + $0x40] sm:$0xff]
    %v3117 = vld [vmem:[%s2513 + $0x58] sm:$0xff]
    %v3119 = vsel %vm643, %v3106, 0
    %v3122 = vsel %vm643, %v3111, 0
    %3124 = vmatprep.subr.mxu0 0.0
    %3125 = vmatpush1.msra.mxu0 %v3114
    %3126 = vmatprep.subr.mxu0 0.0
    %3127 = vmatpush1.msra.mxu0 %v3115
    %3128 = vmatprep.subr.mxu0 0.0
    %3129 = vmatpush1.msra.mxu0 %v3116
    %3130 = vmatprep.subr.mxu0 0.0
    %3131 = vmatpush1.msra.mxu0 %v3117
    %3132 = vmatprep.subr.mxu0 0.0
    %3133 = vmatpush1.msra.mxu0 0.0
    %3134 = vmatprep.subr.mxu0 0.0
    %3135 = vmatpush1.msra.mxu0 0.0
    %3136 = vmatprep.subr.mxu0 0.0
    %3137 = vmatpush1.msra.mxu0 0.0
    %3138 = vmatprep.subr.mxu0 0.0
    %3139 = vmatpush1.msra.mxu0 0.0
    %3140 = vmatprep.subr.mxu0 0.0
    %3141 = vmatpush1.msra.mxu0 0.0
    %3142 = vmatprep.subr.mxu0 0.0
    %3143 = vmatpush1.msra.mxu0 0.0
    %3144 = vmatprep.subr.mxu0 0.0
    %3145 = vmatpush1.msra.mxu0 0.0
    %3146 = vmatprep.subr.mxu0 0.0
    %3147 = vmatpush1.msra.mxu0 0.0
    %3148 = vmatprep.subr.mxu0 0.0
    %3149 = vmatpush1.msra.mxu0 0.0
    %3150 = vmatprep.subr.mxu0 0.0
    %3151 = vmatpush1.msra.mxu0 0.0
    %3152 = vmatprep.subr.mxu0 0.0
    %3153 = vmatpush1.msra.mxu0 0.0
    %3154 = vmatprep.subr.mxu0 0.0
    %3155 = vmatpush1.msra.mxu0 0.0
    %3156 = vmatprep.subr.mxu0 0.0
    %3157 = vmatpush1.msra.mxu0 0.0
    %3158 = vmatprep.subr.mxu0 0.0
    %3159 = vmatpush1.msra.mxu0 0.0
    %3160 = vmatprep.subr.mxu0 0.0
    %3161 = vmatpush1.msra.mxu0 0.0
    %3162 = vmatprep.subr.mxu0 0.0
    %3163 = vmatpush1.msra.mxu0 0.0
    %3164 = vmatprep.subr.mxu0 0.0
    %3165 = vmatpush1.msra.mxu0 0.0
    %3166 = vmatprep.subr.mxu0 0.0
    %3167 = vmatpush1.msra.mxu0 0.0
    %3168 = vmatprep.subr.mxu0 0.0
    %3169 = vmatpush1.msra.mxu0 0.0
    %3170 = vmatprep.subr.mxu0 0.0
    %3171 = vmatpush1.msra.mxu0 0.0
    %3172 = vmatprep.subr.mxu0 0.0
    %3173 = vmatpush1.msra.mxu0 0.0
    %3174 = vmatprep.subr.mxu0 0.0
    %3175 = vmatpush1.msra.mxu0 0.0
    %3176 = vmatprep.subr.mxu0 0.0
    %3177 = vmatpush1.msra.mxu0 0.0
    %3178 = vmatprep.subr.mxu0 0.0
    %3179 = vmatpush1.msra.mxu0 0.0
    %3180 = vmatprep.subr.mxu0 0.0
    %3181 = vmatpush1.msra.mxu0 0.0
    %3182 = vmatprep.subr.mxu0 0.0
    %3183 = vmatpush1.msra.mxu0 0.0
    %3184 = vmatprep.subr.mxu0 0.0
    %3185 = vmatpush1.msra.mxu0 0.0
    %3186 = vmatprep.subr.mxu0 0.0
    %3187 = vmatpush1.msra.mxu0 0.0
    %3188 = vmatprep.mubr.f32.mxu0 0.0
    %3189 = vmatmul.mubr.f32.gmra.mrb[0].mxu0 %v3119
    %v3190 = vpop.f32.mrb[0].mxu0
    %v3191 = vadd.f32 0.0, %v3190
    %v3192 = vpop.f32.mrb[0].mxu0
    %3193 = vmatprep.mubr.f32.mxu0 0.0
    %3194 = vmatmul.mubr.f32.gmra.mrb[0].mxu0 %v3122
    %v3195 = vpop.f32.mrb[0].mxu0
    %v3196 = vadd.f32 0.0, %v3195
    %v3197 = vpop.f32.mrb[0].mxu0
    %3198 = vdwg.mxu0
    %3199 = vrot.lane.b32.xlu0 %v3106, 96
    %v3200 = vpop.permute.xlu0 %3199
    %3201 = vrot.lane.b32.xlu0 %v3111, 96
    %v3202 = vpop.permute.xlu0 %3201
    %v3204 = vsel %vm643, %v3191, 0
    %v3207 = vsel %vm643, %v3196, 0
    %v3209 = vsel %vm643, %v3200, 0
    %v3211 = vsel %vm643, %v3202, 0
    %3213 = vmatprep.subr.mxu0 0.0
    %3214 = vmatpush1.xpose.msra.mxu0 %v3209
    %3215 = vmatprep.subr.mxu0 0.0
    %3216 = vmatpush1.xpose.msra.mxu0 %v3211
    %3217 = vmatprep.subr.mxu0 0.0
    %3218 = vmatpush1.xpose.msra.mxu0 0.0
    %3219 = vmatprep.subr.mxu0 0.0
    %3220 = vmatpush1.xpose.msra.mxu0 0.0
    %3221 = vmatprep.subr.mxu0 0.0
    %3222 = vmatpush1.xpose.msra.mxu0 0.0
    %3223 = vmatprep.subr.mxu0 0.0
    %3224 = vmatpush1.xpose.msra.mxu0 0.0
    %3225 = vmatprep.subr.mxu0 0.0
    %3226 = vmatpush1.xpose.msra.mxu0 0.0
    %3227 = vmatprep.subr.mxu0 0.0
    %3228 = vmatpush1.xpose.msra.mxu0 0.0
    %3229 = vmatprep.subr.mxu0 0.0
    %3230 = vmatpush1.xpose.msra.mxu0 0.0
    %3231 = vmatprep.subr.mxu0 0.0
    %3232 = vmatpush1.xpose.msra.mxu0 0.0
    %3233 = vmatprep.subr.mxu0 0.0
    %3234 = vmatpush1.xpose.msra.mxu0 0.0
    %3235 = vmatprep.subr.mxu0 0.0
    %3236 = vmatpush1.xpose.msra.mxu0 0.0
    %3237 = vmatprep.subr.mxu0 0.0
    %3238 = vmatpush1.xpose.msra.mxu0 0.0
    %3239 = vmatprep.subr.mxu0 0.0
    %3240 = vmatpush1.xpose.msra.mxu0 0.0
    %3241 = vmatprep.subr.mxu0 0.0
    %3242 = vmatpush1.xpose.msra.mxu0 0.0
    %3243 = vmatprep.subr.mxu0 0.0
    %3244 = vmatpush1.xpose.msra.mxu0 0.0
    %3245 = vmatprep.subr.mxu0 0.0
    %3246 = vmatpush1.xpose.msra.mxu0 0.0
    %3247 = vmatprep.subr.mxu0 0.0
    %3248 = vmatpush1.xpose.msra.mxu0 0.0
    %3249 = vmatprep.subr.mxu0 0.0
    %3250 = vmatpush1.xpose.msra.mxu0 0.0
    %3251 = vmatprep.subr.mxu0 0.0
    %3252 = vmatpush1.xpose.msra.mxu0 0.0
    %3253 = vmatprep.subr.mxu0 0.0
    %3254 = vmatpush1.xpose.msra.mxu0 0.0
    %3255 = vmatprep.subr.mxu0 0.0
    %3256 = vmatpush1.xpose.msra.mxu0 0.0
    %3257 = vmatprep.subr.mxu0 0.0
    %3258 = vmatpush1.xpose.msra.mxu0 0.0
    %3259 = vmatprep.subr.mxu0 0.0
    %3260 = vmatpush1.xpose.msra.mxu0 0.0
    %3261 = vmatprep.subr.mxu0 0.0
    %3262 = vmatpush1.xpose.msra.mxu0 0.0
    %3263 = vmatprep.subr.mxu0 0.0
    %3264 = vmatpush1.xpose.msra.mxu0 0.0
    %3265 = vmatprep.subr.mxu0 0.0
    %3266 = vmatpush1.xpose.msra.mxu0 0.0
    %3267 = vmatprep.subr.mxu0 0.0
    %3268 = vmatpush1.xpose.msra.mxu0 0.0
    %3269 = vmatprep.subr.mxu0 0.0
    %3270 = vmatpush1.xpose.msra.mxu0 0.0
    %3271 = vmatprep.subr.mxu0 0.0
    %3272 = vmatpush1.xpose.msra.mxu0 0.0
    %3273 = vmatprep.subr.mxu0 0.0
    %3274 = vmatpush1.xpose.msra.mxu0 0.0
    %3275 = vmatprep.subr.mxu0 0.0
    %3276 = vmatpush1.xpose.msra.mxu0 0.0
    %3277 = vmatprep.mubr.f32.mxu0 0.0
    %3278 = vmatmul.mubr.f32.gmra.mrb[0].mxu0 %v3204
    %v3279 = vpop.f32.mrb[0].mxu0
    %v3280 = vadd.f32 0.0, %v3279
    %v3281 = vpop.f32.mrb[0].mxu0
    %3282 = vmatprep.mubr.f32.mxu0 0.0
    %3283 = vmatmul.mubr.f32.gmra.mrb[0].mxu0 %v3207
    %v3284 = vpop.f32.mrb[0].mxu0
    %v3285 = vadd.f32 0.0, %v3284
    %v3286 = vpop.f32.mrb[0].mxu0
    %3287 = vdwg.mxu0
    %v3288 = vtanh.pop %v3280
    %v3289 = vtanh.pop %v3285
    %v3290 = vadd.f32 %v3288, %v818
    %v3291 = vadd.f32 %v3289, %v820
    %v3292 = vsel %vm825, %v3290, -inf
    %3293 = vmax.xlane.f32.xlu0 %v3292
    %v3294 = vpop.xlane.xlu0 %3293
    %v3295 = vsel %vm825, %v3291, -inf
    %3296 = vmax.xlane.f32.xlu0 %v3295
    %v3297 = vpop.xlane.xlu0 %3296
    %v3298 = vsub.f32 %v3290, %v3294
    %v3299 = vsub.f32 %v3291, %v3297
    %v3300 = vmul.f32 %v3298, 1.442695
    %v3301 = vpow.pop %v3300
    %v3302 = vmul.f32 %v3299, 1.442695
    %v3303 = vpow.pop %v3302
    %v3304 = vsel %vm825, %v3301, 0.0
    %3305 = vadd.xlane.f32.xlu0 %v3304
    %v3306 = vpop.xlane.xlu0 %3305
    %v3307 = vsel %vm825, %v3303, 0.0
    %3308 = vadd.xlane.f32.xlu0 %v3307
    %v3309 = vpop.xlane.xlu0 %3308
    %v3310 = vrcp.pop %v3306
    %v3311 = vrcp.pop %v3309
    %v3312 = vmul.f32 %v3301, %v3310
    %v3313 = vmul.f32 %v3303, %v3311
    %v3314 = vmax.f32 %v3292, %v3295
    %v3315 = vrot.slane %v3314, 4
    %v3316 = vmax.f32 %v3314, %v3315
    %v3317 = vrot.slane %v3316, 2
    %v3318 = vmax.f32 %v3316, %v3317
    %v3319 = vrot.slane %v3318, 1
    %v3320 = vmax.f32 %v3318, %v3319
    %v3321 = vsub.f32 %v3290, %v3320
    %v3322 = vsub.f32 %v3291, %v3320
    %v3323 = vmul.f32 %v3321, 1.442695
    %v3324 = vpow.pop %v3323
    %v3325 = vmul.f32 %v3322, 1.442695
    %v3326 = vpow.pop %v3325
    %v3327 = vsel %vm825, %v3324, 0.0
    %v3328 = vsel %vm825, %v3326, 0.0
    %v3329 = vadd.f32 %v3327, %v3328
    %v3330 = vrot.slane %v3329, 4
    %v3331 = vadd.f32 %v3329, %v3330
    %v3332 = vrot.slane %v3331, 2
    %v3333 = vadd.f32 %v3331, %v3332
    %v3334 = vrot.slane %v3333, 1
    %v3335 = vadd.f32 %v3333, %v3334
    %v3336 = vrcp.pop %v3335
    %v3337 = vmul.f32 %v3324, %v3336
    %v3338 = vmul.f32 %v3326, %v3336
    %v3342 = vsel %vm825, %v3312, 0
    %v3345 = vsel %vm825, %v3313, 0
    %3347 = vmatprep.subr.mxu0 0.0
    %3348 = vmatpush1.msra.mxu0 %v3200
    %3349 = vmatprep.subr.mxu0 0.0
    %3350 = vmatpush1.msra.mxu0 %v3202
    %3351 = vmatprep.subr.mxu0 0.0
    %3352 = vmatpush1.msra.mxu0 0.0
    %3353 = vmatprep.subr.mxu0 0.0
    %3354 = vmatpush1.msra.mxu0 0.0
    %3355 = vmatprep.subr.mxu0 0.0
    %3356 = vmatpush1.msra.mxu0 0.0
    %3357 = vmatprep.subr.mxu0 0.0
    %3358 = vmatpush1.msra.mxu0 0.0
    %3359 = vmatprep.subr.mxu0 0.0
    %3360 = vmatpush1.msra.mxu0 0.0
    %3361 = vmatprep.subr.mxu0 0.0
    %3362 = vmatpush1.msra.mxu0 0.0
    %3363 = vmatprep.subr.mxu0 0.0
    %3364 = vmatpush1.msra.mxu0 0.0
    %3365 = vmatprep.subr.mxu0 0.0
    %3366 = vmatpush1.msra.mxu0 0.0
    %3367 = vmatprep.subr.mxu0 0.0
    %3368 = vmatpush1.msra.mxu0 0.0
    %3369 = vmatprep.subr.mxu0 0.0
    %3370 = vmatpush1.msra.mxu0 0.0
    %3371 = vmatprep.subr.mxu0 0.0
    %3372 = vmatpush1.msra.mxu0 0.0
    %3373 = vmatprep.subr.mxu0 0.0
    %3374 = vmatpush1.msra.mxu0 0.0
    %3375 = vmatprep.subr.mxu0 0.0
    %3376 = vmatpush1.msra.mxu0 0.0
    %3377 = vmatprep.subr.mxu0 0.0
    %3378 = vmatpush1.msra.mxu0 0.0
    %3379 = vmatprep.subr.mxu0 0.0
    %3380 = vmatpush1.msra.mxu0 0.0
    %3381 = vmatprep.subr.mxu0 0.0
    %3382 = vmatpush1.msra.mxu0 0.0
    %3383 = vmatprep.subr.mxu0 0.0
    %3384 = vmatpush1.msra.mxu0 0.0
    %3385 = vmatprep.subr.mxu0 0.0
    %3386 = vmatpush1.msra.mxu0 0.0
    %3387 = vmatprep.subr.mxu0 0.0
    %3388 = vmatpush1.msra.mxu0 0.0
    %3389 = vmatprep.subr.mxu0 0.0
    %3390 = vmatpush1.msra.mxu0 0.0
    %3391 = vmatprep.subr.mxu0 0.0
    %3392 = vmatpush1.msra.mxu0 0.0
    %3393 = vmatprep.subr.mxu0 0.0
    %3394 = vmatpush1.msra.mxu0 0.0
    %3395 = vmatprep.subr.mxu0 0.0
    %3396 = vmatpush1.msra.mxu0 0.0
    %3397 = vmatprep.subr.mxu0 0.0
    %3398 = vmatpush1.msra.mxu0 0.0
    %3399 = vmatprep.subr.mxu0 0.0
    %3400 = vmatpush1.msra.mxu0 0.0
    %3401 = vmatprep.subr.mxu0 0.0
    %3402 = vmatpush1.msra.mxu0 0.0
    %3403 = vmatprep.subr.mxu0 0.0
    %3404 = vmatpush1.msra.mxu0 0.0
    %3405 = vmatprep.subr.mxu0 0.0
    %3406 = vmatpush1.msra.mxu0 0.0
    %3407 = vmatprep.subr.mxu0 0.0
    %3408 = vmatpush1.msra.mxu0 0.0
    %3409 = vmatprep.subr.mxu0 0.0
    %3410 = vmatpush1.msra.mxu0 0.0
    %3411 = vmatprep.mubr.f32.mxu0 0.0
    %3412 = vmatmul.mubr.f32.gmra.mrb[0].mxu0 %v3342
    %v3413 = vpop.f32.mrb[0].mxu0
    %v3414 = vadd.f32 0.0, %v3413
    %v3415 = vpop.f32.mrb[0].mxu0
    %3416 = vmatprep.mubr.f32.mxu0 0.0
    %3417 = vmatmul.mubr.f32.gmra.mrb[0].mxu0 %v3345
    %v3418 = vpop.f32.mrb[0].mxu0
    %v3419 = vadd.f32 0.0, %v3418
    %v3420 = vpop.f32.mrb[0].mxu0
    %3421 = vdwg.mxu0
    %3422 = vxpose.xlu0.b32.start [1/16] %v3337, 128
    %3423 = vxpose.xlu0.b32.cont [2/16] %v3338, 128
    %3424 = vxpose.xlu0.b32.cont [3/16] 0.0, 128
    %3425 = vxpose.xlu0.b32.cont [4/16] 0.0, 128
    %3426 = vxpose.xlu0.b32.cont [5/16] 0.0, 128
    %3427 = vxpose.xlu0.b32.cont [6/16] 0.0, 128
    %3428 = vxpose.xlu0.b32.cont [7/16] 0.0, 128
    %3429 = vxpose.xlu0.b32.cont [8/16] 0.0, 128
    %3430 = vxpose.xlu0.b32.cont [9/16] 0.0, 128
    %3431 = vxpose.xlu0.b32.cont [10/16] 0.0, 128
    %3432 = vxpose.xlu0.b32.cont [11/16] 0.0, 128
    %3433 = vxpose.xlu0.b32.cont [12/16] 0.0, 128
    %3434 = vxpose.xlu0.b32.cont [13/16] 0.0, 128
    %3435 = vxpose.xlu0.b32.cont [14/16] 0.0, 128
    %3436 = vxpose.xlu0.b32.cont [15/16] 0.0, 128
    %3437 = vxpose.xlu0.b32.end [16/16] 0.0, 128
    %v3438 = vpop.trf.xlu0
    %v3439 = vpop.trf.xlu0
    %v3440 = vpop.trf.xlu0
    %v3441 = vpop.trf.xlu0
    %v3442 = vpop.trf.xlu0
    %v3443 = vpop.trf.xlu0
    %v3444 = vpop.trf.xlu0
    %v3445 = vpop.trf.xlu0
    %v3446 = vpop.trf.xlu0
    %v3447 = vpop.trf.xlu0
    %v3448 = vpop.trf.xlu0
    %v3449 = vpop.trf.xlu0
    %v3450 = vpop.trf.xlu0
    %v3451 = vpop.trf.xlu0
    %v3452 = vpop.trf.xlu0
    %v3453 = vpop.trf.xlu0
    %v3455 = vsel %vm825, %v3438, 0
    %v3458 = vsel %vm825, %v3439, 0
    %3460 = vmatprep.subr.mxu0 0.0
    %3461 = vmatpush1.msra.mxu0 %v3106
    %3462 = vmatprep.subr.mxu0 0.0
    %3463 = vmatpush1.msra.mxu0 %v3111
    %3464 = vmatprep.subr.mxu0 0.0
    %3465 = vmatpush1.msra.mxu0 0.0
    %3466 = vmatprep.subr.mxu0 0.0
    %3467 = vmatpush1.msra.mxu0 0.0
    %3468 = vmatprep.subr.mxu0 0.0
    %3469 = vmatpush1.msra.mxu0 0.0
    %3470 = vmatprep.subr.mxu0 0.0
    %3471 = vmatpush1.msra.mxu0 0.0
    %3472 = vmatprep.subr.mxu0 0.0
    %3473 = vmatpush1.msra.mxu0 0.0
    %3474 = vmatprep.subr.mxu0 0.0
    %3475 = vmatpush1.msra.mxu0 0.0
    %3476 = vmatprep.subr.mxu0 0.0
    %3477 = vmatpush1.msra.mxu0 0.0
    %3478 = vmatprep.subr.mxu0 0.0
    %3479 = vmatpush1.msra.mxu0 0.0
    %3480 = vmatprep.subr.mxu0 0.0
    %3481 = vmatpush1.msra.mxu0 0.0
    %3482 = vmatprep.subr.mxu0 0.0
    %3483 = vmatpush1.msra.mxu0 0.0
    %3484 = vmatprep.subr.mxu0 0.0
    %3485 = vmatpush1.msra.mxu0 0.0
    %3486 = vmatprep.subr.mxu0 0.0
    %3487 = vmatpush1.msra.mxu0 0.0
    %3488 = vmatprep.subr.mxu0 0.0
    %3489 = vmatpush1.msra.mxu0 0.0
    %3490 = vmatprep.subr.mxu0 0.0
    %3491 = vmatpush1.msra.mxu0 0.0
    %3492 = vmatprep.subr.mxu0 0.0
    %3493 = vmatpush1.msra.mxu0 0.0
    %3494 = vmatprep.subr.mxu0 0.0
    %3495 = vmatpush1.msra.mxu0 0.0
    %3496 = vmatprep.subr.mxu0 0.0
    %3497 = vmatpush1.msra.mxu0 0.0
    %3498 = vmatprep.subr.mxu0 0.0
    %3499 = vmatpush1.msra.mxu0 0.0
    %3500 = vmatprep.subr.mxu0 0.0
    %3501 = vmatpush1.msra.mxu0 0.0
    %3502 = vmatprep.subr.mxu0 0.0
    %3503 = vmatpush1.msra.mxu0 0.0
    %3504 = vmatprep.subr.mxu0 0.0
    %3505 = vmatpush1.msra.mxu0 0.0
    %3506 = vmatprep.subr.mxu0 0.0
    %3507 = vmatpush1.msra.mxu0 0.0
    %3508 = vmatprep.subr.mxu0 0.0
    %3509 = vmatpush1.msra.mxu0 0.0
    %3510 = vmatprep.subr.mxu0 0.0
    %3511 = vmatpush1.msra.mxu0 0.0
    %3512 = vmatprep.subr.mxu0 0.0
    %3513 = vmatpush1.msra.mxu0 0.0
    %3514 = vmatprep.subr.mxu0 0.0
    %3515 = vmatpush1.msra.mxu0 0.0
    %3516 = vmatprep.subr.mxu0 0.0
    %3517 = vmatpush1.msra.mxu0 0.0
    %3518 = vmatprep.subr.mxu0 0.0
    %3519 = vmatpush1.msra.mxu0 0.0
    %3520 = vmatprep.subr.mxu0 0.0
    %3521 = vmatpush1.msra.mxu0 0.0
    %3522 = vmatprep.subr.mxu0 0.0
    %3523 = vmatpush1.msra.mxu0 0.0
    %3524 = vmatprep.mubr.f32.mxu0 0.0
    %3525 = vmatmul.mubr.f32.gmra.mrb[0].mxu0 %v3455
    %v3526 = vpop.f32.mrb[0].mxu0
    %v3527 = vadd.f32 0.0, %v3526
    %v3528 = vpop.f32.mrb[0].mxu0
    %3529 = vmatprep.mubr.f32.mxu0 0.0
    %3530 = vmatmul.mubr.f32.gmra.mrb[0].mxu0 %v3458
    %v3531 = vpop.f32.mrb[0].mxu0
    %v3532 = vadd.f32 0.0, %v3531
    %v3533 = vpop.f32.mrb[0].mxu0
    %3534 = vdwg.mxu0
    %v3535 = vld [vmem:[%s2513 + $0x70] sm:$0xff]
    %v3536 = vld [vmem:[%s2513 + $0x88] sm:$0xff]
    %v3537 = vld [vmem:[%s2513 + $0xa0] sm:$0xff]
    %v3538 = vld [vmem:[%s2513 + $0xb8] sm:$0xff]
    %3543 = vrot.lane.b32.xlu0 %v3535, 96
    %v3544 = vpop.permute.xlu0 %3543
    %3545 = vrot.lane.b32.xlu0 %v3536, 96
    %v3546 = vpop.permute.xlu0 %3545
    %3547 = vrot.lane.b32.xlu0 %v3537, 96
    %v3548 = vpop.permute.xlu0 %3547
    %3549 = vrot.lane.b32.xlu0 %v3538, 96
    %v3550 = vpop.permute.xlu0 %3549
    %v3556 = vsel %vm643, %v3527, 0
    %v3559 = vsel %vm643, %v3532, 0
    %3561 = vmatprep.subr.mxu0 0.0
    %3562 = vmatpush1.msra.mxu0 %v3544
    %3563 = vmatprep.subr.mxu0 0.0
    %3564 = vmatpush1.msra.mxu0 %v3546
    %3565 = vmatprep.subr.mxu0 0.0
    %3566 = vmatpush1.msra.mxu0 %v3548
    %3567 = vmatprep.subr.mxu0 0.0
    %3568 = vmatpush1.msra.mxu0 %v3550
    %3569 = vmatprep.subr.mxu0 0.0
    %3570 = vmatpush1.msra.mxu0 0.0
    %3571 = vmatprep.subr.mxu0 0.0
    %3572 = vmatpush1.msra.mxu0 0.0
    %3573 = vmatprep.subr.mxu0 0.0
    %3574 = vmatpush1.msra.mxu0 0.0
    %3575 = vmatprep.subr.mxu0 0.0
    %3576 = vmatpush1.msra.mxu0 0.0
    %3577 = vmatprep.subr.mxu0 0.0
    %3578 = vmatpush1.msra.mxu0 0.0
    %3579 = vmatprep.subr.mxu0 0.0
    %3580 = vmatpush1.msra.mxu0 0.0
    %3581 = vmatprep.subr.mxu0 0.0
    %3582 = vmatpush1.msra.mxu0 0.0
    %3583 = vmatprep.subr.mxu0 0.0
    %3584 = vmatpush1.msra.mxu0 0.0
    %3585 = vmatprep.subr.mxu0 0.0
    %3586 = vmatpush1.msra.mxu0 0.0
    %3587 = vmatprep.subr.mxu0 0.0
    %3588 = vmatpush1.msra.mxu0 0.0
    %3589 = vmatprep.subr.mxu0 0.0
    %3590 = vmatpush1.msra.mxu0 0.0
    %3591 = vmatprep.subr.mxu0 0.0
    %3592 = vmatpush1.msra.mxu0 0.0
    %3593 = vmatprep.subr.mxu0 0.0
    %3594 = vmatpush1.msra.mxu0 0.0
    %3595 = vmatprep.subr.mxu0 0.0
    %3596 = vmatpush1.msra.mxu0 0.0
    %3597 = vmatprep.subr.mxu0 0.0
    %3598 = vmatpush1.msra.mxu0 0.0
    %3599 = vmatprep.subr.mxu0 0.0
    %3600 = vmatpush1.msra.mxu0 0.0
    %3601 = vmatprep.subr.mxu0 0.0
    %3602 = vmatpush1.msra.mxu0 0.0
    %3603 = vmatprep.subr.mxu0 0.0
    %3604 = vmatpush1.msra.mxu0 0.0
    %3605 = vmatprep.subr.mxu0 0.0
    %3606 = vmatpush1.msra.mxu0 0.0
    %3607 = vmatprep.subr.mxu0 0.0
    %3608 = vmatpush1.msra.mxu0 0.0
    %3609 = vmatprep.subr.mxu0 0.0
    %3610 = vmatpush1.msra.mxu0 0.0
    %3611 = vmatprep.subr.mxu0 0.0
    %3612 = vmatpush1.msra.mxu0 0.0
    %3613 = vmatprep.subr.mxu0 0.0
    %3614 = vmatpush1.msra.mxu0 0.0
    %3615 = vmatprep.subr.mxu0 0.0
    %3616 = vmatpush1.msra.mxu0 0.0
    %3617 = vmatprep.subr.mxu0 0.0
    %3618 = vmatpush1.msra.mxu0 0.0
    %3619 = vmatprep.subr.mxu0 0.0
    %3620 = vmatpush1.msra.mxu0 0.0
    %3621 = vmatprep.subr.mxu0 0.0
    %3622 = vmatpush1.msra.mxu0 0.0
    %3623 = vmatprep.subr.mxu0 0.0
    %3624 = vmatpush1.msra.mxu0 0.0
    %3625 = vmatprep.mubr.f32.mxu0 0.0
    %3626 = vmatmul.mubr.f32.gmra.mrb[0].mxu0 %v3556
    %v3627 = vpop.f32.mrb[0].mxu0
    %v3628 = vadd.f32 0.0, %v3627
    %v3629 = vpop.f32.mrb[0].mxu0
    %3630 = vmatprep.mubr.f32.mxu0 0.0
    %3631 = vmatmul.mubr.f32.gmra.mrb[0].mxu0 %v3559
    %v3632 = vpop.f32.mrb[0].mxu0
    %v3633 = vadd.f32 0.0, %v3632
    %v3634 = vpop.f32.mrb[0].mxu0
    %3635 = vdwg.mxu0
    %3640 = vrot.lane.b32.xlu0 %v3114, 96
    %v3641 = vpop.permute.xlu0 %3640
    %3642 = vrot.lane.b32.xlu0 %v3115, 96
    %v3643 = vpop.permute.xlu0 %3642
    %3644 = vrot.lane.b32.xlu0 %v3116, 96
    %v3645 = vpop.permute.xlu0 %3644
    %3646 = vrot.lane.b32.xlu0 %v3117, 96
    %v3647 = vpop.permute.xlu0 %3646
    %v3653 = vsel %vm643, %v3414, 0
    %v3656 = vsel %vm643, %v3419, 0
    %3658 = vmatprep.subr.mxu0 0.0
    %3659 = vmatpush1.msra.mxu0 %v3641
    %3660 = vmatprep.subr.mxu0 0.0
    %3661 = vmatpush1.msra.mxu0 %v3643
    %3662 = vmatprep.subr.mxu0 0.0
    %3663 = vmatpush1.msra.mxu0 %v3645
    %3664 = vmatprep.subr.mxu0 0.0
    %3665 = vmatpush1.msra.mxu0 %v3647
    %3666 = vmatprep.subr.mxu0 0.0
    %3667 = vmatpush1.msra.mxu0 0.0
    %3668 = vmatprep.subr.mxu0 0.0
    %3669 = vmatpush1.msra.mxu0 0.0
    %3670 = vmatprep.subr.mxu0 0.0
    %3671 = vmatpush1.msra.mxu0 0.0
    %3672 = vmatprep.subr.mxu0 0.0
    %3673 = vmatpush1.msra.mxu0 0.0
    %3674 = vmatprep.subr.mxu0 0.0
    %3675 = vmatpush1.msra.mxu0 0.0
    %3676 = vmatprep.subr.mxu0 0.0
    %3677 = vmatpush1.msra.mxu0 0.0
    %3678 = vmatprep.subr.mxu0 0.0
    %3679 = vmatpush1.msra.mxu0 0.0
    %3680 = vmatprep.subr.mxu0 0.0
    %3681 = vmatpush1.msra.mxu0 0.0
    %3682 = vmatprep.subr.mxu0 0.0
    %3683 = vmatpush1.msra.mxu0 0.0
    %3684 = vmatprep.subr.mxu0 0.0
    %3685 = vmatpush1.msra.mxu0 0.0
    %3686 = vmatprep.subr.mxu0 0.0
    %3687 = vmatpush1.msra.mxu0 0.0
    %3688 = vmatprep.subr.mxu0 0.0
    %3689 = vmatpush1.msra.mxu0 0.0
    %3690 = vmatprep.subr.mxu0 0.0
    %3691 = vmatpush1.msra.mxu0 0.0
    %3692 = vmatprep.subr.mxu0 0.0
    %3693 = vmatpush1.msra.mxu0 0.0
    %3694 = vmatprep.subr.mxu0 0.0
    %3695 = vmatpush1.msra.mxu0 0.0
    %3696 = vmatprep.subr.mxu0 0.0
    %3697 = vmatpush1.msra.mxu0 0.0
    %3698 = vmatprep.subr.mxu0 0.0
    %3699 = vmatpush1.msra.mxu0 0.0
    %3700 = vmatprep.subr.mxu0 0.0
    %3701 = vmatpush1.msra.mxu0 0.0
    %3702 = vmatprep.subr.mxu0 0.0
    %3703 = vmatpush1.msra.mxu0 0.0
    %3704 = vmatprep.subr.mxu0 0.0
    %3705 = vmatpush1.msra.mxu0 0.0
    %3706 = vmatprep.subr.mxu0 0.0
    %3707 = vmatpush1.msra.mxu0 0.0
    %3708 = vmatprep.subr.mxu0 0.0
    %3709 = vmatpush1.msra.mxu0 0.0
    %3710 = vmatprep.subr.mxu0 0.0
    %3711 = vmatpush1.msra.mxu0 0.0
    %3712 = vmatprep.subr.mxu0 0.0
    %3713 = vmatpush1.msra.mxu0 0.0
    %3714 = vmatprep.subr.mxu0 0.0
    %3715 = vmatpush1.msra.mxu0 0.0
    %3716 = vmatprep.subr.mxu0 0.0
    %3717 = vmatpush1.msra.mxu0 0.0
    %3718 = vmatprep.subr.mxu0 0.0
    %3719 = vmatpush1.msra.mxu0 0.0
    %3720 = vmatprep.subr.mxu0 0.0
    %3721 = vmatpush1.msra.mxu0 0.0
    %3722 = vmatprep.mubr.f32.mxu0 0.0
    %3723 = vmatmul.mubr.f32.gmra.mrb[0].mxu0 %v3653
    %v3724 = vpop.f32.mrb[0].mxu0
    %v3725 = vadd.f32 %v3628, %v3724
    %v3726 = vpop.f32.mrb[0].mxu0
    %3727 = vmatprep.mubr.f32.mxu0 0.0
    %3728 = vmatmul.mubr.f32.gmra.mrb[0].mxu0 %v3656
    %v3729 = vpop.f32.mrb[0].mxu0
    %v3730 = vadd.f32 %v3633, %v3729
    %v3731 = vpop.f32.mrb[0].mxu0
    %3732 = vdwg.mxu0
    %v3733 = vld [vmem:[%s2530 + $0x2] sm:$0x1]
    %v3735 = vlaneseq
    %v3736 = vshrl.u32 %v3735, 7
    %v3737 = vsub.s32 0, %v3736
    %v3738 = vrot.slane %v3733, %v3737
    %3739 = vrot.lane.b32.xlu0 %v3738, 96
    %v3740 = vpop.permute.xlu0 %3739
    %v3742 = vadd.f32 %v3725, %v3740
    %v3743 = vadd.f32 %v3730, %v3740
    %v3744 = vtanh.pop %v3742
    %v3745 = vtanh.pop %v3743
    %v3746 = vld [vmem:[%s3] sm:$0xff]
    %v3747 = vld [vmem:[%s3 + $0x10] sm:$0xff]
    %v3748 = vld [vmem:[%s3 + $0x20] sm:$0xff]
    %v3749 = vld [vmem:[%s3 + $0x30] sm:$0xff]
    %v3750 = vld [vmem:[%s3 + $0x40] sm:$0xff]
    %v3751 = vld [vmem:[%s3 + $0x50] sm:$0xff]
    %v3752 = vld [vmem:[%s3 + $0x60] sm:$0xff]
    %v3753 = vld [vmem:[%s3 + $0x70] sm:$0xff]
    %v3754 = vld [vmem:[%s3] ss:$0 sm:$0xff]
    %v3755 = vld [vmem:[%s3 + $0x8] ss:$0 sm:$0xff]
    %3764 = vrot.lane.b32.xlu0 %v3746, 48
    %v3765 = vpop.permute.xlu0 %3764
    %3766 = vrot.lane.b32.xlu0 %v3747, 48
    %v3767 = vpop.permute.xlu0 %3766
    %3768 = vrot.lane.b32.xlu0 %v3748, 48
    %v3769 = vpop.permute.xlu0 %3768
    %3770 = vrot.lane.b32.xlu0 %v3749, 48
    %v3771 = vpop.permute.xlu0 %3770
    %3772 = vrot.lane.b32.xlu0 %v3750, 48
    %v3773 = vpop.permute.xlu0 %3772
    %3774 = vrot.lane.b32.xlu0 %v3751, 48
    %v3775 = vpop.permute.xlu0 %3774
    %3776 = vrot.lane.b32.xlu0 %v3752, 48
    %v3777 = vpop.permute.xlu0 %3776
    %3778 = vrot.lane.b32.xlu0 %v3753, 48
    %v3779 = vpop.permute.xlu0 %3778
    %3790 = vrot.lane.b32.xlu0 %v3754, 14
    %v3791 = vpop.permute.xlu0 %3790
    %3792 = vrot.lane.b32.xlu0 %v3755, 14
    %v3793 = vpop.permute.xlu0 %3792
    %vm3794 = vcmask 113664
    %v3795 = vsel %vm3794, %v3791, %v3793
    %v3798 = vsel %vm63, %v3744, 0
    %v3801 = vsel %vm63, %v3745, 0
    %3803 = vmatprep.subr.mxu0 0.0
    %3804 = vmatpush1.msra.mxu0 %v3765
    %3805 = vmatprep.subr.mxu0 0.0
    %3806 = vmatpush1.msra.mxu0 %v3767
    %3807 = vmatprep.subr.mxu0 0.0
    %3808 = vmatpush1.msra.mxu0 %v3769
    %3809 = vmatprep.subr.mxu0 0.0
    %3810 = vmatpush1.msra.mxu0 %v3771
    %3811 = vmatprep.subr.mxu0 0.0
    %3812 = vmatpush1.msra.mxu0 %v3773
    %3813 = vmatprep.subr.mxu0 0.0
    %3814 = vmatpush1.msra.mxu0 %v3775
    %3815 = vmatprep.subr.mxu0 0.0
    %3816 = vmatpush1.msra.mxu0 %v3777
    %3817 = vmatprep.subr.mxu0 0.0
    %3818 = vmatpush1.msra.mxu0 %v3779
    %3819 = vmatprep.subr.mxu0 0.0
    %3820 = vmatpush1.msra.mxu0 0.0
    %3821 = vmatprep.subr.mxu0 0.0
    %3822 = vmatpush1.msra.mxu0 0.0
    %3823 = vmatprep.subr.mxu0 0.0
    %3824 = vmatpush1.msra.mxu0 0.0
    %3825 = vmatprep.subr.mxu0 0.0
    %3826 = vmatpush1.msra.mxu0 0.0
    %3827 = vmatprep.subr.mxu0 0.0
    %3828 = vmatpush1.msra.mxu0 0.0
    %3829 = vmatprep.subr.mxu0 0.0
    %3830 = vmatpush1.msra.mxu0 0.0
    %3831 = vmatprep.subr.mxu0 0.0
    %3832 = vmatpush1.msra.mxu0 0.0
    %3833 = vmatprep.subr.mxu0 0.0
    %3834 = vmatpush1.msra.mxu0 0.0
    %3835 = vmatprep.subr.mxu0 0.0
    %3836 = vmatpush1.msra.mxu0 0.0
    %3837 = vmatprep.subr.mxu0 0.0
    %3838 = vmatpush1.msra.mxu0 0.0
    %3839 = vmatprep.subr.mxu0 0.0
    %3840 = vmatpush1.msra.mxu0 0.0
    %3841 = vmatprep.subr.mxu0 0.0
    %3842 = vmatpush1.msra.mxu0 0.0
    %3843 = vmatprep.subr.mxu0 0.0
    %3844 = vmatpush1.msra.mxu0 0.0
    %3845 = vmatprep.subr.mxu0 0.0
    %3846 = vmatpush1.msra.mxu0 0.0
    %3847 = vmatprep.subr.mxu0 0.0
    %3848 = vmatpush1.msra.mxu0 0.0
    %3849 = vmatprep.subr.mxu0 0.0
    %3850 = vmatpush1.msra.mxu0 0.0
    %3851 = vmatprep.subr.mxu0 0.0
    %3852 = vmatpush1.msra.mxu0 0.0
    %3853 = vmatprep.subr.mxu0 0.0
    %3854 = vmatpush1.msra.mxu0 0.0
    %3855 = vmatprep.subr.mxu0 0.0
    %3856 = vmatpush1.msra.mxu0 0.0
    %3857 = vmatprep.subr.mxu0 0.0
    %3858 = vmatpush1.msra.mxu0 0.0
    %3859 = vmatprep.subr.mxu0 0.0
    %3860 = vmatpush1.msra.mxu0 0.0
    %3861 = vmatprep.subr.mxu0 0.0
    %3862 = vmatpush1.msra.mxu0 0.0
    %3863 = vmatprep.subr.mxu0 0.0
    %3864 = vmatpush1.msra.mxu0 0.0
    %3865 = vmatprep.subr.mxu0 0.0
    %3866 = vmatpush1.msra.mxu0 0.0
    %3867 = vmatprep.mubr.f32.mxu0 0.0
    %3868 = vmatmul.mubr.f32.gmra.mrb[0].mxu0 %v3798
    %v3869 = vpop.f32.mrb[0].mxu0
    %v3870 = vadd.f32 %v3795, %v3869
    %v3871 = vpop.f32.mrb[0].mxu0
    %3872 = vmatprep.mubr.f32.mxu0 0.0
    %3873 = vmatmul.mubr.f32.gmra.mrb[0].mxu0 %v3801
    %v3874 = vpop.f32.mrb[0].mxu0
    %v3875 = vadd.f32 %v3795, %v3874
    %v3876 = vpop.f32.mrb[0].mxu0
    %3877 = vdwg.mxu0
    %vm3878 = vcmp.ge.f32.partialorder %v3870, 0.0
    %vm3879 = vcmp.ge.f32.partialorder %v3875, 0.0
    %v3880 = vmul.f32 %v3870, 0.01
    %v3881 = vmul.f32 %v3875, 0.01
    %v3882 = vsel %vm3878, %v3870, %v3880
    %v3883 = vsel %vm3879, %v3875, %v3881
    %v3884 = vld [vmem:[%s3] sm:$0xff]
    %v3885 = vld [vmem:[%s3 + $0x10] sm:$0xff]
    %v3886 = vld [vmem:[%s3 + $0x20] sm:$0xff]
    %v3887 = vld [vmem:[%s3 + $0x30] sm:$0xff]
    %3892 = vrot.lane.b32.xlu0 %v3884, 16
    %v3893 = vpop.permute.xlu0 %3892
    %3894 = vrot.lane.b32.xlu0 %v3885, 16
    %v3895 = vpop.permute.xlu0 %3894
    %3896 = vrot.lane.b32.xlu0 %v3886, 16
    %v3897 = vpop.permute.xlu0 %3896
    %3898 = vrot.lane.b32.xlu0 %v3887, 16
    %v3899 = vpop.permute.xlu0 %3898
    %3904 = vrot.lane.b32.xlu0 %v3755, 110
    %v3905 = vpop.permute.xlu0 %3904
    %v3908 = vsel %vm643, %v3882, 0
    %v3911 = vsel %vm643, %v3883, 0
    %3913 = vmatprep.subr.mxu0 0.0
    %3914 = vmatpush1.msra.mxu0 %v3893
    %3915 = vmatprep.subr.mxu0 0.0
    %3916 = vmatpush1.msra.mxu0 %v3895
    %3917 = vmatprep.subr.mxu0 0.0
    %3918 = vmatpush1.msra.mxu0 %v3897
    %3919 = vmatprep.subr.mxu0 0.0
    %3920 = vmatpush1.msra.mxu0 %v3899
    %3921 = vmatprep.subr.mxu0 0.0
    %3922 = vmatpush1.msra.mxu0 0.0
    %3923 = vmatprep.subr.mxu0 0.0
    %3924 = vmatpush1.msra.mxu0 0.0
    %3925 = vmatprep.subr.mxu0 0.0
    %3926 = vmatpush1.msra.mxu0 0.0
    %3927 = vmatprep.subr.mxu0 0.0
    %3928 = vmatpush1.msra.mxu0 0.0
    %3929 = vmatprep.subr.mxu0 0.0
    %3930 = vmatpush1.msra.mxu0 0.0
    %3931 = vmatprep.subr.mxu0 0.0
    %3932 = vmatpush1.msra.mxu0 0.0
    %3933 = vmatprep.subr.mxu0 0.0
    %3934 = vmatpush1.msra.mxu0 0.0
    %3935 = vmatprep.subr.mxu0 0.0
    %3936 = vmatpush1.msra.mxu0 0.0
    %3937 = vmatprep.subr.mxu0 0.0
    %3938 = vmatpush1.msra.mxu0 0.0
    %3939 = vmatprep.subr.mxu0 0.0
    %3940 = vmatpush1.msra.mxu0 0.0
    %3941 = vmatprep.subr.mxu0 0.0
    %3942 = vmatpush1.msra.mxu0 0.0
    %3943 = vmatprep.subr.mxu0 0.0
    %3944 = vmatpush1.msra.mxu0 0.0
    %3945 = vmatprep.subr.mxu0 0.0
    %3946 = vmatpush1.msra.mxu0 0.0
    %3947 = vmatprep.subr.mxu0 0.0
    %3948 = vmatpush1.msra.mxu0 0.0
    %3949 = vmatprep.subr.mxu0 0.0
    %3950 = vmatpush1.msra.mxu0 0.0
    %3951 = vmatprep.subr.mxu0 0.0
    %3952 = vmatpush1.msra.mxu0 0.0
    %3953 = vmatprep.subr.mxu0 0.0
    %3954 = vmatpush1.msra.mxu0 0.0
    %3955 = vmatprep.subr.mxu0 0.0
    %3956 = vmatpush1.msra.mxu0 0.0
    %3957 = vmatprep.subr.mxu0 0.0
    %3958 = vmatpush1.msra.mxu0 0.0
    %3959 = vmatprep.subr.mxu0 0.0
    %3960 = vmatpush1.msra.mxu0 0.0
    %3961 = vmatprep.subr.mxu0 0.0
    %3962 = vmatpush1.msra.mxu0 0.0
    %3963 = vmatprep.subr.mxu0 0.0
    %3964 = vmatpush1.msra.mxu0 0.0
    %3965 = vmatprep.subr.mxu0 0.0
    %3966 = vmatpush1.msra.mxu0 0.0
    %3967 = vmatprep.subr.mxu0 0.0
    %3968 = vmatpush1.msra.mxu0 0.0
    %3969 = vmatprep.subr.mxu0 0.0
    %3970 = vmatpush1.msra.mxu0 0.0
    %3971 = vmatprep.subr.mxu0 0.0
    %3972 = vmatpush1.msra.mxu0 0.0
    %3973 = vmatprep.subr.mxu0 0.0
    %3974 = vmatpush1.msra.mxu0 0.0
    %3975 = vmatprep.subr.mxu0 0.0
    %3976 = vmatpush1.msra.mxu0 0.0
    %3977 = vmatprep.mubr.f32.mxu0 0.0
    %3978 = vmatmul.mubr.f32.gmra.mrb[0].mxu0 %v3908
    %v3979 = vpop.f32.mrb[0].mxu0
    %v3980 = vadd.f32 %v3905, %v3979
    %v3981 = vpop.f32.mrb[0].mxu0
    %3982 = vmatprep.mubr.f32.mxu0 0.0
    %3983 = vmatmul.mubr.f32.gmra.mrb[0].mxu0 %v3911
    %v3984 = vpop.f32.mrb[0].mxu0
    %v3985 = vadd.f32 %v3905, %v3984
    %v3986 = vpop.f32.mrb[0].mxu0
    %3987 = vdwg.mxu0
    %v3988 = vld [vmem:[%s3 + $0x8] sm:$0xff]
    %v3989 = vld [vmem:[%s3 + $0x18] sm:$0xff]
    %3991 = vset.pattern.permute.xlu0 0
    %3992 = vperm.xlu0 %3991, %v3980
    %v3993 = vpop.permute.xlu0 %3992
    %3996 = vset.pattern.permute.xlu0 0
    %3997 = vperm.xlu0 %3996, %v3985
    %v3998 = vpop.permute.xlu0 %3997
    %v4000 = vmul.f32 %v3993, %v3988
    %v4001 = vmul.f32 %v3998, %v3989
    %4002 = vset.pattern.permute.xlu0 1
    %4003 = vperm.xlu0 %4002, %v3980
    %v4004 = vpop.permute.xlu0 %4003
    %4006 = vset.pattern.permute.xlu0 1
    %4007 = vperm.xlu0 %4006, %v3985
    %v4008 = vpop.permute.xlu0 %4007
    %v4010 = vmul.f32 %v4004, %v3988
    %v4011 = vmul.f32 %v4008, %v3989
    %4014 = vrot.lane.b32.xlu0 %v4010, 124
    %v4015 = vpop.permute.xlu0 %4014
    %4016 = vrot.lane.b32.xlu0 %v4011, 124
    %v4017 = vpop.permute.xlu0 %4016
    %v4020 = vadd.f32 %v4000, %v4015
    %v4021 = vadd.f32 %v4001, %v4017
    %v4022 = vld [vmem:[%s3 + $0x8] sm:$0x3]
    %4024 = vrot.lane.b32.xlu0 %v4022, 94
    %v4025 = vpop.permute.xlu0 %4024
    %4028 = vrot.lane.b32.xlu0 %v4020, 108
    %v4029 = vpop.permute.xlu0 %4028
    %4030 = vrot.lane.b32.xlu0 %v4021, 108
    %v4031 = vpop.permute.xlu0 %4030
    %4034 = vrot.lane.b32.xlu0 %v3755, 100
    %v4035 = vpop.permute.xlu0 %4034
    %v4037 = vsel %vm825, %v4025, 0
    %4039 = vmatprep.subr.mxu0 0.0
    %4040 = vmatpush1.msra.mxu0 %v4029
    %4041 = vmatprep.subr.mxu0 0.0
    %4042 = vmatpush1.msra.mxu0 %v4031
    %4043 = vmatprep.subr.mxu0 0.0
    %4044 = vmatpush1.msra.mxu0 0.0
    %4045 = vmatprep.subr.mxu0 0.0
    %4046 = vmatpush1.msra.mxu0 0.0
    %4047 = vmatprep.subr.mxu0 0.0
    %4048 = vmatpush1.msra.mxu0 0.0
    %4049 = vmatprep.subr.mxu0 0.0
    %4050 = vmatpush1.msra.mxu0 0.0
    %4051 = vmatprep.subr.mxu0 0.0
    %4052 = vmatpush1.msra.mxu0 0.0
    %4053 = vmatprep.subr.mxu0 0.0
    %4054 = vmatpush1.msra.mxu0 0.0
    %4055 = vmatprep.subr.mxu0 0.0
    %4056 = vmatpush1.msra.mxu0 0.0
    %4057 = vmatprep.subr.mxu0 0.0
    %4058 = vmatpush1.msra.mxu0 0.0
    %4059 = vmatprep.subr.mxu0 0.0
    %4060 = vmatpush1.msra.mxu0 0.0
    %4061 = vmatprep.subr.mxu0 0.0
    %4062 = vmatpush1.msra.mxu0 0.0
    %4063 = vmatprep.subr.mxu0 0.0
    %4064 = vmatpush1.msra.mxu0 0.0
    %4065 = vmatprep.subr.mxu0 0.0
    %4066 = vmatpush1.msra.mxu0 0.0
    %4067 = vmatprep.subr.mxu0 0.0
    %4068 = vmatpush1.msra.mxu0 0.0
    %4069 = vmatprep.subr.mxu0 0.0
    %4070 = vmatpush1.msra.mxu0 0.0
    %4071 = vmatprep.subr.mxu0 0.0
    %4072 = vmatpush1.msra.mxu0 0.0
    %4073 = vmatprep.subr.mxu0 0.0
    %4074 = vmatpush1.msra.mxu0 0.0
    %4075 = vmatprep.subr.mxu0 0.0
    %4076 = vmatpush1.msra.mxu0 0.0
    %4077 = vmatprep.subr.mxu0 0.0
    %4078 = vmatpush1.msra.mxu0 0.0
    %4079 = vmatprep.subr.mxu0 0.0
    %4080 = vmatpush1.msra.mxu0 0.0
    %4081 = vmatprep.subr.mxu0 0.0
    %4082 = vmatpush1.msra.mxu0 0.0
    %4083 = vmatprep.subr.mxu0 0.0
    %4084 = vmatpush1.msra.mxu0 0.0
    %4085 = vmatprep.subr.mxu0 0.0
    %4086 = vmatpush1.msra.mxu0 0.0
    %4087 = vmatprep.subr.mxu0 0.0
    %4088 = vmatpush1.msra.mxu0 0.0
    %4089 = vmatprep.subr.mxu0 0.0
    %4090 = vmatpush1.msra.mxu0 0.0
    %4091 = vmatprep.subr.mxu0 0.0
    %4092 = vmatpush1.msra.mxu0 0.0
    %4093 = vmatprep.subr.mxu0 0.0
    %4094 = vmatpush1.msra.mxu0 0.0
    %4095 = vmatprep.subr.mxu0 0.0
    %4096 = vmatpush1.msra.mxu0 0.0
    %4097 = vmatprep.subr.mxu0 0.0
    %4098 = vmatpush1.msra.mxu0 0.0
    %4099 = vmatprep.subr.mxu0 0.0
    %4100 = vmatpush1.msra.mxu0 0.0
    %4101 = vmatprep.subr.mxu0 0.0
    %4102 = vmatpush1.msra.mxu0 0.0
    %4103 = vmatprep.mubr.f32.mxu0 0.0
    %4104 = vmatmul.mubr.f32.gmra.mrb[0].mxu0 %v4037
    %v4105 = vpop.f32.mrb[0].mxu0
    %v4106 = vadd.f32 %v4035, %v4105
    %v4107 = vpop.f32.mrb[0].mxu0
    %4108 = vdwg.mxu0
    %vm4109 = vcmp.ge.f32.partialorder %v4106, 0.0
    %v4110 = vmul.f32 %v4106, 0.01
    %v4111 = vsel %vm4109, %v4106, %v4110
    %v4112 = vld [vmem:[%s3 + $0x8] sm:$0xf]
    %4114 = vrot.lane.b32.xlu0 %v4112, 96
    %v4115 = vpop.permute.xlu0 %4114
    %4116 = vrot.lane.b32.xlu0 %v3755, 95
    %v4117 = vpop.permute.xlu0 %4116
    %vm4119 = vcmask 31744
    %v4121 = vsel %vm4119, %v4111, 0
    %vm4123 = vcmask 1043456
    %v4124 = vsel %vm4123, %v4115, 0
    %4126 = vmatprep.subr.mxu0 0.0
    %4127 = vmatpush1.msra.mxu0 %v4124
    %4128 = vmatprep.subr.mxu0 0.0
    %4129 = vmatpush1.msra.mxu0 0.0
    %4130 = vmatprep.subr.mxu0 0.0
    %4131 = vmatpush1.msra.mxu0 0.0
    %4132 = vmatprep.subr.mxu0 0.0
    %4133 = vmatpush1.msra.mxu0 0.0
    %4134 = vmatprep.subr.mxu0 0.0
    %4135 = vmatpush1.msra.mxu0 0.0
    %4136 = vmatprep.subr.mxu0 0.0
    %4137 = vmatpush1.msra.mxu0 0.0
    %4138 = vmatprep.subr.mxu0 0.0
    %4139 = vmatpush1.msra.mxu0 0.0
    %4140 = vmatprep.subr.mxu0 0.0
    %4141 = vmatpush1.msra.mxu0 0.0
    %4142 = vmatprep.subr.mxu0 0.0
    %4143 = vmatpush1.msra.mxu0 0.0
    %4144 = vmatprep.subr.mxu0 0.0
    %4145 = vmatpush1.msra.mxu0 0.0
    %4146 = vmatprep.subr.mxu0 0.0
    %4147 = vmatpush1.msra.mxu0 0.0
    %4148 = vmatprep.subr.mxu0 0.0
    %4149 = vmatpush1.msra.mxu0 0.0
    %4150 = vmatprep.subr.mxu0 0.0
    %4151 = vmatpush1.msra.mxu0 0.0
    %4152 = vmatprep.subr.mxu0 0.0
    %4153 = vmatpush1.msra.mxu0 0.0
    %4154 = vmatprep.subr.mxu0 0.0
    %4155 = vmatpush1.msra.mxu0 0.0
    %4156 = vmatprep.subr.mxu0 0.0
    %4157 = vmatpush1.msra.mxu0 0.0
    %4158 = vmatprep.subr.mxu0 0.0
    %4159 = vmatpush1.msra.mxu0 0.0
    %4160 = vmatprep.subr.mxu0 0.0
    %4161 = vmatpush1.msra.mxu0 0.0
    %4162 = vmatprep.subr.mxu0 0.0
    %4163 = vmatpush1.msra.mxu0 0.0
    %4164 = vmatprep.subr.mxu0 0.0
    %4165 = vmatpush1.msra.mxu0 0.0
    %4166 = vmatprep.subr.mxu0 0.0
    %4167 = vmatpush1.msra.mxu0 0.0
    %4168 = vmatprep.subr.mxu0 0.0
    %4169 = vmatpush1.msra.mxu0 0.0
    %4170 = vmatprep.subr.mxu0 0.0
    %4171 = vmatpush1.msra.mxu0 0.0
    %4172 = vmatprep.subr.mxu0 0.0
    %4173 = vmatpush1.msra.mxu0 0.0
    %4174 = vmatprep.subr.mxu0 0.0
    %4175 = vmatpush1.msra.mxu0 0.0
    %4176 = vmatprep.subr.mxu0 0.0
    %4177 = vmatpush1.msra.mxu0 0.0
    %4178 = vmatprep.subr.mxu0 0.0
    %4179 = vmatpush1.msra.mxu0 0.0
    %4180 = vmatprep.subr.mxu0 0.0
    %4181 = vmatpush1.msra.mxu0 0.0
    %4182 = vmatprep.subr.mxu0 0.0
    %4183 = vmatpush1.msra.mxu0 0.0
    %4184 = vmatprep.subr.mxu0 0.0
    %4185 = vmatpush1.msra.mxu0 0.0
    %4186 = vmatprep.subr.mxu0 0.0
    %4187 = vmatpush1.msra.mxu0 0.0
    %4188 = vmatprep.subr.mxu0 0.0
    %4189 = vmatpush1.msra.mxu0 0.0
    %4190 = vmatprep.mubr.f32.mxu0 0.0
    %4191 = vmatmul.mubr.f32.gmra.mrb[0].mxu0 %v4121
    %v4192 = vpop.f32.mrb[0].mxu0
    %v4193 = vadd.f32 %v4117, %v4192
    %v4194 = vpop.f32.mrb[0].mxu0
    %4195 = vdwg.mxu0
    %v4196 = vsub.f32 0.0, %v4193
    %v4197 = vmul.f32 %v4196, 1.442695
    %v4198 = vpow.pop %v4197
    %v4199 = vadd.f32 %v4198, 1.0
    %v4200 = vrcp.pop %v4199
    %v4201 = vmul.f32 1.0, %v4200
    %vm4202 = vcmask 1024
    %4203 = vst.msk [vmem:[%s4] sm:$0x3] %vm4202, %v4201
    // Predicated region
    $region22: #{forward.1} parent=1 // pred_check
      _
    $region23: #{forward.1} parent=1 // pred_check_branch
      %4205 = sbr.rel (0) target = $region25
    $region24: #{forward.1} parent=1 // pred_region
      _
    $region25: #{forward.1} parent=1 // pred_fallthru
      _
    // Predicated region
    $region26: #{forward.1} parent=1 // pred_check
      _
    $region27: #{forward.1} parent=1 // pred_check_branch
      %4207 = sbr.rel (0) target = $region29
    $region28: #{forward.1} parent=1 // pred_region
      _
    $region29: #{forward.1} parent=1 // pred_fallthru
      _
    %4208 = vsyncpa [#allocation3], 1

</llo_original>
